<compile_context>
chip_gen: v6e
topology: v6e:2x2x1
jax: 0.10.0
libtpu: 0.0.40
codegen_flags: <defaults>
</compile_context>

<pallas_src>
import jax
import jax.numpy as jnp
from jax.experimental import pallas as pl
from jax.experimental.pallas import tpu as pltpu


# ----------------------------------------------------------------------------
# Static geometry (the module's input is fixed at (1, 1, 188, 192)).
# ----------------------------------------------------------------------------
H_IN, W_IN = 188, 192
K1, S1, P1 = 2, 4, 8
K2, S2, P2 = 14, 15, 1
S3 = 7
C1, C2, C3 = 3, 8, 5

OH1 = (H_IN + 2 * P1 - K1) // S1 + 1          # 51
OW1 = (W_IN + 2 * P1 - K1) // S1 + 1          # 52
OH2 = (OH1 + 2 * P2 - K2) // S2 + 1           # 3
OW2 = (OW1 + 2 * P2 - K2) // S2 + 1           # 3
OH3 = (OH2 - 1) * S3 + 1                      # 15
OW3 = (OW2 - 1) * S3 + 1                      # 15
NPOS = OH2 * OW2                              # 9


def _erf_poly(x):
    """Abramowitz & Stegun 7.1.26 erf approximation, |err| <= 1.5e-7."""
    a1, a2, a3, a4, a5 = (0.254829592, -0.284496736, 1.421413741,
                          -1.453152027, 1.061405429)
    p = 0.3275911
    sgn = jnp.where(x < 0.0, -1.0, 1.0)
    ax = jnp.abs(x)
    t = 1.0 / (1.0 + p * ax)
    poly = (((((a5 * t + a4) * t) + a3) * t + a2) * t + a1) * t
    return sgn * (1.0 - poly * jnp.exp(-ax * ax))


def _erf_gelu(x, c):
    return (x * 0.5) * (_erf_poly(x * c) + 1.0)


def _fused_model_kernel(taps_ref, w2rep_ref, vsp_ref, ssp_ref, out_ref, v6s_ref):
    """Whole forward pass.

    taps_ref : (4, 51, 52) VMEM  strided 2x2 taps of the padded input (conv1 im2col-free)
    w2rep_ref: (42, 8, 52) VMEM  conv2 weights, [ci*14+kh, co, lane] with the
               kernel row replicated at the lane windows of ow=0/1/2 (pad folded in)
    vsp_ref  : (8, 16)    VMEM  [0:5,0:8]=w3^T, [0:5,8]=b3, [0:8,9]=b2
    ssp_ref  : (16,)      SMEM  [0:12]=w1.ravel(), [12:15]=b1
    out_ref  : (5, 15, 15) VMEM final output (scatter fused in-kernel)
    v6s_ref  : (3, 51, 52) VMEM scratch: conv1+GELU activation, aligned storage
    """
    # ---------------- conv1 (1->3, k=2, s=4, p=8) + modified erf-GELU --------
    t00 = taps_ref[0]
    t01 = taps_ref[1]
    t10 = taps_ref[2]
    t11 = taps_ref[3]
    for c in range(C1):
        acc = (t00 * ssp_ref[4 * c + 0] + t01 * ssp_ref[4 * c + 1]
               + t10 * ssp_ref[4 * c + 2] + t11 * ssp_ref[4 * c + 3]
               + ssp_ref[4 * C1 + c])
        v6s_ref[c, :, :] = _erf_gelu(acc, 0.5011511847905441)   # aligned store

    # ---------------- conv2 (3->8, k=14, s=15, p=1), lane-dense --------------
    cols = []                                  # nine (8, 1) pre-bias columns
    for oh in range(OH2):
        # kh==0 at oh==0 reads the zero top-pad row -> skipped at trace time.
        pairs = [(ci, kh) for ci in range(C1) for kh in range(K2)
                 if oh * S2 + kh >= 1]
        csz = -(-len(pairs) // 6)              # ~6 independent MAC chains
        partials = []
        for s in range(0, len(pairs), csz):
            acc = None
            for ci, kh in pairs[s:s + csz]:
                r = oh * S2 + kh - 1                           # unpadded row
                row = v6s_ref[ci, r:r + 1, :]                  # (1, 52), lane 0
                term = w2rep_ref[ci * K2 + kh] * row           # (8, 52)
                acc = term if acc is None else acc + term
            partials.append(acc)
        while len(partials) > 1:               # tree-sum the partials
            partials = [partials[i] + partials[i + 1]
                        if i + 1 < len(partials) else partials[i]
                        for i in range(0, len(partials), 2)]
        accm = partials[0]
        # segmented lane reductions: one column per output position
        cols.append(jnp.sum(accm[:, 0:13], axis=1, keepdims=True))    # ow = 0
        cols.append(jnp.sum(accm[:, 14:28], axis=1, keepdims=True))   # ow = 1
        cols.append(jnp.sum(accm[:, 29:43], axis=1, keepdims=True))   # ow = 2

    # Pack all 9 positions into one (8, 9) tile; one bias add + ONE GELU pass.
    lane9 = jax.lax.broadcasted_iota(jnp.int32, (C2, NPOS), 1)
    v7 = jnp.zeros((C2, NPOS), jnp.float32)
    for pos, col in enumerate(cols):
        v7 = jnp.where(lane9 == pos, col, v7)
    v7 = v7 + vsp_ref[:, 9:10]                                 # + b2
    v12 = _erf_gelu(v7, 0.7071067811865476)

    # -------- conv3: ConvTranspose2d(8, 5, 1) == 8->5 projection, batched ----
    b3_col = vsp_ref[0:C3, 8:9]                                # (5, 1)
    pa = None
    pb = None
    for ic in range(C2):
        term = vsp_ref[0:C3, ic:ic + 1] * v12[ic:ic + 1, :]    # (5,1)*(1,9)->(5,9)
        if ic < C2 // 2:
            pa = term if pa is None else pa + term
        else:
            pb = term if pb is None else pb + term
    proj = pa + pb + b3_col                                    # (5, 9)

    # -------- stride-7 ConvTranspose scatter, fused in-kernel ----------------
    # Only pixels (7*oh, 7*ow) receive a contribution; every other pixel is b3.
    row_iota = jax.lax.broadcasted_iota(jnp.int32, (OH3, OW3), 0)
    col_iota = jax.lax.broadcasted_iota(jnp.int32, (OH3, OW3), 1)
    masks = []
    for pos in range(NPOS):
        rr = (pos // OW2) * S3
        cc = (pos % OW2) * S3
        masks.append((row_iota == rr) & (col_iota == cc))
    for oc in range(C3):
        b3_oc = vsp_ref[oc:oc + 1, 8:9]                        # (1, 1)
        slab = jnp.broadcast_to(b3_oc, (OH3, OW3))             # (15, 15)
        for pos in range(NPOS):
            slab = jnp.where(masks[pos], proj[oc:oc + 1, pos:pos + 1], slab)
        out_ref[oc, :, :] = slab                               # full-slab store


def _fused_forward(taps, w2rep, vsp, ssp):
    return pl.pallas_call(
        _fused_model_kernel,
        out_shape=jax.ShapeDtypeStruct((C3, OH3, OW3), jnp.float32),
        grid=(1,),
        in_specs=[
            pl.BlockSpec((K1 * K1, OH1, OW1), lambda i: (0, 0, 0)),
            pl.BlockSpec((C1 * K2, C2, OW1), lambda i: (0, 0, 0)),
            pl.BlockSpec((C2, 16), lambda i: (0, 0)),
            pl.BlockSpec(memory_space=pltpu.MemorySpace.SMEM),
        ],
        out_specs=pl.BlockSpec((C3, OH3, OW3), lambda i: (0, 0, 0)),
        scratch_shapes=[pltpu.VMEM((C1, OH1, OW1), jnp.float32)],
        compiler_params=pltpu.CompilerParams(
            dimension_semantics=("arbitrary",)),
    )(taps, w2rep, vsp, ssp)


def pack_params(params):
    """One-time parameter repacking (hoisted out of the per-call forward)."""
    w1, b1, w2, b2, w3, b3 = params

    # SMEM scalars: w1 (12) + b1 (3), padded to 16 words.
    ssp = jnp.zeros((16,), jnp.float32)
    ssp = ssp.at[0:4 * C1].set(w1.reshape(-1))
    ssp = ssp.at[4 * C1:4 * C1 + C1].set(b1)

    # Small per-channel vectors in one VMEM tile: w3^T | b3 | b2.
    vsp = jnp.zeros((C2, 16), jnp.float32)
    vsp = vsp.at[0:C3, 0:C2].set(jnp.transpose(w3.reshape(C2, C3)))   # (5, 8)
    vsp = vsp.at[0:C3, 8].set(b3)
    vsp = vsp.at[0:C2, 9].set(b2)

    # conv2 weights, lane-dense replicated: index p = ci*14 + kh, lanes hold
    #   [0:13]  = w2[:, ci, kh, 1:14]  (ow=0; kw=0 hits the left zero-pad column)
    #   [14:28] = w2[:, ci, kh, 0:14]  (ow=1)
    #   [29:43] = w2[:, ci, kh, 0:14]  (ow=2)
    wt = jnp.transpose(w2, (1, 2, 0, 3)).reshape(C1 * K2, C2, K2)
    w2rep = jnp.zeros((C1 * K2, C2, OW1), jnp.float32)
    w2rep = w2rep.at[:, :, 0:13].set(wt[:, :, 1:14])
    w2rep = w2rep.at[:, :, 14:28].set(wt)
    w2rep = w2rep.at[:, :, 29:43].set(wt)
    return ssp, vsp, w2rep


def model_forward(x, packed):
    ssp, vsp, w2rep = packed
    x2d = x[0, 0]                                             # (188, 192)
    xp = jnp.pad(x2d, ((P1, P1), (P1, P1)))                   # (204, 208)
    # conv1 as 4 strided taps on the conv1 output grid (im2col-free form)
    taps = jnp.stack([xp[i::S1, j::S1][:OH1, :OW1]
                      for i in range(K1) for j in range(K1)])  # (4, 51, 52)
    out = _fused_forward(taps, w2rep, vsp, ssp)                # (5, 15, 15)
    return out[None]                                           # (1, 5, 15, 15)


def reference_forward(x, params):
    """Plain-JAX/XLA reference for numerical checking."""
    w1, b1, w2, b2, w3, b3 = params
    dn = ('NCHW', 'OIHW', 'NCHW')
    v1 = jax.lax.conv_general_dilated(x, w1, (S1, S1), ((P1, P1), (P1, P1)),
                                      dimension_numbers=dn)
    v1 = v1 + b1.reshape(1, -1, 1, 1)
    v6 = (v1 * 0.5) * (jax.lax.erf(v1 * 0.5011511847905441) + 1.0)
    v7 = jax.lax.conv_general_dilated(v6, w2, (S2, S2), ((P2, P2), (P2, P2)),
                                      dimension_numbers=dn)
    v7 = v7 + b2.reshape(1, -1, 1, 1)
    v12 = (v7 * 0.5) * (jax.lax.erf(v7 * 0.7071067811865476) + 1.0)
    proj = (jnp.einsum('nchw,cd->ndhw', v12, w3.reshape(C2, C3))
            + b3.reshape(1, -1, 1, 1))
    n, _, h2, w2sp = v12.shape
    out = jnp.broadcast_to(b3.reshape(1, -1, 1, 1),
                           (n, C3, (h2 - 1) * S3 + 1, (w2sp - 1) * S3 + 1))
    out = out.at[:, :, ::S3, ::S3].set(proj)
    return out


def init_params(key):
    k = jax.random.split(key, 6)

    def u(kk, shape, fan_in):
        bound = 1.0 / (fan_in ** 0.5)
        return jax.random.uniform(kk, shape, jnp.float32, -bound, bound)

    w1 = u(k[0], (C1, 1, K1, K1), 1 * K1 * K1)      # Conv2d (out, in, kh, kw)
    b1 = u(k[1], (C1,), 1 * K1 * K1)
    w2 = u(k[2], (C2, C1, K2, K2), C1 * K2 * K2)
    b2 = u(k[3], (C2,), C1 * K2 * K2)
    w3 = u(k[4], (C2, C3, 1, 1), C2)                # ConvTranspose2d (in, out, kh, kw)
    b3 = u(k[5], (C3,), C2)
    return (w1, b1, w2, b2, w3, b3)


if __name__ == "__main__":
    key = jax.random.PRNGKey(0)
    kx, kp = jax.random.split(key)
    x = jax.random.normal(kx, (1, 1, H_IN, W_IN), jnp.float32)
    params = init_params(kp)

    # Parameter repacking done once (hoisted out of the jitted forward).
    packed = pack_params(params)

    fwd = jax.jit(model_forward)
    out = jax.block_until_ready(fwd(x, packed))
    assert out.shape == (1, C3, OH3, OW3), out.shape
    assert out.dtype == jnp.float32

    ref = jax.block_until_ready(jax.jit(reference_forward)(x, params))
    assert jnp.allclose(out, ref, atol=1e-3, rtol=1e-3), \
        float(jnp.max(jnp.abs(out - ref)))

    print("KERNEL_OK")
</pallas_src>

<mosaic_0001>
module attributes {stable_mosaic.version = 11 : i64} {
  func.func @_fused_model_kernel(%arg0: i32, %arg1: memref<4x51x52xf32, #tpu.memory_space<vmem>>, %arg2: memref<42x8x52xf32, #tpu.memory_space<vmem>>, %arg3: memref<8x16xf32, #tpu.memory_space<vmem>>, %arg4: memref<16xf32, #tpu.memory_space<smem>>, %arg5: memref<5x15x15xf32, #tpu.memory_space<vmem>>, %arg6: memref<3x51x52xf32, #tpu.memory_space<vmem>>) attributes {dimension_semantics = [#tpu.dimension_semantics<arbitrary>], iteration_bounds = array<i64: 1>, scalar_prefetch = 0 : i64, scratch_operands = 1 : i64, tpu.core_type = #tpu.core_type<tc>, window_params = [{pipeline_mode = #tpu.pipeline_mode<synchronous>, transform_indices = @transform_0, window_bounds = array<i64: 4, 51, 52>}, {pipeline_mode = #tpu.pipeline_mode<synchronous>, transform_indices = @transform_1, window_bounds = array<i64: 42, 8, 52>}, {pipeline_mode = #tpu.pipeline_mode<synchronous>, transform_indices = @transform_2, window_bounds = array<i64: 8, 16>}, {transform_indices = @transform_3, window_bounds = array<i64: 16>}, {pipeline_mode = #tpu.pipeline_mode<synchronous>, transform_indices = @transform_4, window_bounds = array<i64: 5, 15, 15>}]} {
    %c0 = arith.constant 0 : index
    %c0_0 = arith.constant 0 : index
    %c0_1 = arith.constant 0 : index
    %0 = vector.load %arg1[%c0, %c0_0, %c0_1] : memref<4x51x52xf32, #tpu.memory_space<vmem>>, vector<1x51x52xf32>
    %1 = vector.shape_cast %0 : vector<1x51x52xf32> to vector<51x52xf32>
    %c1 = arith.constant 1 : index
    %c0_2 = arith.constant 0 : index
    %c0_3 = arith.constant 0 : index
    %2 = vector.load %arg1[%c1, %c0_2, %c0_3] : memref<4x51x52xf32, #tpu.memory_space<vmem>>, vector<1x51x52xf32>
    %3 = vector.shape_cast %2 : vector<1x51x52xf32> to vector<51x52xf32>
    %c2 = arith.constant 2 : index
    %c0_4 = arith.constant 0 : index
    %c0_5 = arith.constant 0 : index
    %4 = vector.load %arg1[%c2, %c0_4, %c0_5] : memref<4x51x52xf32, #tpu.memory_space<vmem>>, vector<1x51x52xf32>
    %5 = vector.shape_cast %4 : vector<1x51x52xf32> to vector<51x52xf32>
    %c3 = arith.constant 3 : index
    %c0_6 = arith.constant 0 : index
    %c0_7 = arith.constant 0 : index
    %6 = vector.load %arg1[%c3, %c0_6, %c0_7] : memref<4x51x52xf32, #tpu.memory_space<vmem>>, vector<1x51x52xf32>
    %7 = vector.shape_cast %6 : vector<1x51x52xf32> to vector<51x52xf32>
    %c0_8 = arith.constant 0 : index
    %8 = memref.load %arg4[%c0_8] : memref<16xf32, #tpu.memory_space<smem>>
    %9 = vector.broadcast %8 : f32 to vector<51x52xf32>
    %10 = arith.mulf %1, %9 : vector<51x52xf32>
    %c1_9 = arith.constant 1 : index
    %11 = memref.load %arg4[%c1_9] : memref<16xf32, #tpu.memory_space<smem>>
    %12 = vector.broadcast %11 : f32 to vector<51x52xf32>
    %13 = arith.mulf %3, %12 : vector<51x52xf32>
    %14 = arith.addf %10, %13 : vector<51x52xf32>
    %c2_10 = arith.constant 2 : index
    %15 = memref.load %arg4[%c2_10] : memref<16xf32, #tpu.memory_space<smem>>
    %16 = vector.broadcast %15 : f32 to vector<51x52xf32>
    %17 = arith.mulf %5, %16 : vector<51x52xf32>
    %18 = arith.addf %14, %17 : vector<51x52xf32>
    %c3_11 = arith.constant 3 : index
    %19 = memref.load %arg4[%c3_11] : memref<16xf32, #tpu.memory_space<smem>>
    %20 = vector.broadcast %19 : f32 to vector<51x52xf32>
    %21 = arith.mulf %7, %20 : vector<51x52xf32>
    %22 = arith.addf %18, %21 : vector<51x52xf32>
    %c12 = arith.constant 12 : index
    %23 = memref.load %arg4[%c12] : memref<16xf32, #tpu.memory_space<smem>>
    %24 = vector.broadcast %23 : f32 to vector<51x52xf32>
    %25 = arith.addf %22, %24 : vector<51x52xf32>
    %cst = arith.constant 5.000000e-01 : f32
    %26 = vector.broadcast %cst : f32 to vector<51x52xf32>
    %27 = arith.mulf %25, %26 : vector<51x52xf32>
    %cst_12 = arith.constant 0.501151204 : f32
    %28 = vector.broadcast %cst_12 : f32 to vector<51x52xf32>
    %29 = arith.mulf %25, %28 : vector<51x52xf32>
    %cst_13 = arith.constant 0.000000e+00 : f32
    %30 = vector.broadcast %cst_13 : f32 to vector<51x52xf32>
    %31 = arith.cmpf olt, %29, %30 : vector<51x52xf32>
    %cst_14 = arith.constant -1.000000e+00 : f32
    %cst_15 = arith.constant 1.000000e+00 : f32
    %32 = vector.broadcast %cst_14 : f32 to vector<51x52xf32>
    %33 = vector.broadcast %cst_15 : f32 to vector<51x52xf32>
    %34 = arith.select %31, %32, %33 : vector<51x52xi1>, vector<51x52xf32>
    %35 = math.absf %29 : vector<51x52xf32>
    %cst_16 = arith.constant 0.327591091 : f32
    %36 = vector.broadcast %cst_16 : f32 to vector<51x52xf32>
    %37 = arith.mulf %36, %35 : vector<51x52xf32>
    %cst_17 = arith.constant 1.000000e+00 : f32
    %38 = vector.broadcast %cst_17 : f32 to vector<51x52xf32>
    %39 = arith.addf %38, %37 : vector<51x52xf32>
    %cst_18 = arith.constant 1.000000e+00 : f32
    %40 = vector.broadcast %cst_18 : f32 to vector<51x52xf32>
    %41 = arith.divf %40, %39 : vector<51x52xf32>
    %cst_19 = arith.constant 1.06140542 : f32
    %42 = vector.broadcast %cst_19 : f32 to vector<51x52xf32>
    %43 = arith.mulf %42, %41 : vector<51x52xf32>
    %cst_20 = arith.constant -1.45315206 : f32
    %44 = vector.broadcast %cst_20 : f32 to vector<51x52xf32>
    %45 = arith.addf %43, %44 : vector<51x52xf32>
    %46 = arith.mulf %45, %41 : vector<51x52xf32>
    %cst_21 = arith.constant 1.42141378 : f32
    %47 = vector.broadcast %cst_21 : f32 to vector<51x52xf32>
    %48 = arith.addf %46, %47 : vector<51x52xf32>
    %49 = arith.mulf %48, %41 : vector<51x52xf32>
    %cst_22 = arith.constant -0.284496725 : f32
    %50 = vector.broadcast %cst_22 : f32 to vector<51x52xf32>
    %51 = arith.addf %49, %50 : vector<51x52xf32>
    %52 = arith.mulf %51, %41 : vector<51x52xf32>
    %cst_23 = arith.constant 0.254829586 : f32
    %53 = vector.broadcast %cst_23 : f32 to vector<51x52xf32>
    %54 = arith.addf %52, %53 : vector<51x52xf32>
    %55 = arith.mulf %54, %41 : vector<51x52xf32>
    %cst_24 = arith.constant 0.000000e+00 : f32
    %56 = vector.broadcast %cst_24 : f32 to vector<51x52xf32>
    %57 = arith.subf %56, %35 : vector<51x52xf32>
    %58 = arith.mulf %57, %35 : vector<51x52xf32>
    %59 = math.exp %58 : vector<51x52xf32>
    %60 = arith.mulf %55, %59 : vector<51x52xf32>
    %cst_25 = arith.constant 1.000000e+00 : f32
    %61 = vector.broadcast %cst_25 : f32 to vector<51x52xf32>
    %62 = arith.subf %61, %60 : vector<51x52xf32>
    %63 = arith.mulf %34, %62 : vector<51x52xf32>
    %cst_26 = arith.constant 1.000000e+00 : f32
    %64 = vector.broadcast %cst_26 : f32 to vector<51x52xf32>
    %65 = arith.addf %63, %64 : vector<51x52xf32>
    %66 = arith.mulf %27, %65 : vector<51x52xf32>
    %c0_27 = arith.constant 0 : index
    %c0_28 = arith.constant 0 : index
    %c0_29 = arith.constant 0 : index
    %67 = vector.load %arg6[%c0_27, %c0_28, %c0_29] : memref<3x51x52xf32, #tpu.memory_space<vmem>>, vector<1x51x52xf32>
    %68 = vector.shape_cast %67 : vector<1x51x52xf32> to vector<51x52xf32>
    %69 = vector.shape_cast %66 : vector<51x52xf32> to vector<1x51x52xf32>
    tpu.vector_store %arg6[%c0_27, %c0_28, %c0_29], %69 {strides = array<i32>} : memref<3x51x52xf32, #tpu.memory_space<vmem>>, vector<1x51x52xf32>,
    %c4 = arith.constant 4 : index
    %70 = memref.load %arg4[%c4] : memref<16xf32, #tpu.memory_space<smem>>
    %71 = vector.broadcast %70 : f32 to vector<51x52xf32>
    %72 = arith.mulf %1, %71 : vector<51x52xf32>
    %c5 = arith.constant 5 : index
    %73 = memref.load %arg4[%c5] : memref<16xf32, #tpu.memory_space<smem>>
    %74 = vector.broadcast %73 : f32 to vector<51x52xf32>
    %75 = arith.mulf %3, %74 : vector<51x52xf32>
    %76 = arith.addf %72, %75 : vector<51x52xf32>
    %c6 = arith.constant 6 : index
    %77 = memref.load %arg4[%c6] : memref<16xf32, #tpu.memory_space<smem>>
    %78 = vector.broadcast %77 : f32 to vector<51x52xf32>
    %79 = arith.mulf %5, %78 : vector<51x52xf32>
    %80 = arith.addf %76, %79 : vector<51x52xf32>
    %c7 = arith.constant 7 : index
    %81 = memref.load %arg4[%c7] : memref<16xf32, #tpu.memory_space<smem>>
    %82 = vector.broadcast %81 : f32 to vector<51x52xf32>
    %83 = arith.mulf %7, %82 : vector<51x52xf32>
    %84 = arith.addf %80, %83 : vector<51x52xf32>
    %c13 = arith.constant 13 : index
    %85 = memref.load %arg4[%c13] : memref<16xf32, #tpu.memory_space<smem>>
    %86 = vector.broadcast %85 : f32 to vector<51x52xf32>
    %87 = arith.addf %84, %86 : vector<51x52xf32>
    %cst_30 = arith.constant 5.000000e-01 : f32
    %88 = vector.broadcast %cst_30 : f32 to vector<51x52xf32>
    %89 = arith.mulf %87, %88 : vector<51x52xf32>
    %cst_31 = arith.constant 0.501151204 : f32
    %90 = vector.broadcast %cst_31 : f32 to vector<51x52xf32>
    %91 = arith.mulf %87, %90 : vector<51x52xf32>
    %cst_32 = arith.constant 0.000000e+00 : f32
    %92 = vector.broadcast %cst_32 : f32 to vector<51x52xf32>
    %93 = arith.cmpf olt, %91, %92 : vector<51x52xf32>
    %cst_33 = arith.constant -1.000000e+00 : f32
    %cst_34 = arith.constant 1.000000e+00 : f32
    %94 = vector.broadcast %cst_33 : f32 to vector<51x52xf32>
    %95 = vector.broadcast %cst_34 : f32 to vector<51x52xf32>
    %96 = arith.select %93, %94, %95 : vector<51x52xi1>, vector<51x52xf32>
    %97 = math.absf %91 : vector<51x52xf32>
    %cst_35 = arith.constant 0.327591091 : f32
    %98 = vector.broadcast %cst_35 : f32 to vector<51x52xf32>
    %99 = arith.mulf %98, %97 : vector<51x52xf32>
    %cst_36 = arith.constant 1.000000e+00 : f32
    %100 = vector.broadcast %cst_36 : f32 to vector<51x52xf32>
    %101 = arith.addf %100, %99 : vector<51x52xf32>
    %cst_37 = arith.constant 1.000000e+00 : f32
    %102 = vector.broadcast %cst_37 : f32 to vector<51x52xf32>
    %103 = arith.divf %102, %101 : vector<51x52xf32>
    %cst_38 = arith.constant 1.06140542 : f32
    %104 = vector.broadcast %cst_38 : f32 to vector<51x52xf32>
    %105 = arith.mulf %104, %103 : vector<51x52xf32>
    %cst_39 = arith.constant -1.45315206 : f32
    %106 = vector.broadcast %cst_39 : f32 to vector<51x52xf32>
    %107 = arith.addf %105, %106 : vector<51x52xf32>
    %108 = arith.mulf %107, %103 : vector<51x52xf32>
    %cst_40 = arith.constant 1.42141378 : f32
    %109 = vector.broadcast %cst_40 : f32 to vector<51x52xf32>
    %110 = arith.addf %108, %109 : vector<51x52xf32>
    %111 = arith.mulf %110, %103 : vector<51x52xf32>
    %cst_41 = arith.constant -0.284496725 : f32
    %112 = vector.broadcast %cst_41 : f32 to vector<51x52xf32>
    %113 = arith.addf %111, %112 : vector<51x52xf32>
    %114 = arith.mulf %113, %103 : vector<51x52xf32>
    %cst_42 = arith.constant 0.254829586 : f32
    %115 = vector.broadcast %cst_42 : f32 to vector<51x52xf32>
    %116 = arith.addf %114, %115 : vector<51x52xf32>
    %117 = arith.mulf %116, %103 : vector<51x52xf32>
    %cst_43 = arith.constant 0.000000e+00 : f32
    %118 = vector.broadcast %cst_43 : f32 to vector<51x52xf32>
    %119 = arith.subf %118, %97 : vector<51x52xf32>
    %120 = arith.mulf %119, %97 : vector<51x52xf32>
    %121 = math.exp %120 : vector<51x52xf32>
    %122 = arith.mulf %117, %121 : vector<51x52xf32>
    %cst_44 = arith.constant 1.000000e+00 : f32
    %123 = vector.broadcast %cst_44 : f32 to vector<51x52xf32>
    %124 = arith.subf %123, %122 : vector<51x52xf32>
    %125 = arith.mulf %96, %124 : vector<51x52xf32>
    %cst_45 = arith.constant 1.000000e+00 : f32
    %126 = vector.broadcast %cst_45 : f32 to vector<51x52xf32>
    %127 = arith.addf %125, %126 : vector<51x52xf32>
    %128 = arith.mulf %89, %127 : vector<51x52xf32>
    %c1_46 = arith.constant 1 : index
    %c0_47 = arith.constant 0 : index
    %c0_48 = arith.constant 0 : index
    %129 = vector.load %arg6[%c1_46, %c0_47, %c0_48] : memref<3x51x52xf32, #tpu.memory_space<vmem>>, vector<1x51x52xf32>
    %130 = vector.shape_cast %129 : vector<1x51x52xf32> to vector<51x52xf32>
    %131 = vector.shape_cast %128 : vector<51x52xf32> to vector<1x51x52xf32>
    tpu.vector_store %arg6[%c1_46, %c0_47, %c0_48], %131 {strides = array<i32>} : memref<3x51x52xf32, #tpu.memory_space<vmem>>, vector<1x51x52xf32>,
    %c8 = arith.constant 8 : index
    %132 = memref.load %arg4[%c8] : memref<16xf32, #tpu.memory_space<smem>>
    %133 = vector.broadcast %132 : f32 to vector<51x52xf32>
    %134 = arith.mulf %1, %133 : vector<51x52xf32>
    %c9 = arith.constant 9 : index
    %135 = memref.load %arg4[%c9] : memref<16xf32, #tpu.memory_space<smem>>
    %136 = vector.broadcast %135 : f32 to vector<51x52xf32>
    %137 = arith.mulf %3, %136 : vector<51x52xf32>
    %138 = arith.addf %134, %137 : vector<51x52xf32>
    %c10 = arith.constant 10 : index
    %139 = memref.load %arg4[%c10] : memref<16xf32, #tpu.memory_space<smem>>
    %140 = vector.broadcast %139 : f32 to vector<51x52xf32>
    %141 = arith.mulf %5, %140 : vector<51x52xf32>
    %142 = arith.addf %138, %141 : vector<51x52xf32>
    %c11 = arith.constant 11 : index
    %143 = memref.load %arg4[%c11] : memref<16xf32, #tpu.memory_space<smem>>
    %144 = vector.broadcast %143 : f32 to vector<51x52xf32>
    %145 = arith.mulf %7, %144 : vector<51x52xf32>
    %146 = arith.addf %142, %145 : vector<51x52xf32>
    %c14 = arith.constant 14 : index
    %147 = memref.load %arg4[%c14] : memref<16xf32, #tpu.memory_space<smem>>
    %148 = vector.broadcast %147 : f32 to vector<51x52xf32>
    %149 = arith.addf %146, %148 : vector<51x52xf32>
    %cst_49 = arith.constant 5.000000e-01 : f32
    %150 = vector.broadcast %cst_49 : f32 to vector<51x52xf32>
    %151 = arith.mulf %149, %150 : vector<51x52xf32>
    %cst_50 = arith.constant 0.501151204 : f32
    %152 = vector.broadcast %cst_50 : f32 to vector<51x52xf32>
    %153 = arith.mulf %149, %152 : vector<51x52xf32>
    %cst_51 = arith.constant 0.000000e+00 : f32
    %154 = vector.broadcast %cst_51 : f32 to vector<51x52xf32>
    %155 = arith.cmpf olt, %153, %154 : vector<51x52xf32>
    %cst_52 = arith.constant -1.000000e+00 : f32
    %cst_53 = arith.constant 1.000000e+00 : f32
    %156 = vector.broadcast %cst_52 : f32 to vector<51x52xf32>
    %157 = vector.broadcast %cst_53 : f32 to vector<51x52xf32>
    %158 = arith.select %155, %156, %157 : vector<51x52xi1>, vector<51x52xf32>
    %159 = math.absf %153 : vector<51x52xf32>
    %cst_54 = arith.constant 0.327591091 : f32
    %160 = vector.broadcast %cst_54 : f32 to vector<51x52xf32>
    %161 = arith.mulf %160, %159 : vector<51x52xf32>
    %cst_55 = arith.constant 1.000000e+00 : f32
    %162 = vector.broadcast %cst_55 : f32 to vector<51x52xf32>
    %163 = arith.addf %162, %161 : vector<51x52xf32>
    %cst_56 = arith.constant 1.000000e+00 : f32
    %164 = vector.broadcast %cst_56 : f32 to vector<51x52xf32>
    %165 = arith.divf %164, %163 : vector<51x52xf32>
    %cst_57 = arith.constant 1.06140542 : f32
    %166 = vector.broadcast %cst_57 : f32 to vector<51x52xf32>
    %167 = arith.mulf %166, %165 : vector<51x52xf32>
    %cst_58 = arith.constant -1.45315206 : f32
    %168 = vector.broadcast %cst_58 : f32 to vector<51x52xf32>
    %169 = arith.addf %167, %168 : vector<51x52xf32>
    %170 = arith.mulf %169, %165 : vector<51x52xf32>
    %cst_59 = arith.constant 1.42141378 : f32
    %171 = vector.broadcast %cst_59 : f32 to vector<51x52xf32>
    %172 = arith.addf %170, %171 : vector<51x52xf32>
    %173 = arith.mulf %172, %165 : vector<51x52xf32>
    %cst_60 = arith.constant -0.284496725 : f32
    %174 = vector.broadcast %cst_60 : f32 to vector<51x52xf32>
    %175 = arith.addf %173, %174 : vector<51x52xf32>
    %176 = arith.mulf %175, %165 : vector<51x52xf32>
    %cst_61 = arith.constant 0.254829586 : f32
    %177 = vector.broadcast %cst_61 : f32 to vector<51x52xf32>
    %178 = arith.addf %176, %177 : vector<51x52xf32>
    %179 = arith.mulf %178, %165 : vector<51x52xf32>
    %cst_62 = arith.constant 0.000000e+00 : f32
    %180 = vector.broadcast %cst_62 : f32 to vector<51x52xf32>
    %181 = arith.subf %180, %159 : vector<51x52xf32>
    %182 = arith.mulf %181, %159 : vector<51x52xf32>
    %183 = math.exp %182 : vector<51x52xf32>
    %184 = arith.mulf %179, %183 : vector<51x52xf32>
    %cst_63 = arith.constant 1.000000e+00 : f32
    %185 = vector.broadcast %cst_63 : f32 to vector<51x52xf32>
    %186 = arith.subf %185, %184 : vector<51x52xf32>
    %187 = arith.mulf %158, %186 : vector<51x52xf32>
    %cst_64 = arith.constant 1.000000e+00 : f32
    %188 = vector.broadcast %cst_64 : f32 to vector<51x52xf32>
    %189 = arith.addf %187, %188 : vector<51x52xf32>
    %190 = arith.mulf %151, %189 : vector<51x52xf32>
    %c2_65 = arith.constant 2 : index
    %c0_66 = arith.constant 0 : index
    %c0_67 = arith.constant 0 : index
    %191 = vector.load %arg6[%c2_65, %c0_66, %c0_67] : memref<3x51x52xf32, #tpu.memory_space<vmem>>, vector<1x51x52xf32>
    %192 = vector.shape_cast %191 : vector<1x51x52xf32> to vector<51x52xf32>
    %193 = vector.shape_cast %190 : vector<51x52xf32> to vector<1x51x52xf32>
    tpu.vector_store %arg6[%c2_65, %c0_66, %c0_67], %193 {strides = array<i32>} : memref<3x51x52xf32, #tpu.memory_space<vmem>>, vector<1x51x52xf32>,
    %c0_68 = arith.constant 0 : index
    %c0_69 = arith.constant 0 : index
    %c0_70 = arith.constant 0 : index
    %194 = vector.load %arg6[%c0_68, %c0_69, %c0_70] : memref<3x51x52xf32, #tpu.memory_space<vmem>>, vector<1x1x52xf32>
    %195 = vector.shape_cast %194 : vector<1x1x52xf32> to vector<1x52xf32>
    %c1_71 = arith.constant 1 : index
    %c0_72 = arith.constant 0 : index
    %c0_73 = arith.constant 0 : index
    %196 = vector.load %arg2[%c1_71, %c0_72, %c0_73] : memref<42x8x52xf32, #tpu.memory_space<vmem>>, vector<1x8x52xf32>
    %197 = vector.shape_cast %196 : vector<1x8x52xf32> to vector<8x52xf32>
    %198 = vector.broadcast %195 : vector<1x52xf32> to vector<8x52xf32>
    %199 = arith.mulf %197, %198 : vector<8x52xf32>
    %c0_74 = arith.constant 0 : index
    %c1_75 = arith.constant 1 : index
    %c0_76 = arith.constant 0 : index
    %200 = vector.load %arg6[%c0_74, %c1_75, %c0_76] : memref<3x51x52xf32, #tpu.memory_space<vmem>>, vector<1x1x52xf32>
    %201 = vector.shape_cast %200 : vector<1x1x52xf32> to vector<1x52xf32>
    %c2_77 = arith.constant 2 : index
    %c0_78 = arith.constant 0 : index
    %c0_79 = arith.constant 0 : index
    %202 = vector.load %arg2[%c2_77, %c0_78, %c0_79] : memref<42x8x52xf32, #tpu.memory_space<vmem>>, vector<1x8x52xf32>
    %203 = vector.shape_cast %202 : vector<1x8x52xf32> to vector<8x52xf32>
    %204 = vector.broadcast %201 : vector<1x52xf32> to vector<8x52xf32>
    %205 = arith.mulf %203, %204 : vector<8x52xf32>
    %206 = arith.addf %199, %205 : vector<8x52xf32>
    %c0_80 = arith.constant 0 : index
    %c2_81 = arith.constant 2 : index
    %c0_82 = arith.constant 0 : index
    %207 = vector.load %arg6[%c0_80, %c2_81, %c0_82] : memref<3x51x52xf32, #tpu.memory_space<vmem>>, vector<1x1x52xf32>
    %208 = vector.shape_cast %207 : vector<1x1x52xf32> to vector<1x52xf32>
    %c3_83 = arith.constant 3 : index
    %c0_84 = arith.constant 0 : index
    %c0_85 = arith.constant 0 : index
    %209 = vector.load %arg2[%c3_83, %c0_84, %c0_85] : memref<42x8x52xf32, #tpu.memory_space<vmem>>, vector<1x8x52xf32>
    %210 = vector.shape_cast %209 : vector<1x8x52xf32> to vector<8x52xf32>
    %211 = vector.broadcast %208 : vector<1x52xf32> to vector<8x52xf32>
    %212 = arith.mulf %210, %211 : vector<8x52xf32>
    %213 = arith.addf %206, %212 : vector<8x52xf32>
    %c0_86 = arith.constant 0 : index
    %c3_87 = arith.constant 3 : index
    %c0_88 = arith.constant 0 : index
    %214 = vector.load %arg6[%c0_86, %c3_87, %c0_88] : memref<3x51x52xf32, #tpu.memory_space<vmem>>, vector<1x1x52xf32>
    %215 = vector.shape_cast %214 : vector<1x1x52xf32> to vector<1x52xf32>
    %c4_89 = arith.constant 4 : index
    %c0_90 = arith.constant 0 : index
    %c0_91 = arith.constant 0 : index
    %216 = vector.load %arg2[%c4_89, %c0_90, %c0_91] : memref<42x8x52xf32, #tpu.memory_space<vmem>>, vector<1x8x52xf32>
    %217 = vector.shape_cast %216 : vector<1x8x52xf32> to vector<8x52xf32>
    %218 = vector.broadcast %215 : vector<1x52xf32> to vector<8x52xf32>
    %219 = arith.mulf %217, %218 : vector<8x52xf32>
    %220 = arith.addf %213, %219 : vector<8x52xf32>
    %c0_92 = arith.constant 0 : index
    %c4_93 = arith.constant 4 : index
    %c0_94 = arith.constant 0 : index
    %221 = vector.load %arg6[%c0_92, %c4_93, %c0_94] : memref<3x51x52xf32, #tpu.memory_space<vmem>>, vector<1x1x52xf32>
    %222 = vector.shape_cast %221 : vector<1x1x52xf32> to vector<1x52xf32>
    %c5_95 = arith.constant 5 : index
    %c0_96 = arith.constant 0 : index
    %c0_97 = arith.constant 0 : index
    %223 = vector.load %arg2[%c5_95, %c0_96, %c0_97] : memref<42x8x52xf32, #tpu.memory_space<vmem>>, vector<1x8x52xf32>
    %224 = vector.shape_cast %223 : vector<1x8x52xf32> to vector<8x52xf32>
    %225 = vector.broadcast %222 : vector<1x52xf32> to vector<8x52xf32>
    %226 = arith.mulf %224, %225 : vector<8x52xf32>
    %227 = arith.addf %220, %226 : vector<8x52xf32>
    %c0_98 = arith.constant 0 : index
    %c5_99 = arith.constant 5 : index
    %c0_100 = arith.constant 0 : index
    %228 = vector.load %arg6[%c0_98, %c5_99, %c0_100] : memref<3x51x52xf32, #tpu.memory_space<vmem>>, vector<1x1x52xf32>
    %229 = vector.shape_cast %228 : vector<1x1x52xf32> to vector<1x52xf32>
    %c6_101 = arith.constant 6 : index
    %c0_102 = arith.constant 0 : index
    %c0_103 = arith.constant 0 : index
    %230 = vector.load %arg2[%c6_101, %c0_102, %c0_103] : memref<42x8x52xf32, #tpu.memory_space<vmem>>, vector<1x8x52xf32>
    %231 = vector.shape_cast %230 : vector<1x8x52xf32> to vector<8x52xf32>
    %232 = vector.broadcast %229 : vector<1x52xf32> to vector<8x52xf32>
    %233 = arith.mulf %231, %232 : vector<8x52xf32>
    %234 = arith.addf %227, %233 : vector<8x52xf32>
    %c0_104 = arith.constant 0 : index
    %c6_105 = arith.constant 6 : index
    %c0_106 = arith.constant 0 : index
    %235 = vector.load %arg6[%c0_104, %c6_105, %c0_106] : memref<3x51x52xf32, #tpu.memory_space<vmem>>, vector<1x1x52xf32>
    %236 = vector.shape_cast %235 : vector<1x1x52xf32> to vector<1x52xf32>
    %c7_107 = arith.constant 7 : index
    %c0_108 = arith.constant 0 : index
    %c0_109 = arith.constant 0 : index
    %237 = vector.load %arg2[%c7_107, %c0_108, %c0_109] : memref<42x8x52xf32, #tpu.memory_space<vmem>>, vector<1x8x52xf32>
    %238 = vector.shape_cast %237 : vector<1x8x52xf32> to vector<8x52xf32>
    %239 = vector.broadcast %236 : vector<1x52xf32> to vector<8x52xf32>
    %240 = arith.mulf %238, %239 : vector<8x52xf32>
    %241 = arith.addf %234, %240 : vector<8x52xf32>
    %c0_110 = arith.constant 0 : index
    %c7_111 = arith.constant 7 : index
    %c0_112 = arith.constant 0 : index
    %242 = vector.load %arg6[%c0_110, %c7_111, %c0_112] : memref<3x51x52xf32, #tpu.memory_space<vmem>>, vector<1x1x52xf32>
    %243 = vector.shape_cast %242 : vector<1x1x52xf32> to vector<1x52xf32>
    %c8_113 = arith.constant 8 : index
    %c0_114 = arith.constant 0 : index
    %c0_115 = arith.constant 0 : index
    %244 = vector.load %arg2[%c8_113, %c0_114, %c0_115] : memref<42x8x52xf32, #tpu.memory_space<vmem>>, vector<1x8x52xf32>
    %245 = vector.shape_cast %244 : vector<1x8x52xf32> to vector<8x52xf32>
    %246 = vector.broadcast %243 : vector<1x52xf32> to vector<8x52xf32>
    %247 = arith.mulf %245, %246 : vector<8x52xf32>
    %c0_116 = arith.constant 0 : index
    %c8_117 = arith.constant 8 : index
    %c0_118 = arith.constant 0 : index
    %248 = vector.load %arg6[%c0_116, %c8_117, %c0_118] : memref<3x51x52xf32, #tpu.memory_space<vmem>>, vector<1x1x52xf32>
    %249 = vector.shape_cast %248 : vector<1x1x52xf32> to vector<1x52xf32>
    %c9_119 = arith.constant 9 : index
    %c0_120 = arith.constant 0 : index
    %c0_121 = arith.constant 0 : index
    %250 = vector.load %arg2[%c9_119, %c0_120, %c0_121] : memref<42x8x52xf32, #tpu.memory_space<vmem>>, vector<1x8x52xf32>
    %251 = vector.shape_cast %250 : vector<1x8x52xf32> to vector<8x52xf32>
    %252 = vector.broadcast %249 : vector<1x52xf32> to vector<8x52xf32>
    %253 = arith.mulf %251, %252 : vector<8x52xf32>
    %254 = arith.addf %247, %253 : vector<8x52xf32>
    %c0_122 = arith.constant 0 : index
    %c9_123 = arith.constant 9 : index
    %c0_124 = arith.constant 0 : index
    %255 = vector.load %arg6[%c0_122, %c9_123, %c0_124] : memref<3x51x52xf32, #tpu.memory_space<vmem>>, vector<1x1x52xf32>
    %256 = vector.shape_cast %255 : vector<1x1x52xf32> to vector<1x52xf32>
    %c10_125 = arith.constant 10 : index
    %c0_126 = arith.constant 0 : index
    %c0_127 = arith.constant 0 : index
    %257 = vector.load %arg2[%c10_125, %c0_126, %c0_127] : memref<42x8x52xf32, #tpu.memory_space<vmem>>, vector<1x8x52xf32>
    %258 = vector.shape_cast %257 : vector<1x8x52xf32> to vector<8x52xf32>
    %259 = vector.broadcast %256 : vector<1x52xf32> to vector<8x52xf32>
    %260 = arith.mulf %258, %259 : vector<8x52xf32>
    %261 = arith.addf %254, %260 : vector<8x52xf32>
    %c0_128 = arith.constant 0 : index
    %c10_129 = arith.constant 10 : index
    %c0_130 = arith.constant 0 : index
    %262 = vector.load %arg6[%c0_128, %c10_129, %c0_130] : memref<3x51x52xf32, #tpu.memory_space<vmem>>, vector<1x1x52xf32>
    %263 = vector.shape_cast %262 : vector<1x1x52xf32> to vector<1x52xf32>
    %c11_131 = arith.constant 11 : index
    %c0_132 = arith.constant 0 : index
    %c0_133 = arith.constant 0 : index
    %264 = vector.load %arg2[%c11_131, %c0_132, %c0_133] : memref<42x8x52xf32, #tpu.memory_space<vmem>>, vector<1x8x52xf32>
    %265 = vector.shape_cast %264 : vector<1x8x52xf32> to vector<8x52xf32>
    %266 = vector.broadcast %263 : vector<1x52xf32> to vector<8x52xf32>
    %267 = arith.mulf %265, %266 : vector<8x52xf32>
    %268 = arith.addf %261, %267 : vector<8x52xf32>
    %c0_134 = arith.constant 0 : index
    %c11_135 = arith.constant 11 : index
    %c0_136 = arith.constant 0 : index
    %269 = vector.load %arg6[%c0_134, %c11_135, %c0_136] : memref<3x51x52xf32, #tpu.memory_space<vmem>>, vector<1x1x52xf32>
    %270 = vector.shape_cast %269 : vector<1x1x52xf32> to vector<1x52xf32>
    %c12_137 = arith.constant 12 : index
    %c0_138 = arith.constant 0 : index
    %c0_139 = arith.constant 0 : index
    %271 = vector.load %arg2[%c12_137, %c0_138, %c0_139] : memref<42x8x52xf32, #tpu.memory_space<vmem>>, vector<1x8x52xf32>
    %272 = vector.shape_cast %271 : vector<1x8x52xf32> to vector<8x52xf32>
    %273 = vector.broadcast %270 : vector<1x52xf32> to vector<8x52xf32>
    %274 = arith.mulf %272, %273 : vector<8x52xf32>
    %275 = arith.addf %268, %274 : vector<8x52xf32>
    %c0_140 = arith.constant 0 : index
    %c12_141 = arith.constant 12 : index
    %c0_142 = arith.constant 0 : index
    %276 = vector.load %arg6[%c0_140, %c12_141, %c0_142] : memref<3x51x52xf32, #tpu.memory_space<vmem>>, vector<1x1x52xf32>
    %277 = vector.shape_cast %276 : vector<1x1x52xf32> to vector<1x52xf32>
    %c13_143 = arith.constant 13 : index
    %c0_144 = arith.constant 0 : index
    %c0_145 = arith.constant 0 : index
    %278 = vector.load %arg2[%c13_143, %c0_144, %c0_145] : memref<42x8x52xf32, #tpu.memory_space<vmem>>, vector<1x8x52xf32>
    %279 = vector.shape_cast %278 : vector<1x8x52xf32> to vector<8x52xf32>
    %280 = vector.broadcast %277 : vector<1x52xf32> to vector<8x52xf32>
    %281 = arith.mulf %279, %280 : vector<8x52xf32>
    %282 = arith.addf %275, %281 : vector<8x52xf32>
    %c1_146 = arith.constant 1 : index
    %c0_147 = arith.constant 0 : index
    %c0_148 = arith.constant 0 : index
    %283 = vector.load %arg6[%c1_146, %c0_147, %c0_148] : memref<3x51x52xf32, #tpu.memory_space<vmem>>, vector<1x1x52xf32>
    %284 = vector.shape_cast %283 : vector<1x1x52xf32> to vector<1x52xf32>
    %c15 = arith.constant 15 : index
    %c0_149 = arith.constant 0 : index
    %c0_150 = arith.constant 0 : index
    %285 = vector.load %arg2[%c15, %c0_149, %c0_150] : memref<42x8x52xf32, #tpu.memory_space<vmem>>, vector<1x8x52xf32>
    %286 = vector.shape_cast %285 : vector<1x8x52xf32> to vector<8x52xf32>
    %287 = vector.broadcast %284 : vector<1x52xf32> to vector<8x52xf32>
    %288 = arith.mulf %286, %287 : vector<8x52xf32>
    %289 = arith.addf %282, %288 : vector<8x52xf32>
    %c1_151 = arith.constant 1 : index
    %c1_152 = arith.constant 1 : index
    %c0_153 = arith.constant 0 : index
    %290 = vector.load %arg6[%c1_151, %c1_152, %c0_153] : memref<3x51x52xf32, #tpu.memory_space<vmem>>, vector<1x1x52xf32>
    %291 = vector.shape_cast %290 : vector<1x1x52xf32> to vector<1x52xf32>
    %c16 = arith.constant 16 : index
    %c0_154 = arith.constant 0 : index
    %c0_155 = arith.constant 0 : index
    %292 = vector.load %arg2[%c16, %c0_154, %c0_155] : memref<42x8x52xf32, #tpu.memory_space<vmem>>, vector<1x8x52xf32>
    %293 = vector.shape_cast %292 : vector<1x8x52xf32> to vector<8x52xf32>
    %294 = vector.broadcast %291 : vector<1x52xf32> to vector<8x52xf32>
    %295 = arith.mulf %293, %294 : vector<8x52xf32>
    %c1_156 = arith.constant 1 : index
    %c2_157 = arith.constant 2 : index
    %c0_158 = arith.constant 0 : index
    %296 = vector.load %arg6[%c1_156, %c2_157, %c0_158] : memref<3x51x52xf32, #tpu.memory_space<vmem>>, vector<1x1x52xf32>
    %297 = vector.shape_cast %296 : vector<1x1x52xf32> to vector<1x52xf32>
    %c17 = arith.constant 17 : index
    %c0_159 = arith.constant 0 : index
    %c0_160 = arith.constant 0 : index
    %298 = vector.load %arg2[%c17, %c0_159, %c0_160] : memref<42x8x52xf32, #tpu.memory_space<vmem>>, vector<1x8x52xf32>
    %299 = vector.shape_cast %298 : vector<1x8x52xf32> to vector<8x52xf32>
    %300 = vector.broadcast %297 : vector<1x52xf32> to vector<8x52xf32>
    %301 = arith.mulf %299, %300 : vector<8x52xf32>
    %302 = arith.addf %295, %301 : vector<8x52xf32>
    %c1_161 = arith.constant 1 : index
    %c3_162 = arith.constant 3 : index
    %c0_163 = arith.constant 0 : index
    %303 = vector.load %arg6[%c1_161, %c3_162, %c0_163] : memref<3x51x52xf32, #tpu.memory_space<vmem>>, vector<1x1x52xf32>
    %304 = vector.shape_cast %303 : vector<1x1x52xf32> to vector<1x52xf32>
    %c18 = arith.constant 18 : index
    %c0_164 = arith.constant 0 : index
    %c0_165 = arith.constant 0 : index
    %305 = vector.load %arg2[%c18, %c0_164, %c0_165] : memref<42x8x52xf32, #tpu.memory_space<vmem>>, vector<1x8x52xf32>
    %306 = vector.shape_cast %305 : vector<1x8x52xf32> to vector<8x52xf32>
    %307 = vector.broadcast %304 : vector<1x52xf32> to vector<8x52xf32>
    %308 = arith.mulf %306, %307 : vector<8x52xf32>
    %309 = arith.addf %302, %308 : vector<8x52xf32>
    %c1_166 = arith.constant 1 : index
    %c4_167 = arith.constant 4 : index
    %c0_168 = arith.constant 0 : index
    %310 = vector.load %arg6[%c1_166, %c4_167, %c0_168] : memref<3x51x52xf32, #tpu.memory_space<vmem>>, vector<1x1x52xf32>
    %311 = vector.shape_cast %310 : vector<1x1x52xf32> to vector<1x52xf32>
    %c19 = arith.constant 19 : index
    %c0_169 = arith.constant 0 : index
    %c0_170 = arith.constant 0 : index
    %312 = vector.load %arg2[%c19, %c0_169, %c0_170] : memref<42x8x52xf32, #tpu.memory_space<vmem>>, vector<1x8x52xf32>
    %313 = vector.shape_cast %312 : vector<1x8x52xf32> to vector<8x52xf32>
    %314 = vector.broadcast %311 : vector<1x52xf32> to vector<8x52xf32>
    %315 = arith.mulf %313, %314 : vector<8x52xf32>
    %316 = arith.addf %309, %315 : vector<8x52xf32>
    %c1_171 = arith.constant 1 : index
    %c5_172 = arith.constant 5 : index
    %c0_173 = arith.constant 0 : index
    %317 = vector.load %arg6[%c1_171, %c5_172, %c0_173] : memref<3x51x52xf32, #tpu.memory_space<vmem>>, vector<1x1x52xf32>
    %318 = vector.shape_cast %317 : vector<1x1x52xf32> to vector<1x52xf32>
    %c20 = arith.constant 20 : index
    %c0_174 = arith.constant 0 : index
    %c0_175 = arith.constant 0 : index
    %319 = vector.load %arg2[%c20, %c0_174, %c0_175] : memref<42x8x52xf32, #tpu.memory_space<vmem>>, vector<1x8x52xf32>
    %320 = vector.shape_cast %319 : vector<1x8x52xf32> to vector<8x52xf32>
    %321 = vector.broadcast %318 : vector<1x52xf32> to vector<8x52xf32>
    %322 = arith.mulf %320, %321 : vector<8x52xf32>
    %323 = arith.addf %316, %322 : vector<8x52xf32>
    %c1_176 = arith.constant 1 : index
    %c6_177 = arith.constant 6 : index
    %c0_178 = arith.constant 0 : index
    %324 = vector.load %arg6[%c1_176, %c6_177, %c0_178] : memref<3x51x52xf32, #tpu.memory_space<vmem>>, vector<1x1x52xf32>
    %325 = vector.shape_cast %324 : vector<1x1x52xf32> to vector<1x52xf32>
    %c21 = arith.constant 21 : index
    %c0_179 = arith.constant 0 : index
    %c0_180 = arith.constant 0 : index
    %326 = vector.load %arg2[%c21, %c0_179, %c0_180] : memref<42x8x52xf32, #tpu.memory_space<vmem>>, vector<1x8x52xf32>
    %327 = vector.shape_cast %326 : vector<1x8x52xf32> to vector<8x52xf32>
    %328 = vector.broadcast %325 : vector<1x52xf32> to vector<8x52xf32>
    %329 = arith.mulf %327, %328 : vector<8x52xf32>
    %330 = arith.addf %323, %329 : vector<8x52xf32>
    %c1_181 = arith.constant 1 : index
    %c7_182 = arith.constant 7 : index
    %c0_183 = arith.constant 0 : index
    %331 = vector.load %arg6[%c1_181, %c7_182, %c0_183] : memref<3x51x52xf32, #tpu.memory_space<vmem>>, vector<1x1x52xf32>
    %332 = vector.shape_cast %331 : vector<1x1x52xf32> to vector<1x52xf32>
    %c22 = arith.constant 22 : index
    %c0_184 = arith.constant 0 : index
    %c0_185 = arith.constant 0 : index
    %333 = vector.load %arg2[%c22, %c0_184, %c0_185] : memref<42x8x52xf32, #tpu.memory_space<vmem>>, vector<1x8x52xf32>
    %334 = vector.shape_cast %333 : vector<1x8x52xf32> to vector<8x52xf32>
    %335 = vector.broadcast %332 : vector<1x52xf32> to vector<8x52xf32>
    %336 = arith.mulf %334, %335 : vector<8x52xf32>
    %337 = arith.addf %330, %336 : vector<8x52xf32>
    %c1_186 = arith.constant 1 : index
    %c8_187 = arith.constant 8 : index
    %c0_188 = arith.constant 0 : index
    %338 = vector.load %arg6[%c1_186, %c8_187, %c0_188] : memref<3x51x52xf32, #tpu.memory_space<vmem>>, vector<1x1x52xf32>
    %339 = vector.shape_cast %338 : vector<1x1x52xf32> to vector<1x52xf32>
    %c23 = arith.constant 23 : index
    %c0_189 = arith.constant 0 : index
    %c0_190 = arith.constant 0 : index
    %340 = vector.load %arg2[%c23, %c0_189, %c0_190] : memref<42x8x52xf32, #tpu.memory_space<vmem>>, vector<1x8x52xf32>
    %341 = vector.shape_cast %340 : vector<1x8x52xf32> to vector<8x52xf32>
    %342 = vector.broadcast %339 : vector<1x52xf32> to vector<8x52xf32>
    %343 = arith.mulf %341, %342 : vector<8x52xf32>
    %c1_191 = arith.constant 1 : index
    %c9_192 = arith.constant 9 : index
    %c0_193 = arith.constant 0 : index
    %344 = vector.load %arg6[%c1_191, %c9_192, %c0_193] : memref<3x51x52xf32, #tpu.memory_space<vmem>>, vector<1x1x52xf32>
    %345 = vector.shape_cast %344 : vector<1x1x52xf32> to vector<1x52xf32>
    %c24 = arith.constant 24 : index
    %c0_194 = arith.constant 0 : index
    %c0_195 = arith.constant 0 : index
    %346 = vector.load %arg2[%c24, %c0_194, %c0_195] : memref<42x8x52xf32, #tpu.memory_space<vmem>>, vector<1x8x52xf32>
    %347 = vector.shape_cast %346 : vector<1x8x52xf32> to vector<8x52xf32>
    %348 = vector.broadcast %345 : vector<1x52xf32> to vector<8x52xf32>
    %349 = arith.mulf %347, %348 : vector<8x52xf32>
    %350 = arith.addf %343, %349 : vector<8x52xf32>
    %c1_196 = arith.constant 1 : index
    %c10_197 = arith.constant 10 : index
    %c0_198 = arith.constant 0 : index
    %351 = vector.load %arg6[%c1_196, %c10_197, %c0_198] : memref<3x51x52xf32, #tpu.memory_space<vmem>>, vector<1x1x52xf32>
    %352 = vector.shape_cast %351 : vector<1x1x52xf32> to vector<1x52xf32>
    %c25 = arith.constant 25 : index
    %c0_199 = arith.constant 0 : index
    %c0_200 = arith.constant 0 : index
    %353 = vector.load %arg2[%c25, %c0_199, %c0_200] : memref<42x8x52xf32, #tpu.memory_space<vmem>>, vector<1x8x52xf32>
    %354 = vector.shape_cast %353 : vector<1x8x52xf32> to vector<8x52xf32>
    %355 = vector.broadcast %352 : vector<1x52xf32> to vector<8x52xf32>
    %356 = arith.mulf %354, %355 : vector<8x52xf32>
    %357 = arith.addf %350, %356 : vector<8x52xf32>
    %c1_201 = arith.constant 1 : index
    %c11_202 = arith.constant 11 : index
    %c0_203 = arith.constant 0 : index
    %358 = vector.load %arg6[%c1_201, %c11_202, %c0_203] : memref<3x51x52xf32, #tpu.memory_space<vmem>>, vector<1x1x52xf32>
    %359 = vector.shape_cast %358 : vector<1x1x52xf32> to vector<1x52xf32>
    %c26 = arith.constant 26 : index
    %c0_204 = arith.constant 0 : index
    %c0_205 = arith.constant 0 : index
    %360 = vector.load %arg2[%c26, %c0_204, %c0_205] : memref<42x8x52xf32, #tpu.memory_space<vmem>>, vector<1x8x52xf32>
    %361 = vector.shape_cast %360 : vector<1x8x52xf32> to vector<8x52xf32>
    %362 = vector.broadcast %359 : vector<1x52xf32> to vector<8x52xf32>
    %363 = arith.mulf %361, %362 : vector<8x52xf32>
    %364 = arith.addf %357, %363 : vector<8x52xf32>
    %c1_206 = arith.constant 1 : index
    %c12_207 = arith.constant 12 : index
    %c0_208 = arith.constant 0 : index
    %365 = vector.load %arg6[%c1_206, %c12_207, %c0_208] : memref<3x51x52xf32, #tpu.memory_space<vmem>>, vector<1x1x52xf32>
    %366 = vector.shape_cast %365 : vector<1x1x52xf32> to vector<1x52xf32>
    %c27 = arith.constant 27 : index
    %c0_209 = arith.constant 0 : index
    %c0_210 = arith.constant 0 : index
    %367 = vector.load %arg2[%c27, %c0_209, %c0_210] : memref<42x8x52xf32, #tpu.memory_space<vmem>>, vector<1x8x52xf32>
    %368 = vector.shape_cast %367 : vector<1x8x52xf32> to vector<8x52xf32>
    %369 = vector.broadcast %366 : vector<1x52xf32> to vector<8x52xf32>
    %370 = arith.mulf %368, %369 : vector<8x52xf32>
    %371 = arith.addf %364, %370 : vector<8x52xf32>
    %c2_211 = arith.constant 2 : index
    %c0_212 = arith.constant 0 : index
    %c0_213 = arith.constant 0 : index
    %372 = vector.load %arg6[%c2_211, %c0_212, %c0_213] : memref<3x51x52xf32, #tpu.memory_space<vmem>>, vector<1x1x52xf32>
    %373 = vector.shape_cast %372 : vector<1x1x52xf32> to vector<1x52xf32>
    %c29 = arith.constant 29 : index
    %c0_214 = arith.constant 0 : index
    %c0_215 = arith.constant 0 : index
    %374 = vector.load %arg2[%c29, %c0_214, %c0_215] : memref<42x8x52xf32, #tpu.memory_space<vmem>>, vector<1x8x52xf32>
    %375 = vector.shape_cast %374 : vector<1x8x52xf32> to vector<8x52xf32>
    %376 = vector.broadcast %373 : vector<1x52xf32> to vector<8x52xf32>
    %377 = arith.mulf %375, %376 : vector<8x52xf32>
    %378 = arith.addf %371, %377 : vector<8x52xf32>
    %c2_216 = arith.constant 2 : index
    %c1_217 = arith.constant 1 : index
    %c0_218 = arith.constant 0 : index
    %379 = vector.load %arg6[%c2_216, %c1_217, %c0_218] : memref<3x51x52xf32, #tpu.memory_space<vmem>>, vector<1x1x52xf32>
    %380 = vector.shape_cast %379 : vector<1x1x52xf32> to vector<1x52xf32>
    %c30 = arith.constant 30 : index
    %c0_219 = arith.constant 0 : index
    %c0_220 = arith.constant 0 : index
    %381 = vector.load %arg2[%c30, %c0_219, %c0_220] : memref<42x8x52xf32, #tpu.memory_space<vmem>>, vector<1x8x52xf32>
    %382 = vector.shape_cast %381 : vector<1x8x52xf32> to vector<8x52xf32>
    %383 = vector.broadcast %380 : vector<1x52xf32> to vector<8x52xf32>
    %384 = arith.mulf %382, %383 : vector<8x52xf32>
    %385 = arith.addf %378, %384 : vector<8x52xf32>
    %c2_221 = arith.constant 2 : index
    %c2_222 = arith.constant 2 : index
    %c0_223 = arith.constant 0 : index
    %386 = vector.load %arg6[%c2_221, %c2_222, %c0_223] : memref<3x51x52xf32, #tpu.memory_space<vmem>>, vector<1x1x52xf32>
    %387 = vector.shape_cast %386 : vector<1x1x52xf32> to vector<1x52xf32>
    %c31 = arith.constant 31 : index
    %c0_224 = arith.constant 0 : index
    %c0_225 = arith.constant 0 : index
    %388 = vector.load %arg2[%c31, %c0_224, %c0_225] : memref<42x8x52xf32, #tpu.memory_space<vmem>>, vector<1x8x52xf32>
    %389 = vector.shape_cast %388 : vector<1x8x52xf32> to vector<8x52xf32>
    %390 = vector.broadcast %387 : vector<1x52xf32> to vector<8x52xf32>
    %391 = arith.mulf %389, %390 : vector<8x52xf32>
    %c2_226 = arith.constant 2 : index
    %c3_227 = arith.constant 3 : index
    %c0_228 = arith.constant 0 : index
    %392 = vector.load %arg6[%c2_226, %c3_227, %c0_228] : memref<3x51x52xf32, #tpu.memory_space<vmem>>, vector<1x1x52xf32>
    %393 = vector.shape_cast %392 : vector<1x1x52xf32> to vector<1x52xf32>
    %c32 = arith.constant 32 : index
    %c0_229 = arith.constant 0 : index
    %c0_230 = arith.constant 0 : index
    %394 = vector.load %arg2[%c32, %c0_229, %c0_230] : memref<42x8x52xf32, #tpu.memory_space<vmem>>, vector<1x8x52xf32>
    %395 = vector.shape_cast %394 : vector<1x8x52xf32> to vector<8x52xf32>
    %396 = vector.broadcast %393 : vector<1x52xf32> to vector<8x52xf32>
    %397 = arith.mulf %395, %396 : vector<8x52xf32>
    %398 = arith.addf %391, %397 : vector<8x52xf32>
    %c2_231 = arith.constant 2 : index
    %c4_232 = arith.constant 4 : index
    %c0_233 = arith.constant 0 : index
    %399 = vector.load %arg6[%c2_231, %c4_232, %c0_233] : memref<3x51x52xf32, #tpu.memory_space<vmem>>, vector<1x1x52xf32>
    %400 = vector.shape_cast %399 : vector<1x1x52xf32> to vector<1x52xf32>
    %c33 = arith.constant 33 : index
    %c0_234 = arith.constant 0 : index
    %c0_235 = arith.constant 0 : index
    %401 = vector.load %arg2[%c33, %c0_234, %c0_235] : memref<42x8x52xf32, #tpu.memory_space<vmem>>, vector<1x8x52xf32>
    %402 = vector.shape_cast %401 : vector<1x8x52xf32> to vector<8x52xf32>
    %403 = vector.broadcast %400 : vector<1x52xf32> to vector<8x52xf32>
    %404 = arith.mulf %402, %403 : vector<8x52xf32>
    %405 = arith.addf %398, %404 : vector<8x52xf32>
    %c2_236 = arith.constant 2 : index
    %c5_237 = arith.constant 5 : index
    %c0_238 = arith.constant 0 : index
    %406 = vector.load %arg6[%c2_236, %c5_237, %c0_238] : memref<3x51x52xf32, #tpu.memory_space<vmem>>, vector<1x1x52xf32>
    %407 = vector.shape_cast %406 : vector<1x1x52xf32> to vector<1x52xf32>
    %c34 = arith.constant 34 : index
    %c0_239 = arith.constant 0 : index
    %c0_240 = arith.constant 0 : index
    %408 = vector.load %arg2[%c34, %c0_239, %c0_240] : memref<42x8x52xf32, #tpu.memory_space<vmem>>, vector<1x8x52xf32>
    %409 = vector.shape_cast %408 : vector<1x8x52xf32> to vector<8x52xf32>
    %410 = vector.broadcast %407 : vector<1x52xf32> to vector<8x52xf32>
    %411 = arith.mulf %409, %410 : vector<8x52xf32>
    %412 = arith.addf %405, %411 : vector<8x52xf32>
    %c2_241 = arith.constant 2 : index
    %c6_242 = arith.constant 6 : index
    %c0_243 = arith.constant 0 : index
    %413 = vector.load %arg6[%c2_241, %c6_242, %c0_243] : memref<3x51x52xf32, #tpu.memory_space<vmem>>, vector<1x1x52xf32>
    %414 = vector.shape_cast %413 : vector<1x1x52xf32> to vector<1x52xf32>
    %c35 = arith.constant 35 : index
    %c0_244 = arith.constant 0 : index
    %c0_245 = arith.constant 0 : index
    %415 = vector.load %arg2[%c35, %c0_244, %c0_245] : memref<42x8x52xf32, #tpu.memory_space<vmem>>, vector<1x8x52xf32>
    %416 = vector.shape_cast %415 : vector<1x8x52xf32> to vector<8x52xf32>
    %417 = vector.broadcast %414 : vector<1x52xf32> to vector<8x52xf32>
    %418 = arith.mulf %416, %417 : vector<8x52xf32>
    %419 = arith.addf %412, %418 : vector<8x52xf32>
    %c2_246 = arith.constant 2 : index
    %c7_247 = arith.constant 7 : index
    %c0_248 = arith.constant 0 : index
    %420 = vector.load %arg6[%c2_246, %c7_247, %c0_248] : memref<3x51x52xf32, #tpu.memory_space<vmem>>, vector<1x1x52xf32>
    %421 = vector.shape_cast %420 : vector<1x1x52xf32> to vector<1x52xf32>
    %c36 = arith.constant 36 : index
    %c0_249 = arith.constant 0 : index
    %c0_250 = arith.constant 0 : index
    %422 = vector.load %arg2[%c36, %c0_249, %c0_250] : memref<42x8x52xf32, #tpu.memory_space<vmem>>, vector<1x8x52xf32>
    %423 = vector.shape_cast %422 : vector<1x8x52xf32> to vector<8x52xf32>
    %424 = vector.broadcast %421 : vector<1x52xf32> to vector<8x52xf32>
    %425 = arith.mulf %423, %424 : vector<8x52xf32>
    %426 = arith.addf %419, %425 : vector<8x52xf32>
    %c2_251 = arith.constant 2 : index
    %c8_252 = arith.constant 8 : index
    %c0_253 = arith.constant 0 : index
    %427 = vector.load %arg6[%c2_251, %c8_252, %c0_253] : memref<3x51x52xf32, #tpu.memory_space<vmem>>, vector<1x1x52xf32>
    %428 = vector.shape_cast %427 : vector<1x1x52xf32> to vector<1x52xf32>
    %c37 = arith.constant 37 : index
    %c0_254 = arith.constant 0 : index
    %c0_255 = arith.constant 0 : index
    %429 = vector.load %arg2[%c37, %c0_254, %c0_255] : memref<42x8x52xf32, #tpu.memory_space<vmem>>, vector<1x8x52xf32>
    %430 = vector.shape_cast %429 : vector<1x8x52xf32> to vector<8x52xf32>
    %431 = vector.broadcast %428 : vector<1x52xf32> to vector<8x52xf32>
    %432 = arith.mulf %430, %431 : vector<8x52xf32>
    %433 = arith.addf %426, %432 : vector<8x52xf32>
    %c2_256 = arith.constant 2 : index
    %c9_257 = arith.constant 9 : index
    %c0_258 = arith.constant 0 : index
    %434 = vector.load %arg6[%c2_256, %c9_257, %c0_258] : memref<3x51x52xf32, #tpu.memory_space<vmem>>, vector<1x1x52xf32>
    %435 = vector.shape_cast %434 : vector<1x1x52xf32> to vector<1x52xf32>
    %c38 = arith.constant 38 : index
    %c0_259 = arith.constant 0 : index
    %c0_260 = arith.constant 0 : index
    %436 = vector.load %arg2[%c38, %c0_259, %c0_260] : memref<42x8x52xf32, #tpu.memory_space<vmem>>, vector<1x8x52xf32>
    %437 = vector.shape_cast %436 : vector<1x8x52xf32> to vector<8x52xf32>
    %438 = vector.broadcast %435 : vector<1x52xf32> to vector<8x52xf32>
    %439 = arith.mulf %437, %438 : vector<8x52xf32>
    %c2_261 = arith.constant 2 : index
    %c10_262 = arith.constant 10 : index
    %c0_263 = arith.constant 0 : index
    %440 = vector.load %arg6[%c2_261, %c10_262, %c0_263] : memref<3x51x52xf32, #tpu.memory_space<vmem>>, vector<1x1x52xf32>
    %441 = vector.shape_cast %440 : vector<1x1x52xf32> to vector<1x52xf32>
    %c39 = arith.constant 39 : index
    %c0_264 = arith.constant 0 : index
    %c0_265 = arith.constant 0 : index
    %442 = vector.load %arg2[%c39, %c0_264, %c0_265] : memref<42x8x52xf32, #tpu.memory_space<vmem>>, vector<1x8x52xf32>
    %443 = vector.shape_cast %442 : vector<1x8x52xf32> to vector<8x52xf32>
    %444 = vector.broadcast %441 : vector<1x52xf32> to vector<8x52xf32>
    %445 = arith.mulf %443, %444 : vector<8x52xf32>
    %446 = arith.addf %439, %445 : vector<8x52xf32>
    %c2_266 = arith.constant 2 : index
    %c11_267 = arith.constant 11 : index
    %c0_268 = arith.constant 0 : index
    %447 = vector.load %arg6[%c2_266, %c11_267, %c0_268] : memref<3x51x52xf32, #tpu.memory_space<vmem>>, vector<1x1x52xf32>
    %448 = vector.shape_cast %447 : vector<1x1x52xf32> to vector<1x52xf32>
    %c40 = arith.constant 40 : index
    %c0_269 = arith.constant 0 : index
    %c0_270 = arith.constant 0 : index
    %449 = vector.load %arg2[%c40, %c0_269, %c0_270] : memref<42x8x52xf32, #tpu.memory_space<vmem>>, vector<1x8x52xf32>
    %450 = vector.shape_cast %449 : vector<1x8x52xf32> to vector<8x52xf32>
    %451 = vector.broadcast %448 : vector<1x52xf32> to vector<8x52xf32>
    %452 = arith.mulf %450, %451 : vector<8x52xf32>
    %453 = arith.addf %446, %452 : vector<8x52xf32>
    %c2_271 = arith.constant 2 : index
    %c12_272 = arith.constant 12 : index
    %c0_273 = arith.constant 0 : index
    %454 = vector.load %arg6[%c2_271, %c12_272, %c0_273] : memref<3x51x52xf32, #tpu.memory_space<vmem>>, vector<1x1x52xf32>
    %455 = vector.shape_cast %454 : vector<1x1x52xf32> to vector<1x52xf32>
    %c41 = arith.constant 41 : index
    %c0_274 = arith.constant 0 : index
    %c0_275 = arith.constant 0 : index
    %456 = vector.load %arg2[%c41, %c0_274, %c0_275] : memref<42x8x52xf32, #tpu.memory_space<vmem>>, vector<1x8x52xf32>
    %457 = vector.shape_cast %456 : vector<1x8x52xf32> to vector<8x52xf32>
    %458 = vector.broadcast %455 : vector<1x52xf32> to vector<8x52xf32>
    %459 = arith.mulf %457, %458 : vector<8x52xf32>
    %460 = arith.addf %453, %459 : vector<8x52xf32>
    %461 = arith.addf %241, %289 : vector<8x52xf32>
    %462 = arith.addf %337, %385 : vector<8x52xf32>
    %463 = arith.addf %433, %460 : vector<8x52xf32>
    %464 = arith.addf %461, %462 : vector<8x52xf32>
    %465 = arith.addf %464, %463 : vector<8x52xf32>
    %466 = vector.extract_strided_slice %465 {offsets = [0, 0], sizes = [8, 13], strides = [1, 1]} : vector<8x52xf32> to vector<8x13xf32>
    %cst_276 = arith.constant dense<0.000000e+00> : vector<8xf32>
    %467 = vector.multi_reduction <add>, %466, %cst_276 [1] : vector<8x13xf32> to vector<8xf32>
    %468 = vector.shape_cast %467 : vector<8xf32> to vector<8x1xf32>
    %469 = vector.extract_strided_slice %465 {offsets = [0, 14], sizes = [8, 14], strides = [1, 1]} : vector<8x52xf32> to vector<8x14xf32>
    %cst_277 = arith.constant dense<0.000000e+00> : vector<8xf32>
    %470 = vector.multi_reduction <add>, %469, %cst_277 [1] : vector<8x14xf32> to vector<8xf32>
    %471 = vector.shape_cast %470 : vector<8xf32> to vector<8x1xf32>
    %472 = vector.extract_strided_slice %465 {offsets = [0, 29], sizes = [8, 14], strides = [1, 1]} : vector<8x52xf32> to vector<8x14xf32>
    %cst_278 = arith.constant dense<0.000000e+00> : vector<8xf32>
    %473 = vector.multi_reduction <add>, %472, %cst_278 [1] : vector<8x14xf32> to vector<8xf32>
    %474 = vector.shape_cast %473 : vector<8xf32> to vector<8x1xf32>
    %c0_279 = arith.constant 0 : index
    %c14_280 = arith.constant 14 : index
    %c0_281 = arith.constant 0 : index
    %475 = vector.load %arg6[%c0_279, %c14_280, %c0_281] : memref<3x51x52xf32, #tpu.memory_space<vmem>>, vector<1x1x52xf32>
    %476 = vector.shape_cast %475 : vector<1x1x52xf32> to vector<1x52xf32>
    %c0_282 = arith.constant 0 : index
    %c0_283 = arith.constant 0 : index
    %c0_284 = arith.constant 0 : index
    %477 = vector.load %arg2[%c0_282, %c0_283, %c0_284] : memref<42x8x52xf32, #tpu.memory_space<vmem>>, vector<1x8x52xf32>
    %478 = vector.shape_cast %477 : vector<1x8x52xf32> to vector<8x52xf32>
    %479 = vector.broadcast %476 : vector<1x52xf32> to vector<8x52xf32>
    %480 = arith.mulf %478, %479 : vector<8x52xf32>
    %c0_285 = arith.constant 0 : index
    %c15_286 = arith.constant 15 : index
    %c0_287 = arith.constant 0 : index
    %481 = vector.load %arg6[%c0_285, %c15_286, %c0_287] : memref<3x51x52xf32, #tpu.memory_space<vmem>>, vector<1x1x52xf32>
    %482 = vector.shape_cast %481 : vector<1x1x52xf32> to vector<1x52xf32>
    %c1_288 = arith.constant 1 : index
    %c0_289 = arith.constant 0 : index
    %c0_290 = arith.constant 0 : index
    %483 = vector.load %arg2[%c1_288, %c0_289, %c0_290] : memref<42x8x52xf32, #tpu.memory_space<vmem>>, vector<1x8x52xf32>
    %484 = vector.shape_cast %483 : vector<1x8x52xf32> to vector<8x52xf32>
    %485 = vector.broadcast %482 : vector<1x52xf32> to vector<8x52xf32>
    %486 = arith.mulf %484, %485 : vector<8x52xf32>
    %487 = arith.addf %480, %486 : vector<8x52xf32>
    %c0_291 = arith.constant 0 : index
    %c16_292 = arith.constant 16 : index
    %c0_293 = arith.constant 0 : index
    %488 = vector.load %arg6[%c0_291, %c16_292, %c0_293] : memref<3x51x52xf32, #tpu.memory_space<vmem>>, vector<1x1x52xf32>
    %489 = vector.shape_cast %488 : vector<1x1x52xf32> to vector<1x52xf32>
    %c2_294 = arith.constant 2 : index
    %c0_295 = arith.constant 0 : index
    %c0_296 = arith.constant 0 : index
    %490 = vector.load %arg2[%c2_294, %c0_295, %c0_296] : memref<42x8x52xf32, #tpu.memory_space<vmem>>, vector<1x8x52xf32>
    %491 = vector.shape_cast %490 : vector<1x8x52xf32> to vector<8x52xf32>
    %492 = vector.broadcast %489 : vector<1x52xf32> to vector<8x52xf32>
    %493 = arith.mulf %491, %492 : vector<8x52xf32>
    %494 = arith.addf %487, %493 : vector<8x52xf32>
    %c0_297 = arith.constant 0 : index
    %c17_298 = arith.constant 17 : index
    %c0_299 = arith.constant 0 : index
    %495 = vector.load %arg6[%c0_297, %c17_298, %c0_299] : memref<3x51x52xf32, #tpu.memory_space<vmem>>, vector<1x1x52xf32>
    %496 = vector.shape_cast %495 : vector<1x1x52xf32> to vector<1x52xf32>
    %c3_300 = arith.constant 3 : index
    %c0_301 = arith.constant 0 : index
    %c0_302 = arith.constant 0 : index
    %497 = vector.load %arg2[%c3_300, %c0_301, %c0_302] : memref<42x8x52xf32, #tpu.memory_space<vmem>>, vector<1x8x52xf32>
    %498 = vector.shape_cast %497 : vector<1x8x52xf32> to vector<8x52xf32>
    %499 = vector.broadcast %496 : vector<1x52xf32> to vector<8x52xf32>
    %500 = arith.mulf %498, %499 : vector<8x52xf32>
    %501 = arith.addf %494, %500 : vector<8x52xf32>
    %c0_303 = arith.constant 0 : index
    %c18_304 = arith.constant 18 : index
    %c0_305 = arith.constant 0 : index
    %502 = vector.load %arg6[%c0_303, %c18_304, %c0_305] : memref<3x51x52xf32, #tpu.memory_space<vmem>>, vector<1x1x52xf32>
    %503 = vector.shape_cast %502 : vector<1x1x52xf32> to vector<1x52xf32>
    %c4_306 = arith.constant 4 : index
    %c0_307 = arith.constant 0 : index
    %c0_308 = arith.constant 0 : index
    %504 = vector.load %arg2[%c4_306, %c0_307, %c0_308] : memref<42x8x52xf32, #tpu.memory_space<vmem>>, vector<1x8x52xf32>
    %505 = vector.shape_cast %504 : vector<1x8x52xf32> to vector<8x52xf32>
    %506 = vector.broadcast %503 : vector<1x52xf32> to vector<8x52xf32>
    %507 = arith.mulf %505, %506 : vector<8x52xf32>
    %508 = arith.addf %501, %507 : vector<8x52xf32>
    %c0_309 = arith.constant 0 : index
    %c19_310 = arith.constant 19 : index
    %c0_311 = arith.constant 0 : index
    %509 = vector.load %arg6[%c0_309, %c19_310, %c0_311] : memref<3x51x52xf32, #tpu.memory_space<vmem>>, vector<1x1x52xf32>
    %510 = vector.shape_cast %509 : vector<1x1x52xf32> to vector<1x52xf32>
    %c5_312 = arith.constant 5 : index
    %c0_313 = arith.constant 0 : index
    %c0_314 = arith.constant 0 : index
    %511 = vector.load %arg2[%c5_312, %c0_313, %c0_314] : memref<42x8x52xf32, #tpu.memory_space<vmem>>, vector<1x8x52xf32>
    %512 = vector.shape_cast %511 : vector<1x8x52xf32> to vector<8x52xf32>
    %513 = vector.broadcast %510 : vector<1x52xf32> to vector<8x52xf32>
    %514 = arith.mulf %512, %513 : vector<8x52xf32>
    %515 = arith.addf %508, %514 : vector<8x52xf32>
    %c0_315 = arith.constant 0 : index
    %c20_316 = arith.constant 20 : index
    %c0_317 = arith.constant 0 : index
    %516 = vector.load %arg6[%c0_315, %c20_316, %c0_317] : memref<3x51x52xf32, #tpu.memory_space<vmem>>, vector<1x1x52xf32>
    %517 = vector.shape_cast %516 : vector<1x1x52xf32> to vector<1x52xf32>
    %c6_318 = arith.constant 6 : index
    %c0_319 = arith.constant 0 : index
    %c0_320 = arith.constant 0 : index
    %518 = vector.load %arg2[%c6_318, %c0_319, %c0_320] : memref<42x8x52xf32, #tpu.memory_space<vmem>>, vector<1x8x52xf32>
    %519 = vector.shape_cast %518 : vector<1x8x52xf32> to vector<8x52xf32>
    %520 = vector.broadcast %517 : vector<1x52xf32> to vector<8x52xf32>
    %521 = arith.mulf %519, %520 : vector<8x52xf32>
    %522 = arith.addf %515, %521 : vector<8x52xf32>
    %c0_321 = arith.constant 0 : index
    %c21_322 = arith.constant 21 : index
    %c0_323 = arith.constant 0 : index
    %523 = vector.load %arg6[%c0_321, %c21_322, %c0_323] : memref<3x51x52xf32, #tpu.memory_space<vmem>>, vector<1x1x52xf32>
    %524 = vector.shape_cast %523 : vector<1x1x52xf32> to vector<1x52xf32>
    %c7_324 = arith.constant 7 : index
    %c0_325 = arith.constant 0 : index
    %c0_326 = arith.constant 0 : index
    %525 = vector.load %arg2[%c7_324, %c0_325, %c0_326] : memref<42x8x52xf32, #tpu.memory_space<vmem>>, vector<1x8x52xf32>
    %526 = vector.shape_cast %525 : vector<1x8x52xf32> to vector<8x52xf32>
    %527 = vector.broadcast %524 : vector<1x52xf32> to vector<8x52xf32>
    %528 = arith.mulf %526, %527 : vector<8x52xf32>
    %c0_327 = arith.constant 0 : index
    %c22_328 = arith.constant 22 : index
    %c0_329 = arith.constant 0 : index
    %529 = vector.load %arg6[%c0_327, %c22_328, %c0_329] : memref<3x51x52xf32, #tpu.memory_space<vmem>>, vector<1x1x52xf32>
    %530 = vector.shape_cast %529 : vector<1x1x52xf32> to vector<1x52xf32>
    %c8_330 = arith.constant 8 : index
    %c0_331 = arith.constant 0 : index
    %c0_332 = arith.constant 0 : index
    %531 = vector.load %arg2[%c8_330, %c0_331, %c0_332] : memref<42x8x52xf32, #tpu.memory_space<vmem>>, vector<1x8x52xf32>
    %532 = vector.shape_cast %531 : vector<1x8x52xf32> to vector<8x52xf32>
    %533 = vector.broadcast %530 : vector<1x52xf32> to vector<8x52xf32>
    %534 = arith.mulf %532, %533 : vector<8x52xf32>
    %535 = arith.addf %528, %534 : vector<8x52xf32>
    %c0_333 = arith.constant 0 : index
    %c23_334 = arith.constant 23 : index
    %c0_335 = arith.constant 0 : index
    %536 = vector.load %arg6[%c0_333, %c23_334, %c0_335] : memref<3x51x52xf32, #tpu.memory_space<vmem>>, vector<1x1x52xf32>
    %537 = vector.shape_cast %536 : vector<1x1x52xf32> to vector<1x52xf32>
    %c9_336 = arith.constant 9 : index
    %c0_337 = arith.constant 0 : index
    %c0_338 = arith.constant 0 : index
    %538 = vector.load %arg2[%c9_336, %c0_337, %c0_338] : memref<42x8x52xf32, #tpu.memory_space<vmem>>, vector<1x8x52xf32>
    %539 = vector.shape_cast %538 : vector<1x8x52xf32> to vector<8x52xf32>
    %540 = vector.broadcast %537 : vector<1x52xf32> to vector<8x52xf32>
    %541 = arith.mulf %539, %540 : vector<8x52xf32>
    %542 = arith.addf %535, %541 : vector<8x52xf32>
    %c0_339 = arith.constant 0 : index
    %c24_340 = arith.constant 24 : index
    %c0_341 = arith.constant 0 : index
    %543 = vector.load %arg6[%c0_339, %c24_340, %c0_341] : memref<3x51x52xf32, #tpu.memory_space<vmem>>, vector<1x1x52xf32>
    %544 = vector.shape_cast %543 : vector<1x1x52xf32> to vector<1x52xf32>
    %c10_342 = arith.constant 10 : index
    %c0_343 = arith.constant 0 : index
    %c0_344 = arith.constant 0 : index
    %545 = vector.load %arg2[%c10_342, %c0_343, %c0_344] : memref<42x8x52xf32, #tpu.memory_space<vmem>>, vector<1x8x52xf32>
    %546 = vector.shape_cast %545 : vector<1x8x52xf32> to vector<8x52xf32>
    %547 = vector.broadcast %544 : vector<1x52xf32> to vector<8x52xf32>
    %548 = arith.mulf %546, %547 : vector<8x52xf32>
    %549 = arith.addf %542, %548 : vector<8x52xf32>
    %c0_345 = arith.constant 0 : index
    %c25_346 = arith.constant 25 : index
    %c0_347 = arith.constant 0 : index
    %550 = vector.load %arg6[%c0_345, %c25_346, %c0_347] : memref<3x51x52xf32, #tpu.memory_space<vmem>>, vector<1x1x52xf32>
    %551 = vector.shape_cast %550 : vector<1x1x52xf32> to vector<1x52xf32>
    %c11_348 = arith.constant 11 : index
    %c0_349 = arith.constant 0 : index
    %c0_350 = arith.constant 0 : index
    %552 = vector.load %arg2[%c11_348, %c0_349, %c0_350] : memref<42x8x52xf32, #tpu.memory_space<vmem>>, vector<1x8x52xf32>
    %553 = vector.shape_cast %552 : vector<1x8x52xf32> to vector<8x52xf32>
    %554 = vector.broadcast %551 : vector<1x52xf32> to vector<8x52xf32>
    %555 = arith.mulf %553, %554 : vector<8x52xf32>
    %556 = arith.addf %549, %555 : vector<8x52xf32>
    %c0_351 = arith.constant 0 : index
    %c26_352 = arith.constant 26 : index
    %c0_353 = arith.constant 0 : index
    %557 = vector.load %arg6[%c0_351, %c26_352, %c0_353] : memref<3x51x52xf32, #tpu.memory_space<vmem>>, vector<1x1x52xf32>
    %558 = vector.shape_cast %557 : vector<1x1x52xf32> to vector<1x52xf32>
    %c12_354 = arith.constant 12 : index
    %c0_355 = arith.constant 0 : index
    %c0_356 = arith.constant 0 : index
    %559 = vector.load %arg2[%c12_354, %c0_355, %c0_356] : memref<42x8x52xf32, #tpu.memory_space<vmem>>, vector<1x8x52xf32>
    %560 = vector.shape_cast %559 : vector<1x8x52xf32> to vector<8x52xf32>
    %561 = vector.broadcast %558 : vector<1x52xf32> to vector<8x52xf32>
    %562 = arith.mulf %560, %561 : vector<8x52xf32>
    %563 = arith.addf %556, %562 : vector<8x52xf32>
    %c0_357 = arith.constant 0 : index
    %c27_358 = arith.constant 27 : index
    %c0_359 = arith.constant 0 : index
    %564 = vector.load %arg6[%c0_357, %c27_358, %c0_359] : memref<3x51x52xf32, #tpu.memory_space<vmem>>, vector<1x1x52xf32>
    %565 = vector.shape_cast %564 : vector<1x1x52xf32> to vector<1x52xf32>
    %c13_360 = arith.constant 13 : index
    %c0_361 = arith.constant 0 : index
    %c0_362 = arith.constant 0 : index
    %566 = vector.load %arg2[%c13_360, %c0_361, %c0_362] : memref<42x8x52xf32, #tpu.memory_space<vmem>>, vector<1x8x52xf32>
    %567 = vector.shape_cast %566 : vector<1x8x52xf32> to vector<8x52xf32>
    %568 = vector.broadcast %565 : vector<1x52xf32> to vector<8x52xf32>
    %569 = arith.mulf %567, %568 : vector<8x52xf32>
    %570 = arith.addf %563, %569 : vector<8x52xf32>
    %c1_363 = arith.constant 1 : index
    %c14_364 = arith.constant 14 : index
    %c0_365 = arith.constant 0 : index
    %571 = vector.load %arg6[%c1_363, %c14_364, %c0_365] : memref<3x51x52xf32, #tpu.memory_space<vmem>>, vector<1x1x52xf32>
    %572 = vector.shape_cast %571 : vector<1x1x52xf32> to vector<1x52xf32>
    %c14_366 = arith.constant 14 : index
    %c0_367 = arith.constant 0 : index
    %c0_368 = arith.constant 0 : index
    %573 = vector.load %arg2[%c14_366, %c0_367, %c0_368] : memref<42x8x52xf32, #tpu.memory_space<vmem>>, vector<1x8x52xf32>
    %574 = vector.shape_cast %573 : vector<1x8x52xf32> to vector<8x52xf32>
    %575 = vector.broadcast %572 : vector<1x52xf32> to vector<8x52xf32>
    %576 = arith.mulf %574, %575 : vector<8x52xf32>
    %c1_369 = arith.constant 1 : index
    %c15_370 = arith.constant 15 : index
    %c0_371 = arith.constant 0 : index
    %577 = vector.load %arg6[%c1_369, %c15_370, %c0_371] : memref<3x51x52xf32, #tpu.memory_space<vmem>>, vector<1x1x52xf32>
    %578 = vector.shape_cast %577 : vector<1x1x52xf32> to vector<1x52xf32>
    %c15_372 = arith.constant 15 : index
    %c0_373 = arith.constant 0 : index
    %c0_374 = arith.constant 0 : index
    %579 = vector.load %arg2[%c15_372, %c0_373, %c0_374] : memref<42x8x52xf32, #tpu.memory_space<vmem>>, vector<1x8x52xf32>
    %580 = vector.shape_cast %579 : vector<1x8x52xf32> to vector<8x52xf32>
    %581 = vector.broadcast %578 : vector<1x52xf32> to vector<8x52xf32>
    %582 = arith.mulf %580, %581 : vector<8x52xf32>
    %583 = arith.addf %576, %582 : vector<8x52xf32>
    %c1_375 = arith.constant 1 : index
    %c16_376 = arith.constant 16 : index
    %c0_377 = arith.constant 0 : index
    %584 = vector.load %arg6[%c1_375, %c16_376, %c0_377] : memref<3x51x52xf32, #tpu.memory_space<vmem>>, vector<1x1x52xf32>
    %585 = vector.shape_cast %584 : vector<1x1x52xf32> to vector<1x52xf32>
    %c16_378 = arith.constant 16 : index
    %c0_379 = arith.constant 0 : index
    %c0_380 = arith.constant 0 : index
    %586 = vector.load %arg2[%c16_378, %c0_379, %c0_380] : memref<42x8x52xf32, #tpu.memory_space<vmem>>, vector<1x8x52xf32>
    %587 = vector.shape_cast %586 : vector<1x8x52xf32> to vector<8x52xf32>
    %588 = vector.broadcast %585 : vector<1x52xf32> to vector<8x52xf32>
    %589 = arith.mulf %587, %588 : vector<8x52xf32>
    %590 = arith.addf %583, %589 : vector<8x52xf32>
    %c1_381 = arith.constant 1 : index
    %c17_382 = arith.constant 17 : index
    %c0_383 = arith.constant 0 : index
    %591 = vector.load %arg6[%c1_381, %c17_382, %c0_383] : memref<3x51x52xf32, #tpu.memory_space<vmem>>, vector<1x1x52xf32>
    %592 = vector.shape_cast %591 : vector<1x1x52xf32> to vector<1x52xf32>
    %c17_384 = arith.constant 17 : index
    %c0_385 = arith.constant 0 : index
    %c0_386 = arith.constant 0 : index
    %593 = vector.load %arg2[%c17_384, %c0_385, %c0_386] : memref<42x8x52xf32, #tpu.memory_space<vmem>>, vector<1x8x52xf32>
    %594 = vector.shape_cast %593 : vector<1x8x52xf32> to vector<8x52xf32>
    %595 = vector.broadcast %592 : vector<1x52xf32> to vector<8x52xf32>
    %596 = arith.mulf %594, %595 : vector<8x52xf32>
    %597 = arith.addf %590, %596 : vector<8x52xf32>
    %c1_387 = arith.constant 1 : index
    %c18_388 = arith.constant 18 : index
    %c0_389 = arith.constant 0 : index
    %598 = vector.load %arg6[%c1_387, %c18_388, %c0_389] : memref<3x51x52xf32, #tpu.memory_space<vmem>>, vector<1x1x52xf32>
    %599 = vector.shape_cast %598 : vector<1x1x52xf32> to vector<1x52xf32>
    %c18_390 = arith.constant 18 : index
    %c0_391 = arith.constant 0 : index
    %c0_392 = arith.constant 0 : index
    %600 = vector.load %arg2[%c18_390, %c0_391, %c0_392] : memref<42x8x52xf32, #tpu.memory_space<vmem>>, vector<1x8x52xf32>
    %601 = vector.shape_cast %600 : vector<1x8x52xf32> to vector<8x52xf32>
    %602 = vector.broadcast %599 : vector<1x52xf32> to vector<8x52xf32>
    %603 = arith.mulf %601, %602 : vector<8x52xf32>
    %604 = arith.addf %597, %603 : vector<8x52xf32>
    %c1_393 = arith.constant 1 : index
    %c19_394 = arith.constant 19 : index
    %c0_395 = arith.constant 0 : index
    %605 = vector.load %arg6[%c1_393, %c19_394, %c0_395] : memref<3x51x52xf32, #tpu.memory_space<vmem>>, vector<1x1x52xf32>
    %606 = vector.shape_cast %605 : vector<1x1x52xf32> to vector<1x52xf32>
    %c19_396 = arith.constant 19 : index
    %c0_397 = arith.constant 0 : index
    %c0_398 = arith.constant 0 : index
    %607 = vector.load %arg2[%c19_396, %c0_397, %c0_398] : memref<42x8x52xf32, #tpu.memory_space<vmem>>, vector<1x8x52xf32>
    %608 = vector.shape_cast %607 : vector<1x8x52xf32> to vector<8x52xf32>
    %609 = vector.broadcast %606 : vector<1x52xf32> to vector<8x52xf32>
    %610 = arith.mulf %608, %609 : vector<8x52xf32>
    %611 = arith.addf %604, %610 : vector<8x52xf32>
    %c1_399 = arith.constant 1 : index
    %c20_400 = arith.constant 20 : index
    %c0_401 = arith.constant 0 : index
    %612 = vector.load %arg6[%c1_399, %c20_400, %c0_401] : memref<3x51x52xf32, #tpu.memory_space<vmem>>, vector<1x1x52xf32>
    %613 = vector.shape_cast %612 : vector<1x1x52xf32> to vector<1x52xf32>
    %c20_402 = arith.constant 20 : index
    %c0_403 = arith.constant 0 : index
    %c0_404 = arith.constant 0 : index
    %614 = vector.load %arg2[%c20_402, %c0_403, %c0_404] : memref<42x8x52xf32, #tpu.memory_space<vmem>>, vector<1x8x52xf32>
    %615 = vector.shape_cast %614 : vector<1x8x52xf32> to vector<8x52xf32>
    %616 = vector.broadcast %613 : vector<1x52xf32> to vector<8x52xf32>
    %617 = arith.mulf %615, %616 : vector<8x52xf32>
    %618 = arith.addf %611, %617 : vector<8x52xf32>
    %c1_405 = arith.constant 1 : index
    %c21_406 = arith.constant 21 : index
    %c0_407 = arith.constant 0 : index
    %619 = vector.load %arg6[%c1_405, %c21_406, %c0_407] : memref<3x51x52xf32, #tpu.memory_space<vmem>>, vector<1x1x52xf32>
    %620 = vector.shape_cast %619 : vector<1x1x52xf32> to vector<1x52xf32>
    %c21_408 = arith.constant 21 : index
    %c0_409 = arith.constant 0 : index
    %c0_410 = arith.constant 0 : index
    %621 = vector.load %arg2[%c21_408, %c0_409, %c0_410] : memref<42x8x52xf32, #tpu.memory_space<vmem>>, vector<1x8x52xf32>
    %622 = vector.shape_cast %621 : vector<1x8x52xf32> to vector<8x52xf32>
    %623 = vector.broadcast %620 : vector<1x52xf32> to vector<8x52xf32>
    %624 = arith.mulf %622, %623 : vector<8x52xf32>
    %c1_411 = arith.constant 1 : index
    %c22_412 = arith.constant 22 : index
    %c0_413 = arith.constant 0 : index
    %625 = vector.load %arg6[%c1_411, %c22_412, %c0_413] : memref<3x51x52xf32, #tpu.memory_space<vmem>>, vector<1x1x52xf32>
    %626 = vector.shape_cast %625 : vector<1x1x52xf32> to vector<1x52xf32>
    %c22_414 = arith.constant 22 : index
    %c0_415 = arith.constant 0 : index
    %c0_416 = arith.constant 0 : index
    %627 = vector.load %arg2[%c22_414, %c0_415, %c0_416] : memref<42x8x52xf32, #tpu.memory_space<vmem>>, vector<1x8x52xf32>
    %628 = vector.shape_cast %627 : vector<1x8x52xf32> to vector<8x52xf32>
    %629 = vector.broadcast %626 : vector<1x52xf32> to vector<8x52xf32>
    %630 = arith.mulf %628, %629 : vector<8x52xf32>
    %631 = arith.addf %624, %630 : vector<8x52xf32>
    %c1_417 = arith.constant 1 : index
    %c23_418 = arith.constant 23 : index
    %c0_419 = arith.constant 0 : index
    %632 = vector.load %arg6[%c1_417, %c23_418, %c0_419] : memref<3x51x52xf32, #tpu.memory_space<vmem>>, vector<1x1x52xf32>
    %633 = vector.shape_cast %632 : vector<1x1x52xf32> to vector<1x52xf32>
    %c23_420 = arith.constant 23 : index
    %c0_421 = arith.constant 0 : index
    %c0_422 = arith.constant 0 : index
    %634 = vector.load %arg2[%c23_420, %c0_421, %c0_422] : memref<42x8x52xf32, #tpu.memory_space<vmem>>, vector<1x8x52xf32>
    %635 = vector.shape_cast %634 : vector<1x8x52xf32> to vector<8x52xf32>
    %636 = vector.broadcast %633 : vector<1x52xf32> to vector<8x52xf32>
    %637 = arith.mulf %635, %636 : vector<8x52xf32>
    %638 = arith.addf %631, %637 : vector<8x52xf32>
    %c1_423 = arith.constant 1 : index
    %c24_424 = arith.constant 24 : index
    %c0_425 = arith.constant 0 : index
    %639 = vector.load %arg6[%c1_423, %c24_424, %c0_425] : memref<3x51x52xf32, #tpu.memory_space<vmem>>, vector<1x1x52xf32>
    %640 = vector.shape_cast %639 : vector<1x1x52xf32> to vector<1x52xf32>
    %c24_426 = arith.constant 24 : index
    %c0_427 = arith.constant 0 : index
    %c0_428 = arith.constant 0 : index
    %641 = vector.load %arg2[%c24_426, %c0_427, %c0_428] : memref<42x8x52xf32, #tpu.memory_space<vmem>>, vector<1x8x52xf32>
    %642 = vector.shape_cast %641 : vector<1x8x52xf32> to vector<8x52xf32>
    %643 = vector.broadcast %640 : vector<1x52xf32> to vector<8x52xf32>
    %644 = arith.mulf %642, %643 : vector<8x52xf32>
    %645 = arith.addf %638, %644 : vector<8x52xf32>
    %c1_429 = arith.constant 1 : index
    %c25_430 = arith.constant 25 : index
    %c0_431 = arith.constant 0 : index
    %646 = vector.load %arg6[%c1_429, %c25_430, %c0_431] : memref<3x51x52xf32, #tpu.memory_space<vmem>>, vector<1x1x52xf32>
    %647 = vector.shape_cast %646 : vector<1x1x52xf32> to vector<1x52xf32>
    %c25_432 = arith.constant 25 : index
    %c0_433 = arith.constant 0 : index
    %c0_434 = arith.constant 0 : index
    %648 = vector.load %arg2[%c25_432, %c0_433, %c0_434] : memref<42x8x52xf32, #tpu.memory_space<vmem>>, vector<1x8x52xf32>
    %649 = vector.shape_cast %648 : vector<1x8x52xf32> to vector<8x52xf32>
    %650 = vector.broadcast %647 : vector<1x52xf32> to vector<8x52xf32>
    %651 = arith.mulf %649, %650 : vector<8x52xf32>
    %652 = arith.addf %645, %651 : vector<8x52xf32>
    %c1_435 = arith.constant 1 : index
    %c26_436 = arith.constant 26 : index
    %c0_437 = arith.constant 0 : index
    %653 = vector.load %arg6[%c1_435, %c26_436, %c0_437] : memref<3x51x52xf32, #tpu.memory_space<vmem>>, vector<1x1x52xf32>
    %654 = vector.shape_cast %653 : vector<1x1x52xf32> to vector<1x52xf32>
    %c26_438 = arith.constant 26 : index
    %c0_439 = arith.constant 0 : index
    %c0_440 = arith.constant 0 : index
    %655 = vector.load %arg2[%c26_438, %c0_439, %c0_440] : memref<42x8x52xf32, #tpu.memory_space<vmem>>, vector<1x8x52xf32>
    %656 = vector.shape_cast %655 : vector<1x8x52xf32> to vector<8x52xf32>
    %657 = vector.broadcast %654 : vector<1x52xf32> to vector<8x52xf32>
    %658 = arith.mulf %656, %657 : vector<8x52xf32>
    %659 = arith.addf %652, %658 : vector<8x52xf32>
    %c1_441 = arith.constant 1 : index
    %c27_442 = arith.constant 27 : index
    %c0_443 = arith.constant 0 : index
    %660 = vector.load %arg6[%c1_441, %c27_442, %c0_443] : memref<3x51x52xf32, #tpu.memory_space<vmem>>, vector<1x1x52xf32>
    %661 = vector.shape_cast %660 : vector<1x1x52xf32> to vector<1x52xf32>
    %c27_444 = arith.constant 27 : index
    %c0_445 = arith.constant 0 : index
    %c0_446 = arith.constant 0 : index
    %662 = vector.load %arg2[%c27_444, %c0_445, %c0_446] : memref<42x8x52xf32, #tpu.memory_space<vmem>>, vector<1x8x52xf32>
    %663 = vector.shape_cast %662 : vector<1x8x52xf32> to vector<8x52xf32>
    %664 = vector.broadcast %661 : vector<1x52xf32> to vector<8x52xf32>
    %665 = arith.mulf %663, %664 : vector<8x52xf32>
    %666 = arith.addf %659, %665 : vector<8x52xf32>
    %c2_447 = arith.constant 2 : index
    %c14_448 = arith.constant 14 : index
    %c0_449 = arith.constant 0 : index
    %667 = vector.load %arg6[%c2_447, %c14_448, %c0_449] : memref<3x51x52xf32, #tpu.memory_space<vmem>>, vector<1x1x52xf32>
    %668 = vector.shape_cast %667 : vector<1x1x52xf32> to vector<1x52xf32>
    %c28 = arith.constant 28 : index
    %c0_450 = arith.constant 0 : index
    %c0_451 = arith.constant 0 : index
    %669 = vector.load %arg2[%c28, %c0_450, %c0_451] : memref<42x8x52xf32, #tpu.memory_space<vmem>>, vector<1x8x52xf32>
    %670 = vector.shape_cast %669 : vector<1x8x52xf32> to vector<8x52xf32>
    %671 = vector.broadcast %668 : vector<1x52xf32> to vector<8x52xf32>
    %672 = arith.mulf %670, %671 : vector<8x52xf32>
    %c2_452 = arith.constant 2 : index
    %c15_453 = arith.constant 15 : index
    %c0_454 = arith.constant 0 : index
    %673 = vector.load %arg6[%c2_452, %c15_453, %c0_454] : memref<3x51x52xf32, #tpu.memory_space<vmem>>, vector<1x1x52xf32>
    %674 = vector.shape_cast %673 : vector<1x1x52xf32> to vector<1x52xf32>
    %c29_455 = arith.constant 29 : index
    %c0_456 = arith.constant 0 : index
    %c0_457 = arith.constant 0 : index
    %675 = vector.load %arg2[%c29_455, %c0_456, %c0_457] : memref<42x8x52xf32, #tpu.memory_space<vmem>>, vector<1x8x52xf32>
    %676 = vector.shape_cast %675 : vector<1x8x52xf32> to vector<8x52xf32>
    %677 = vector.broadcast %674 : vector<1x52xf32> to vector<8x52xf32>
    %678 = arith.mulf %676, %677 : vector<8x52xf32>
    %679 = arith.addf %672, %678 : vector<8x52xf32>
    %c2_458 = arith.constant 2 : index
    %c16_459 = arith.constant 16 : index
    %c0_460 = arith.constant 0 : index
    %680 = vector.load %arg6[%c2_458, %c16_459, %c0_460] : memref<3x51x52xf32, #tpu.memory_space<vmem>>, vector<1x1x52xf32>
    %681 = vector.shape_cast %680 : vector<1x1x52xf32> to vector<1x52xf32>
    %c30_461 = arith.constant 30 : index
    %c0_462 = arith.constant 0 : index
    %c0_463 = arith.constant 0 : index
    %682 = vector.load %arg2[%c30_461, %c0_462, %c0_463] : memref<42x8x52xf32, #tpu.memory_space<vmem>>, vector<1x8x52xf32>
    %683 = vector.shape_cast %682 : vector<1x8x52xf32> to vector<8x52xf32>
    %684 = vector.broadcast %681 : vector<1x52xf32> to vector<8x52xf32>
    %685 = arith.mulf %683, %684 : vector<8x52xf32>
    %686 = arith.addf %679, %685 : vector<8x52xf32>
    %c2_464 = arith.constant 2 : index
    %c17_465 = arith.constant 17 : index
    %c0_466 = arith.constant 0 : index
    %687 = vector.load %arg6[%c2_464, %c17_465, %c0_466] : memref<3x51x52xf32, #tpu.memory_space<vmem>>, vector<1x1x52xf32>
    %688 = vector.shape_cast %687 : vector<1x1x52xf32> to vector<1x52xf32>
    %c31_467 = arith.constant 31 : index
    %c0_468 = arith.constant 0 : index
    %c0_469 = arith.constant 0 : index
    %689 = vector.load %arg2[%c31_467, %c0_468, %c0_469] : memref<42x8x52xf32, #tpu.memory_space<vmem>>, vector<1x8x52xf32>
    %690 = vector.shape_cast %689 : vector<1x8x52xf32> to vector<8x52xf32>
    %691 = vector.broadcast %688 : vector<1x52xf32> to vector<8x52xf32>
    %692 = arith.mulf %690, %691 : vector<8x52xf32>
    %693 = arith.addf %686, %692 : vector<8x52xf32>
    %c2_470 = arith.constant 2 : index
    %c18_471 = arith.constant 18 : index
    %c0_472 = arith.constant 0 : index
    %694 = vector.load %arg6[%c2_470, %c18_471, %c0_472] : memref<3x51x52xf32, #tpu.memory_space<vmem>>, vector<1x1x52xf32>
    %695 = vector.shape_cast %694 : vector<1x1x52xf32> to vector<1x52xf32>
    %c32_473 = arith.constant 32 : index
    %c0_474 = arith.constant 0 : index
    %c0_475 = arith.constant 0 : index
    %696 = vector.load %arg2[%c32_473, %c0_474, %c0_475] : memref<42x8x52xf32, #tpu.memory_space<vmem>>, vector<1x8x52xf32>
    %697 = vector.shape_cast %696 : vector<1x8x52xf32> to vector<8x52xf32>
    %698 = vector.broadcast %695 : vector<1x52xf32> to vector<8x52xf32>
    %699 = arith.mulf %697, %698 : vector<8x52xf32>
    %700 = arith.addf %693, %699 : vector<8x52xf32>
    %c2_476 = arith.constant 2 : index
    %c19_477 = arith.constant 19 : index
    %c0_478 = arith.constant 0 : index
    %701 = vector.load %arg6[%c2_476, %c19_477, %c0_478] : memref<3x51x52xf32, #tpu.memory_space<vmem>>, vector<1x1x52xf32>
    %702 = vector.shape_cast %701 : vector<1x1x52xf32> to vector<1x52xf32>
    %c33_479 = arith.constant 33 : index
    %c0_480 = arith.constant 0 : index
    %c0_481 = arith.constant 0 : index
    %703 = vector.load %arg2[%c33_479, %c0_480, %c0_481] : memref<42x8x52xf32, #tpu.memory_space<vmem>>, vector<1x8x52xf32>
    %704 = vector.shape_cast %703 : vector<1x8x52xf32> to vector<8x52xf32>
    %705 = vector.broadcast %702 : vector<1x52xf32> to vector<8x52xf32>
    %706 = arith.mulf %704, %705 : vector<8x52xf32>
    %707 = arith.addf %700, %706 : vector<8x52xf32>
    %c2_482 = arith.constant 2 : index
    %c20_483 = arith.constant 20 : index
    %c0_484 = arith.constant 0 : index
    %708 = vector.load %arg6[%c2_482, %c20_483, %c0_484] : memref<3x51x52xf32, #tpu.memory_space<vmem>>, vector<1x1x52xf32>
    %709 = vector.shape_cast %708 : vector<1x1x52xf32> to vector<1x52xf32>
    %c34_485 = arith.constant 34 : index
    %c0_486 = arith.constant 0 : index
    %c0_487 = arith.constant 0 : index
    %710 = vector.load %arg2[%c34_485, %c0_486, %c0_487] : memref<42x8x52xf32, #tpu.memory_space<vmem>>, vector<1x8x52xf32>
    %711 = vector.shape_cast %710 : vector<1x8x52xf32> to vector<8x52xf32>
    %712 = vector.broadcast %709 : vector<1x52xf32> to vector<8x52xf32>
    %713 = arith.mulf %711, %712 : vector<8x52xf32>
    %714 = arith.addf %707, %713 : vector<8x52xf32>
    %c2_488 = arith.constant 2 : index
    %c21_489 = arith.constant 21 : index
    %c0_490 = arith.constant 0 : index
    %715 = vector.load %arg6[%c2_488, %c21_489, %c0_490] : memref<3x51x52xf32, #tpu.memory_space<vmem>>, vector<1x1x52xf32>
    %716 = vector.shape_cast %715 : vector<1x1x52xf32> to vector<1x52xf32>
    %c35_491 = arith.constant 35 : index
    %c0_492 = arith.constant 0 : index
    %c0_493 = arith.constant 0 : index
    %717 = vector.load %arg2[%c35_491, %c0_492, %c0_493] : memref<42x8x52xf32, #tpu.memory_space<vmem>>, vector<1x8x52xf32>
    %718 = vector.shape_cast %717 : vector<1x8x52xf32> to vector<8x52xf32>
    %719 = vector.broadcast %716 : vector<1x52xf32> to vector<8x52xf32>
    %720 = arith.mulf %718, %719 : vector<8x52xf32>
    %c2_494 = arith.constant 2 : index
    %c22_495 = arith.constant 22 : index
    %c0_496 = arith.constant 0 : index
    %721 = vector.load %arg6[%c2_494, %c22_495, %c0_496] : memref<3x51x52xf32, #tpu.memory_space<vmem>>, vector<1x1x52xf32>
    %722 = vector.shape_cast %721 : vector<1x1x52xf32> to vector<1x52xf32>
    %c36_497 = arith.constant 36 : index
    %c0_498 = arith.constant 0 : index
    %c0_499 = arith.constant 0 : index
    %723 = vector.load %arg2[%c36_497, %c0_498, %c0_499] : memref<42x8x52xf32, #tpu.memory_space<vmem>>, vector<1x8x52xf32>
    %724 = vector.shape_cast %723 : vector<1x8x52xf32> to vector<8x52xf32>
    %725 = vector.broadcast %722 : vector<1x52xf32> to vector<8x52xf32>
    %726 = arith.mulf %724, %725 : vector<8x52xf32>
    %727 = arith.addf %720, %726 : vector<8x52xf32>
    %c2_500 = arith.constant 2 : index
    %c23_501 = arith.constant 23 : index
    %c0_502 = arith.constant 0 : index
    %728 = vector.load %arg6[%c2_500, %c23_501, %c0_502] : memref<3x51x52xf32, #tpu.memory_space<vmem>>, vector<1x1x52xf32>
    %729 = vector.shape_cast %728 : vector<1x1x52xf32> to vector<1x52xf32>
    %c37_503 = arith.constant 37 : index
    %c0_504 = arith.constant 0 : index
    %c0_505 = arith.constant 0 : index
    %730 = vector.load %arg2[%c37_503, %c0_504, %c0_505] : memref<42x8x52xf32, #tpu.memory_space<vmem>>, vector<1x8x52xf32>
    %731 = vector.shape_cast %730 : vector<1x8x52xf32> to vector<8x52xf32>
    %732 = vector.broadcast %729 : vector<1x52xf32> to vector<8x52xf32>
    %733 = arith.mulf %731, %732 : vector<8x52xf32>
    %734 = arith.addf %727, %733 : vector<8x52xf32>
    %c2_506 = arith.constant 2 : index
    %c24_507 = arith.constant 24 : index
    %c0_508 = arith.constant 0 : index
    %735 = vector.load %arg6[%c2_506, %c24_507, %c0_508] : memref<3x51x52xf32, #tpu.memory_space<vmem>>, vector<1x1x52xf32>
    %736 = vector.shape_cast %735 : vector<1x1x52xf32> to vector<1x52xf32>
    %c38_509 = arith.constant 38 : index
    %c0_510 = arith.constant 0 : index
    %c0_511 = arith.constant 0 : index
    %737 = vector.load %arg2[%c38_509, %c0_510, %c0_511] : memref<42x8x52xf32, #tpu.memory_space<vmem>>, vector<1x8x52xf32>
    %738 = vector.shape_cast %737 : vector<1x8x52xf32> to vector<8x52xf32>
    %739 = vector.broadcast %736 : vector<1x52xf32> to vector<8x52xf32>
    %740 = arith.mulf %738, %739 : vector<8x52xf32>
    %741 = arith.addf %734, %740 : vector<8x52xf32>
    %c2_512 = arith.constant 2 : index
    %c25_513 = arith.constant 25 : index
    %c0_514 = arith.constant 0 : index
    %742 = vector.load %arg6[%c2_512, %c25_513, %c0_514] : memref<3x51x52xf32, #tpu.memory_space<vmem>>, vector<1x1x52xf32>
    %743 = vector.shape_cast %742 : vector<1x1x52xf32> to vector<1x52xf32>
    %c39_515 = arith.constant 39 : index
    %c0_516 = arith.constant 0 : index
    %c0_517 = arith.constant 0 : index
    %744 = vector.load %arg2[%c39_515, %c0_516, %c0_517] : memref<42x8x52xf32, #tpu.memory_space<vmem>>, vector<1x8x52xf32>
    %745 = vector.shape_cast %744 : vector<1x8x52xf32> to vector<8x52xf32>
    %746 = vector.broadcast %743 : vector<1x52xf32> to vector<8x52xf32>
    %747 = arith.mulf %745, %746 : vector<8x52xf32>
    %748 = arith.addf %741, %747 : vector<8x52xf32>
    %c2_518 = arith.constant 2 : index
    %c26_519 = arith.constant 26 : index
    %c0_520 = arith.constant 0 : index
    %749 = vector.load %arg6[%c2_518, %c26_519, %c0_520] : memref<3x51x52xf32, #tpu.memory_space<vmem>>, vector<1x1x52xf32>
    %750 = vector.shape_cast %749 : vector<1x1x52xf32> to vector<1x52xf32>
    %c40_521 = arith.constant 40 : index
    %c0_522 = arith.constant 0 : index
    %c0_523 = arith.constant 0 : index
    %751 = vector.load %arg2[%c40_521, %c0_522, %c0_523] : memref<42x8x52xf32, #tpu.memory_space<vmem>>, vector<1x8x52xf32>
    %752 = vector.shape_cast %751 : vector<1x8x52xf32> to vector<8x52xf32>
    %753 = vector.broadcast %750 : vector<1x52xf32> to vector<8x52xf32>
    %754 = arith.mulf %752, %753 : vector<8x52xf32>
    %755 = arith.addf %748, %754 : vector<8x52xf32>
    %c2_524 = arith.constant 2 : index
    %c27_525 = arith.constant 27 : index
    %c0_526 = arith.constant 0 : index
    %756 = vector.load %arg6[%c2_524, %c27_525, %c0_526] : memref<3x51x52xf32, #tpu.memory_space<vmem>>, vector<1x1x52xf32>
    %757 = vector.shape_cast %756 : vector<1x1x52xf32> to vector<1x52xf32>
    %c41_527 = arith.constant 41 : index
    %c0_528 = arith.constant 0 : index
    %c0_529 = arith.constant 0 : index
    %758 = vector.load %arg2[%c41_527, %c0_528, %c0_529] : memref<42x8x52xf32, #tpu.memory_space<vmem>>, vector<1x8x52xf32>
    %759 = vector.shape_cast %758 : vector<1x8x52xf32> to vector<8x52xf32>
    %760 = vector.broadcast %757 : vector<1x52xf32> to vector<8x52xf32>
    %761 = arith.mulf %759, %760 : vector<8x52xf32>
    %762 = arith.addf %755, %761 : vector<8x52xf32>
    %763 = arith.addf %522, %570 : vector<8x52xf32>
    %764 = arith.addf %618, %666 : vector<8x52xf32>
    %765 = arith.addf %714, %762 : vector<8x52xf32>
    %766 = arith.addf %763, %764 : vector<8x52xf32>
    %767 = arith.addf %766, %765 : vector<8x52xf32>
    %768 = vector.extract_strided_slice %767 {offsets = [0, 0], sizes = [8, 13], strides = [1, 1]} : vector<8x52xf32> to vector<8x13xf32>
    %cst_530 = arith.constant dense<0.000000e+00> : vector<8xf32>
    %769 = vector.multi_reduction <add>, %768, %cst_530 [1] : vector<8x13xf32> to vector<8xf32>
    %770 = vector.shape_cast %769 : vector<8xf32> to vector<8x1xf32>
    %771 = vector.extract_strided_slice %767 {offsets = [0, 14], sizes = [8, 14], strides = [1, 1]} : vector<8x52xf32> to vector<8x14xf32>
    %cst_531 = arith.constant dense<0.000000e+00> : vector<8xf32>
    %772 = vector.multi_reduction <add>, %771, %cst_531 [1] : vector<8x14xf32> to vector<8xf32>
    %773 = vector.shape_cast %772 : vector<8xf32> to vector<8x1xf32>
    %774 = vector.extract_strided_slice %767 {offsets = [0, 29], sizes = [8, 14], strides = [1, 1]} : vector<8x52xf32> to vector<8x14xf32>
    %cst_532 = arith.constant dense<0.000000e+00> : vector<8xf32>
    %775 = vector.multi_reduction <add>, %774, %cst_532 [1] : vector<8x14xf32> to vector<8xf32>
    %776 = vector.shape_cast %775 : vector<8xf32> to vector<8x1xf32>
    %c0_533 = arith.constant 0 : index
    %c29_534 = arith.constant 29 : index
    %c0_535 = arith.constant 0 : index
    %777 = vector.load %arg6[%c0_533, %c29_534, %c0_535] : memref<3x51x52xf32, #tpu.memory_space<vmem>>, vector<1x1x52xf32>
    %778 = vector.shape_cast %777 : vector<1x1x52xf32> to vector<1x52xf32>
    %c0_536 = arith.constant 0 : index
    %c0_537 = arith.constant 0 : index
    %c0_538 = arith.constant 0 : index
    %779 = vector.load %arg2[%c0_536, %c0_537, %c0_538] : memref<42x8x52xf32, #tpu.memory_space<vmem>>, vector<1x8x52xf32>
    %780 = vector.shape_cast %779 : vector<1x8x52xf32> to vector<8x52xf32>
    %781 = vector.broadcast %778 : vector<1x52xf32> to vector<8x52xf32>
    %782 = arith.mulf %780, %781 : vector<8x52xf32>
    %c0_539 = arith.constant 0 : index
    %c30_540 = arith.constant 30 : index
    %c0_541 = arith.constant 0 : index
    %783 = vector.load %arg6[%c0_539, %c30_540, %c0_541] : memref<3x51x52xf32, #tpu.memory_space<vmem>>, vector<1x1x52xf32>
    %784 = vector.shape_cast %783 : vector<1x1x52xf32> to vector<1x52xf32>
    %c1_542 = arith.constant 1 : index
    %c0_543 = arith.constant 0 : index
    %c0_544 = arith.constant 0 : index
    %785 = vector.load %arg2[%c1_542, %c0_543, %c0_544] : memref<42x8x52xf32, #tpu.memory_space<vmem>>, vector<1x8x52xf32>
    %786 = vector.shape_cast %785 : vector<1x8x52xf32> to vector<8x52xf32>
    %787 = vector.broadcast %784 : vector<1x52xf32> to vector<8x52xf32>
    %788 = arith.mulf %786, %787 : vector<8x52xf32>
    %789 = arith.addf %782, %788 : vector<8x52xf32>
    %c0_545 = arith.constant 0 : index
    %c31_546 = arith.constant 31 : index
    %c0_547 = arith.constant 0 : index
    %790 = vector.load %arg6[%c0_545, %c31_546, %c0_547] : memref<3x51x52xf32, #tpu.memory_space<vmem>>, vector<1x1x52xf32>
    %791 = vector.shape_cast %790 : vector<1x1x52xf32> to vector<1x52xf32>
    %c2_548 = arith.constant 2 : index
    %c0_549 = arith.constant 0 : index
    %c0_550 = arith.constant 0 : index
    %792 = vector.load %arg2[%c2_548, %c0_549, %c0_550] : memref<42x8x52xf32, #tpu.memory_space<vmem>>, vector<1x8x52xf32>
    %793 = vector.shape_cast %792 : vector<1x8x52xf32> to vector<8x52xf32>
    %794 = vector.broadcast %791 : vector<1x52xf32> to vector<8x52xf32>
    %795 = arith.mulf %793, %794 : vector<8x52xf32>
    %796 = arith.addf %789, %795 : vector<8x52xf32>
    %c0_551 = arith.constant 0 : index
    %c32_552 = arith.constant 32 : index
    %c0_553 = arith.constant 0 : index
    %797 = vector.load %arg6[%c0_551, %c32_552, %c0_553] : memref<3x51x52xf32, #tpu.memory_space<vmem>>, vector<1x1x52xf32>
    %798 = vector.shape_cast %797 : vector<1x1x52xf32> to vector<1x52xf32>
    %c3_554 = arith.constant 3 : index
    %c0_555 = arith.constant 0 : index
    %c0_556 = arith.constant 0 : index
    %799 = vector.load %arg2[%c3_554, %c0_555, %c0_556] : memref<42x8x52xf32, #tpu.memory_space<vmem>>, vector<1x8x52xf32>
    %800 = vector.shape_cast %799 : vector<1x8x52xf32> to vector<8x52xf32>
    %801 = vector.broadcast %798 : vector<1x52xf32> to vector<8x52xf32>
    %802 = arith.mulf %800, %801 : vector<8x52xf32>
    %803 = arith.addf %796, %802 : vector<8x52xf32>
    %c0_557 = arith.constant 0 : index
    %c33_558 = arith.constant 33 : index
    %c0_559 = arith.constant 0 : index
    %804 = vector.load %arg6[%c0_557, %c33_558, %c0_559] : memref<3x51x52xf32, #tpu.memory_space<vmem>>, vector<1x1x52xf32>
    %805 = vector.shape_cast %804 : vector<1x1x52xf32> to vector<1x52xf32>
    %c4_560 = arith.constant 4 : index
    %c0_561 = arith.constant 0 : index
    %c0_562 = arith.constant 0 : index
    %806 = vector.load %arg2[%c4_560, %c0_561, %c0_562] : memref<42x8x52xf32, #tpu.memory_space<vmem>>, vector<1x8x52xf32>
    %807 = vector.shape_cast %806 : vector<1x8x52xf32> to vector<8x52xf32>
    %808 = vector.broadcast %805 : vector<1x52xf32> to vector<8x52xf32>
    %809 = arith.mulf %807, %808 : vector<8x52xf32>
    %810 = arith.addf %803, %809 : vector<8x52xf32>
    %c0_563 = arith.constant 0 : index
    %c34_564 = arith.constant 34 : index
    %c0_565 = arith.constant 0 : index
    %811 = vector.load %arg6[%c0_563, %c34_564, %c0_565] : memref<3x51x52xf32, #tpu.memory_space<vmem>>, vector<1x1x52xf32>
    %812 = vector.shape_cast %811 : vector<1x1x52xf32> to vector<1x52xf32>
    %c5_566 = arith.constant 5 : index
    %c0_567 = arith.constant 0 : index
    %c0_568 = arith.constant 0 : index
    %813 = vector.load %arg2[%c5_566, %c0_567, %c0_568] : memref<42x8x52xf32, #tpu.memory_space<vmem>>, vector<1x8x52xf32>
    %814 = vector.shape_cast %813 : vector<1x8x52xf32> to vector<8x52xf32>
    %815 = vector.broadcast %812 : vector<1x52xf32> to vector<8x52xf32>
    %816 = arith.mulf %814, %815 : vector<8x52xf32>
    %817 = arith.addf %810, %816 : vector<8x52xf32>
    %c0_569 = arith.constant 0 : index
    %c35_570 = arith.constant 35 : index
    %c0_571 = arith.constant 0 : index
    %818 = vector.load %arg6[%c0_569, %c35_570, %c0_571] : memref<3x51x52xf32, #tpu.memory_space<vmem>>, vector<1x1x52xf32>
    %819 = vector.shape_cast %818 : vector<1x1x52xf32> to vector<1x52xf32>
    %c6_572 = arith.constant 6 : index
    %c0_573 = arith.constant 0 : index
    %c0_574 = arith.constant 0 : index
    %820 = vector.load %arg2[%c6_572, %c0_573, %c0_574] : memref<42x8x52xf32, #tpu.memory_space<vmem>>, vector<1x8x52xf32>
    %821 = vector.shape_cast %820 : vector<1x8x52xf32> to vector<8x52xf32>
    %822 = vector.broadcast %819 : vector<1x52xf32> to vector<8x52xf32>
    %823 = arith.mulf %821, %822 : vector<8x52xf32>
    %824 = arith.addf %817, %823 : vector<8x52xf32>
    %c0_575 = arith.constant 0 : index
    %c36_576 = arith.constant 36 : index
    %c0_577 = arith.constant 0 : index
    %825 = vector.load %arg6[%c0_575, %c36_576, %c0_577] : memref<3x51x52xf32, #tpu.memory_space<vmem>>, vector<1x1x52xf32>
    %826 = vector.shape_cast %825 : vector<1x1x52xf32> to vector<1x52xf32>
    %c7_578 = arith.constant 7 : index
    %c0_579 = arith.constant 0 : index
    %c0_580 = arith.constant 0 : index
    %827 = vector.load %arg2[%c7_578, %c0_579, %c0_580] : memref<42x8x52xf32, #tpu.memory_space<vmem>>, vector<1x8x52xf32>
    %828 = vector.shape_cast %827 : vector<1x8x52xf32> to vector<8x52xf32>
    %829 = vector.broadcast %826 : vector<1x52xf32> to vector<8x52xf32>
    %830 = arith.mulf %828, %829 : vector<8x52xf32>
    %c0_581 = arith.constant 0 : index
    %c37_582 = arith.constant 37 : index
    %c0_583 = arith.constant 0 : index
    %831 = vector.load %arg6[%c0_581, %c37_582, %c0_583] : memref<3x51x52xf32, #tpu.memory_space<vmem>>, vector<1x1x52xf32>
    %832 = vector.shape_cast %831 : vector<1x1x52xf32> to vector<1x52xf32>
    %c8_584 = arith.constant 8 : index
    %c0_585 = arith.constant 0 : index
    %c0_586 = arith.constant 0 : index
    %833 = vector.load %arg2[%c8_584, %c0_585, %c0_586] : memref<42x8x52xf32, #tpu.memory_space<vmem>>, vector<1x8x52xf32>
    %834 = vector.shape_cast %833 : vector<1x8x52xf32> to vector<8x52xf32>
    %835 = vector.broadcast %832 : vector<1x52xf32> to vector<8x52xf32>
    %836 = arith.mulf %834, %835 : vector<8x52xf32>
    %837 = arith.addf %830, %836 : vector<8x52xf32>
    %c0_587 = arith.constant 0 : index
    %c38_588 = arith.constant 38 : index
    %c0_589 = arith.constant 0 : index
    %838 = vector.load %arg6[%c0_587, %c38_588, %c0_589] : memref<3x51x52xf32, #tpu.memory_space<vmem>>, vector<1x1x52xf32>
    %839 = vector.shape_cast %838 : vector<1x1x52xf32> to vector<1x52xf32>
    %c9_590 = arith.constant 9 : index
    %c0_591 = arith.constant 0 : index
    %c0_592 = arith.constant 0 : index
    %840 = vector.load %arg2[%c9_590, %c0_591, %c0_592] : memref<42x8x52xf32, #tpu.memory_space<vmem>>, vector<1x8x52xf32>
    %841 = vector.shape_cast %840 : vector<1x8x52xf32> to vector<8x52xf32>
    %842 = vector.broadcast %839 : vector<1x52xf32> to vector<8x52xf32>
    %843 = arith.mulf %841, %842 : vector<8x52xf32>
    %844 = arith.addf %837, %843 : vector<8x52xf32>
    %c0_593 = arith.constant 0 : index
    %c39_594 = arith.constant 39 : index
    %c0_595 = arith.constant 0 : index
    %845 = vector.load %arg6[%c0_593, %c39_594, %c0_595] : memref<3x51x52xf32, #tpu.memory_space<vmem>>, vector<1x1x52xf32>
    %846 = vector.shape_cast %845 : vector<1x1x52xf32> to vector<1x52xf32>
    %c10_596 = arith.constant 10 : index
    %c0_597 = arith.constant 0 : index
    %c0_598 = arith.constant 0 : index
    %847 = vector.load %arg2[%c10_596, %c0_597, %c0_598] : memref<42x8x52xf32, #tpu.memory_space<vmem>>, vector<1x8x52xf32>
    %848 = vector.shape_cast %847 : vector<1x8x52xf32> to vector<8x52xf32>
    %849 = vector.broadcast %846 : vector<1x52xf32> to vector<8x52xf32>
    %850 = arith.mulf %848, %849 : vector<8x52xf32>
    %851 = arith.addf %844, %850 : vector<8x52xf32>
    %c0_599 = arith.constant 0 : index
    %c40_600 = arith.constant 40 : index
    %c0_601 = arith.constant 0 : index
    %852 = vector.load %arg6[%c0_599, %c40_600, %c0_601] : memref<3x51x52xf32, #tpu.memory_space<vmem>>, vector<1x1x52xf32>
    %853 = vector.shape_cast %852 : vector<1x1x52xf32> to vector<1x52xf32>
    %c11_602 = arith.constant 11 : index
    %c0_603 = arith.constant 0 : index
    %c0_604 = arith.constant 0 : index
    %854 = vector.load %arg2[%c11_602, %c0_603, %c0_604] : memref<42x8x52xf32, #tpu.memory_space<vmem>>, vector<1x8x52xf32>
    %855 = vector.shape_cast %854 : vector<1x8x52xf32> to vector<8x52xf32>
    %856 = vector.broadcast %853 : vector<1x52xf32> to vector<8x52xf32>
    %857 = arith.mulf %855, %856 : vector<8x52xf32>
    %858 = arith.addf %851, %857 : vector<8x52xf32>
    %c0_605 = arith.constant 0 : index
    %c41_606 = arith.constant 41 : index
    %c0_607 = arith.constant 0 : index
    %859 = vector.load %arg6[%c0_605, %c41_606, %c0_607] : memref<3x51x52xf32, #tpu.memory_space<vmem>>, vector<1x1x52xf32>
    %860 = vector.shape_cast %859 : vector<1x1x52xf32> to vector<1x52xf32>
    %c12_608 = arith.constant 12 : index
    %c0_609 = arith.constant 0 : index
    %c0_610 = arith.constant 0 : index
    %861 = vector.load %arg2[%c12_608, %c0_609, %c0_610] : memref<42x8x52xf32, #tpu.memory_space<vmem>>, vector<1x8x52xf32>
    %862 = vector.shape_cast %861 : vector<1x8x52xf32> to vector<8x52xf32>
    %863 = vector.broadcast %860 : vector<1x52xf32> to vector<8x52xf32>
    %864 = arith.mulf %862, %863 : vector<8x52xf32>
    %865 = arith.addf %858, %864 : vector<8x52xf32>
    %c0_611 = arith.constant 0 : index
    %c42 = arith.constant 42 : index
    %c0_612 = arith.constant 0 : index
    %866 = vector.load %arg6[%c0_611, %c42, %c0_612] : memref<3x51x52xf32, #tpu.memory_space<vmem>>, vector<1x1x52xf32>
    %867 = vector.shape_cast %866 : vector<1x1x52xf32> to vector<1x52xf32>
    %c13_613 = arith.constant 13 : index
    %c0_614 = arith.constant 0 : index
    %c0_615 = arith.constant 0 : index
    %868 = vector.load %arg2[%c13_613, %c0_614, %c0_615] : memref<42x8x52xf32, #tpu.memory_space<vmem>>, vector<1x8x52xf32>
    %869 = vector.shape_cast %868 : vector<1x8x52xf32> to vector<8x52xf32>
    %870 = vector.broadcast %867 : vector<1x52xf32> to vector<8x52xf32>
    %871 = arith.mulf %869, %870 : vector<8x52xf32>
    %872 = arith.addf %865, %871 : vector<8x52xf32>
    %c1_616 = arith.constant 1 : index
    %c29_617 = arith.constant 29 : index
    %c0_618 = arith.constant 0 : index
    %873 = vector.load %arg6[%c1_616, %c29_617, %c0_618] : memref<3x51x52xf32, #tpu.memory_space<vmem>>, vector<1x1x52xf32>
    %874 = vector.shape_cast %873 : vector<1x1x52xf32> to vector<1x52xf32>
    %c14_619 = arith.constant 14 : index
    %c0_620 = arith.constant 0 : index
    %c0_621 = arith.constant 0 : index
    %875 = vector.load %arg2[%c14_619, %c0_620, %c0_621] : memref<42x8x52xf32, #tpu.memory_space<vmem>>, vector<1x8x52xf32>
    %876 = vector.shape_cast %875 : vector<1x8x52xf32> to vector<8x52xf32>
    %877 = vector.broadcast %874 : vector<1x52xf32> to vector<8x52xf32>
    %878 = arith.mulf %876, %877 : vector<8x52xf32>
    %c1_622 = arith.constant 1 : index
    %c30_623 = arith.constant 30 : index
    %c0_624 = arith.constant 0 : index
    %879 = vector.load %arg6[%c1_622, %c30_623, %c0_624] : memref<3x51x52xf32, #tpu.memory_space<vmem>>, vector<1x1x52xf32>
    %880 = vector.shape_cast %879 : vector<1x1x52xf32> to vector<1x52xf32>
    %c15_625 = arith.constant 15 : index
    %c0_626 = arith.constant 0 : index
    %c0_627 = arith.constant 0 : index
    %881 = vector.load %arg2[%c15_625, %c0_626, %c0_627] : memref<42x8x52xf32, #tpu.memory_space<vmem>>, vector<1x8x52xf32>
    %882 = vector.shape_cast %881 : vector<1x8x52xf32> to vector<8x52xf32>
    %883 = vector.broadcast %880 : vector<1x52xf32> to vector<8x52xf32>
    %884 = arith.mulf %882, %883 : vector<8x52xf32>
    %885 = arith.addf %878, %884 : vector<8x52xf32>
    %c1_628 = arith.constant 1 : index
    %c31_629 = arith.constant 31 : index
    %c0_630 = arith.constant 0 : index
    %886 = vector.load %arg6[%c1_628, %c31_629, %c0_630] : memref<3x51x52xf32, #tpu.memory_space<vmem>>, vector<1x1x52xf32>
    %887 = vector.shape_cast %886 : vector<1x1x52xf32> to vector<1x52xf32>
    %c16_631 = arith.constant 16 : index
    %c0_632 = arith.constant 0 : index
    %c0_633 = arith.constant 0 : index
    %888 = vector.load %arg2[%c16_631, %c0_632, %c0_633] : memref<42x8x52xf32, #tpu.memory_space<vmem>>, vector<1x8x52xf32>
    %889 = vector.shape_cast %888 : vector<1x8x52xf32> to vector<8x52xf32>
    %890 = vector.broadcast %887 : vector<1x52xf32> to vector<8x52xf32>
    %891 = arith.mulf %889, %890 : vector<8x52xf32>
    %892 = arith.addf %885, %891 : vector<8x52xf32>
    %c1_634 = arith.constant 1 : index
    %c32_635 = arith.constant 32 : index
    %c0_636 = arith.constant 0 : index
    %893 = vector.load %arg6[%c1_634, %c32_635, %c0_636] : memref<3x51x52xf32, #tpu.memory_space<vmem>>, vector<1x1x52xf32>
    %894 = vector.shape_cast %893 : vector<1x1x52xf32> to vector<1x52xf32>
    %c17_637 = arith.constant 17 : index
    %c0_638 = arith.constant 0 : index
    %c0_639 = arith.constant 0 : index
    %895 = vector.load %arg2[%c17_637, %c0_638, %c0_639] : memref<42x8x52xf32, #tpu.memory_space<vmem>>, vector<1x8x52xf32>
    %896 = vector.shape_cast %895 : vector<1x8x52xf32> to vector<8x52xf32>
    %897 = vector.broadcast %894 : vector<1x52xf32> to vector<8x52xf32>
    %898 = arith.mulf %896, %897 : vector<8x52xf32>
    %899 = arith.addf %892, %898 : vector<8x52xf32>
    %c1_640 = arith.constant 1 : index
    %c33_641 = arith.constant 33 : index
    %c0_642 = arith.constant 0 : index
    %900 = vector.load %arg6[%c1_640, %c33_641, %c0_642] : memref<3x51x52xf32, #tpu.memory_space<vmem>>, vector<1x1x52xf32>
    %901 = vector.shape_cast %900 : vector<1x1x52xf32> to vector<1x52xf32>
    %c18_643 = arith.constant 18 : index
    %c0_644 = arith.constant 0 : index
    %c0_645 = arith.constant 0 : index
    %902 = vector.load %arg2[%c18_643, %c0_644, %c0_645] : memref<42x8x52xf32, #tpu.memory_space<vmem>>, vector<1x8x52xf32>
    %903 = vector.shape_cast %902 : vector<1x8x52xf32> to vector<8x52xf32>
    %904 = vector.broadcast %901 : vector<1x52xf32> to vector<8x52xf32>
    %905 = arith.mulf %903, %904 : vector<8x52xf32>
    %906 = arith.addf %899, %905 : vector<8x52xf32>
    %c1_646 = arith.constant 1 : index
    %c34_647 = arith.constant 34 : index
    %c0_648 = arith.constant 0 : index
    %907 = vector.load %arg6[%c1_646, %c34_647, %c0_648] : memref<3x51x52xf32, #tpu.memory_space<vmem>>, vector<1x1x52xf32>
    %908 = vector.shape_cast %907 : vector<1x1x52xf32> to vector<1x52xf32>
    %c19_649 = arith.constant 19 : index
    %c0_650 = arith.constant 0 : index
    %c0_651 = arith.constant 0 : index
    %909 = vector.load %arg2[%c19_649, %c0_650, %c0_651] : memref<42x8x52xf32, #tpu.memory_space<vmem>>, vector<1x8x52xf32>
    %910 = vector.shape_cast %909 : vector<1x8x52xf32> to vector<8x52xf32>
    %911 = vector.broadcast %908 : vector<1x52xf32> to vector<8x52xf32>
    %912 = arith.mulf %910, %911 : vector<8x52xf32>
    %913 = arith.addf %906, %912 : vector<8x52xf32>
    %c1_652 = arith.constant 1 : index
    %c35_653 = arith.constant 35 : index
    %c0_654 = arith.constant 0 : index
    %914 = vector.load %arg6[%c1_652, %c35_653, %c0_654] : memref<3x51x52xf32, #tpu.memory_space<vmem>>, vector<1x1x52xf32>
    %915 = vector.shape_cast %914 : vector<1x1x52xf32> to vector<1x52xf32>
    %c20_655 = arith.constant 20 : index
    %c0_656 = arith.constant 0 : index
    %c0_657 = arith.constant 0 : index
    %916 = vector.load %arg2[%c20_655, %c0_656, %c0_657] : memref<42x8x52xf32, #tpu.memory_space<vmem>>, vector<1x8x52xf32>
    %917 = vector.shape_cast %916 : vector<1x8x52xf32> to vector<8x52xf32>
    %918 = vector.broadcast %915 : vector<1x52xf32> to vector<8x52xf32>
    %919 = arith.mulf %917, %918 : vector<8x52xf32>
    %920 = arith.addf %913, %919 : vector<8x52xf32>
    %c1_658 = arith.constant 1 : index
    %c36_659 = arith.constant 36 : index
    %c0_660 = arith.constant 0 : index
    %921 = vector.load %arg6[%c1_658, %c36_659, %c0_660] : memref<3x51x52xf32, #tpu.memory_space<vmem>>, vector<1x1x52xf32>
    %922 = vector.shape_cast %921 : vector<1x1x52xf32> to vector<1x52xf32>
    %c21_661 = arith.constant 21 : index
    %c0_662 = arith.constant 0 : index
    %c0_663 = arith.constant 0 : index
    %923 = vector.load %arg2[%c21_661, %c0_662, %c0_663] : memref<42x8x52xf32, #tpu.memory_space<vmem>>, vector<1x8x52xf32>
    %924 = vector.shape_cast %923 : vector<1x8x52xf32> to vector<8x52xf32>
    %925 = vector.broadcast %922 : vector<1x52xf32> to vector<8x52xf32>
    %926 = arith.mulf %924, %925 : vector<8x52xf32>
    %c1_664 = arith.constant 1 : index
    %c37_665 = arith.constant 37 : index
    %c0_666 = arith.constant 0 : index
    %927 = vector.load %arg6[%c1_664, %c37_665, %c0_666] : memref<3x51x52xf32, #tpu.memory_space<vmem>>, vector<1x1x52xf32>
    %928 = vector.shape_cast %927 : vector<1x1x52xf32> to vector<1x52xf32>
    %c22_667 = arith.constant 22 : index
    %c0_668 = arith.constant 0 : index
    %c0_669 = arith.constant 0 : index
    %929 = vector.load %arg2[%c22_667, %c0_668, %c0_669] : memref<42x8x52xf32, #tpu.memory_space<vmem>>, vector<1x8x52xf32>
    %930 = vector.shape_cast %929 : vector<1x8x52xf32> to vector<8x52xf32>
    %931 = vector.broadcast %928 : vector<1x52xf32> to vector<8x52xf32>
    %932 = arith.mulf %930, %931 : vector<8x52xf32>
    %933 = arith.addf %926, %932 : vector<8x52xf32>
    %c1_670 = arith.constant 1 : index
    %c38_671 = arith.constant 38 : index
    %c0_672 = arith.constant 0 : index
    %934 = vector.load %arg6[%c1_670, %c38_671, %c0_672] : memref<3x51x52xf32, #tpu.memory_space<vmem>>, vector<1x1x52xf32>
    %935 = vector.shape_cast %934 : vector<1x1x52xf32> to vector<1x52xf32>
    %c23_673 = arith.constant 23 : index
    %c0_674 = arith.constant 0 : index
    %c0_675 = arith.constant 0 : index
    %936 = vector.load %arg2[%c23_673, %c0_674, %c0_675] : memref<42x8x52xf32, #tpu.memory_space<vmem>>, vector<1x8x52xf32>
    %937 = vector.shape_cast %936 : vector<1x8x52xf32> to vector<8x52xf32>
    %938 = vector.broadcast %935 : vector<1x52xf32> to vector<8x52xf32>
    %939 = arith.mulf %937, %938 : vector<8x52xf32>
    %940 = arith.addf %933, %939 : vector<8x52xf32>
    %c1_676 = arith.constant 1 : index
    %c39_677 = arith.constant 39 : index
    %c0_678 = arith.constant 0 : index
    %941 = vector.load %arg6[%c1_676, %c39_677, %c0_678] : memref<3x51x52xf32, #tpu.memory_space<vmem>>, vector<1x1x52xf32>
    %942 = vector.shape_cast %941 : vector<1x1x52xf32> to vector<1x52xf32>
    %c24_679 = arith.constant 24 : index
    %c0_680 = arith.constant 0 : index
    %c0_681 = arith.constant 0 : index
    %943 = vector.load %arg2[%c24_679, %c0_680, %c0_681] : memref<42x8x52xf32, #tpu.memory_space<vmem>>, vector<1x8x52xf32>
    %944 = vector.shape_cast %943 : vector<1x8x52xf32> to vector<8x52xf32>
    %945 = vector.broadcast %942 : vector<1x52xf32> to vector<8x52xf32>
    %946 = arith.mulf %944, %945 : vector<8x52xf32>
    %947 = arith.addf %940, %946 : vector<8x52xf32>
    %c1_682 = arith.constant 1 : index
    %c40_683 = arith.constant 40 : index
    %c0_684 = arith.constant 0 : index
    %948 = vector.load %arg6[%c1_682, %c40_683, %c0_684] : memref<3x51x52xf32, #tpu.memory_space<vmem>>, vector<1x1x52xf32>
    %949 = vector.shape_cast %948 : vector<1x1x52xf32> to vector<1x52xf32>
    %c25_685 = arith.constant 25 : index
    %c0_686 = arith.constant 0 : index
    %c0_687 = arith.constant 0 : index
    %950 = vector.load %arg2[%c25_685, %c0_686, %c0_687] : memref<42x8x52xf32, #tpu.memory_space<vmem>>, vector<1x8x52xf32>
    %951 = vector.shape_cast %950 : vector<1x8x52xf32> to vector<8x52xf32>
    %952 = vector.broadcast %949 : vector<1x52xf32> to vector<8x52xf32>
    %953 = arith.mulf %951, %952 : vector<8x52xf32>
    %954 = arith.addf %947, %953 : vector<8x52xf32>
    %c1_688 = arith.constant 1 : index
    %c41_689 = arith.constant 41 : index
    %c0_690 = arith.constant 0 : index
    %955 = vector.load %arg6[%c1_688, %c41_689, %c0_690] : memref<3x51x52xf32, #tpu.memory_space<vmem>>, vector<1x1x52xf32>
    %956 = vector.shape_cast %955 : vector<1x1x52xf32> to vector<1x52xf32>
    %c26_691 = arith.constant 26 : index
    %c0_692 = arith.constant 0 : index
    %c0_693 = arith.constant 0 : index
    %957 = vector.load %arg2[%c26_691, %c0_692, %c0_693] : memref<42x8x52xf32, #tpu.memory_space<vmem>>, vector<1x8x52xf32>
    %958 = vector.shape_cast %957 : vector<1x8x52xf32> to vector<8x52xf32>
    %959 = vector.broadcast %956 : vector<1x52xf32> to vector<8x52xf32>
    %960 = arith.mulf %958, %959 : vector<8x52xf32>
    %961 = arith.addf %954, %960 : vector<8x52xf32>
    %c1_694 = arith.constant 1 : index
    %c42_695 = arith.constant 42 : index
    %c0_696 = arith.constant 0 : index
    %962 = vector.load %arg6[%c1_694, %c42_695, %c0_696] : memref<3x51x52xf32, #tpu.memory_space<vmem>>, vector<1x1x52xf32>
    %963 = vector.shape_cast %962 : vector<1x1x52xf32> to vector<1x52xf32>
    %c27_697 = arith.constant 27 : index
    %c0_698 = arith.constant 0 : index
    %c0_699 = arith.constant 0 : index
    %964 = vector.load %arg2[%c27_697, %c0_698, %c0_699] : memref<42x8x52xf32, #tpu.memory_space<vmem>>, vector<1x8x52xf32>
    %965 = vector.shape_cast %964 : vector<1x8x52xf32> to vector<8x52xf32>
    %966 = vector.broadcast %963 : vector<1x52xf32> to vector<8x52xf32>
    %967 = arith.mulf %965, %966 : vector<8x52xf32>
    %968 = arith.addf %961, %967 : vector<8x52xf32>
    %c2_700 = arith.constant 2 : index
    %c29_701 = arith.constant 29 : index
    %c0_702 = arith.constant 0 : index
    %969 = vector.load %arg6[%c2_700, %c29_701, %c0_702] : memref<3x51x52xf32, #tpu.memory_space<vmem>>, vector<1x1x52xf32>
    %970 = vector.shape_cast %969 : vector<1x1x52xf32> to vector<1x52xf32>
    %c28_703 = arith.constant 28 : index
    %c0_704 = arith.constant 0 : index
    %c0_705 = arith.constant 0 : index
    %971 = vector.load %arg2[%c28_703, %c0_704, %c0_705] : memref<42x8x52xf32, #tpu.memory_space<vmem>>, vector<1x8x52xf32>
    %972 = vector.shape_cast %971 : vector<1x8x52xf32> to vector<8x52xf32>
    %973 = vector.broadcast %970 : vector<1x52xf32> to vector<8x52xf32>
    %974 = arith.mulf %972, %973 : vector<8x52xf32>
    %c2_706 = arith.constant 2 : index
    %c30_707 = arith.constant 30 : index
    %c0_708 = arith.constant 0 : index
    %975 = vector.load %arg6[%c2_706, %c30_707, %c0_708] : memref<3x51x52xf32, #tpu.memory_space<vmem>>, vector<1x1x52xf32>
    %976 = vector.shape_cast %975 : vector<1x1x52xf32> to vector<1x52xf32>
    %c29_709 = arith.constant 29 : index
    %c0_710 = arith.constant 0 : index
    %c0_711 = arith.constant 0 : index
    %977 = vector.load %arg2[%c29_709, %c0_710, %c0_711] : memref<42x8x52xf32, #tpu.memory_space<vmem>>, vector<1x8x52xf32>
    %978 = vector.shape_cast %977 : vector<1x8x52xf32> to vector<8x52xf32>
    %979 = vector.broadcast %976 : vector<1x52xf32> to vector<8x52xf32>
    %980 = arith.mulf %978, %979 : vector<8x52xf32>
    %981 = arith.addf %974, %980 : vector<8x52xf32>
    %c2_712 = arith.constant 2 : index
    %c31_713 = arith.constant 31 : index
    %c0_714 = arith.constant 0 : index
    %982 = vector.load %arg6[%c2_712, %c31_713, %c0_714] : memref<3x51x52xf32, #tpu.memory_space<vmem>>, vector<1x1x52xf32>
    %983 = vector.shape_cast %982 : vector<1x1x52xf32> to vector<1x52xf32>
    %c30_715 = arith.constant 30 : index
    %c0_716 = arith.constant 0 : index
    %c0_717 = arith.constant 0 : index
    %984 = vector.load %arg2[%c30_715, %c0_716, %c0_717] : memref<42x8x52xf32, #tpu.memory_space<vmem>>, vector<1x8x52xf32>
    %985 = vector.shape_cast %984 : vector<1x8x52xf32> to vector<8x52xf32>
    %986 = vector.broadcast %983 : vector<1x52xf32> to vector<8x52xf32>
    %987 = arith.mulf %985, %986 : vector<8x52xf32>
    %988 = arith.addf %981, %987 : vector<8x52xf32>
    %c2_718 = arith.constant 2 : index
    %c32_719 = arith.constant 32 : index
    %c0_720 = arith.constant 0 : index
    %989 = vector.load %arg6[%c2_718, %c32_719, %c0_720] : memref<3x51x52xf32, #tpu.memory_space<vmem>>, vector<1x1x52xf32>
    %990 = vector.shape_cast %989 : vector<1x1x52xf32> to vector<1x52xf32>
    %c31_721 = arith.constant 31 : index
    %c0_722 = arith.constant 0 : index
    %c0_723 = arith.constant 0 : index
    %991 = vector.load %arg2[%c31_721, %c0_722, %c0_723] : memref<42x8x52xf32, #tpu.memory_space<vmem>>, vector<1x8x52xf32>
    %992 = vector.shape_cast %991 : vector<1x8x52xf32> to vector<8x52xf32>
    %993 = vector.broadcast %990 : vector<1x52xf32> to vector<8x52xf32>
    %994 = arith.mulf %992, %993 : vector<8x52xf32>
    %995 = arith.addf %988, %994 : vector<8x52xf32>
    %c2_724 = arith.constant 2 : index
    %c33_725 = arith.constant 33 : index
    %c0_726 = arith.constant 0 : index
    %996 = vector.load %arg6[%c2_724, %c33_725, %c0_726] : memref<3x51x52xf32, #tpu.memory_space<vmem>>, vector<1x1x52xf32>
    %997 = vector.shape_cast %996 : vector<1x1x52xf32> to vector<1x52xf32>
    %c32_727 = arith.constant 32 : index
    %c0_728 = arith.constant 0 : index
    %c0_729 = arith.constant 0 : index
    %998 = vector.load %arg2[%c32_727, %c0_728, %c0_729] : memref<42x8x52xf32, #tpu.memory_space<vmem>>, vector<1x8x52xf32>
    %999 = vector.shape_cast %998 : vector<1x8x52xf32> to vector<8x52xf32>
    %1000 = vector.broadcast %997 : vector<1x52xf32> to vector<8x52xf32>
    %1001 = arith.mulf %999, %1000 : vector<8x52xf32>
    %1002 = arith.addf %995, %1001 : vector<8x52xf32>
    %c2_730 = arith.constant 2 : index
    %c34_731 = arith.constant 34 : index
    %c0_732 = arith.constant 0 : index
    %1003 = vector.load %arg6[%c2_730, %c34_731, %c0_732] : memref<3x51x52xf32, #tpu.memory_space<vmem>>, vector<1x1x52xf32>
    %1004 = vector.shape_cast %1003 : vector<1x1x52xf32> to vector<1x52xf32>
    %c33_733 = arith.constant 33 : index
    %c0_734 = arith.constant 0 : index
    %c0_735 = arith.constant 0 : index
    %1005 = vector.load %arg2[%c33_733, %c0_734, %c0_735] : memref<42x8x52xf32, #tpu.memory_space<vmem>>, vector<1x8x52xf32>
    %1006 = vector.shape_cast %1005 : vector<1x8x52xf32> to vector<8x52xf32>
    %1007 = vector.broadcast %1004 : vector<1x52xf32> to vector<8x52xf32>
    %1008 = arith.mulf %1006, %1007 : vector<8x52xf32>
    %1009 = arith.addf %1002, %1008 : vector<8x52xf32>
    %c2_736 = arith.constant 2 : index
    %c35_737 = arith.constant 35 : index
    %c0_738 = arith.constant 0 : index
    %1010 = vector.load %arg6[%c2_736, %c35_737, %c0_738] : memref<3x51x52xf32, #tpu.memory_space<vmem>>, vector<1x1x52xf32>
    %1011 = vector.shape_cast %1010 : vector<1x1x52xf32> to vector<1x52xf32>
    %c34_739 = arith.constant 34 : index
    %c0_740 = arith.constant 0 : index
    %c0_741 = arith.constant 0 : index
    %1012 = vector.load %arg2[%c34_739, %c0_740, %c0_741] : memref<42x8x52xf32, #tpu.memory_space<vmem>>, vector<1x8x52xf32>
    %1013 = vector.shape_cast %1012 : vector<1x8x52xf32> to vector<8x52xf32>
    %1014 = vector.broadcast %1011 : vector<1x52xf32> to vector<8x52xf32>
    %1015 = arith.mulf %1013, %1014 : vector<8x52xf32>
    %1016 = arith.addf %1009, %1015 : vector<8x52xf32>
    %c2_742 = arith.constant 2 : index
    %c36_743 = arith.constant 36 : index
    %c0_744 = arith.constant 0 : index
    %1017 = vector.load %arg6[%c2_742, %c36_743, %c0_744] : memref<3x51x52xf32, #tpu.memory_space<vmem>>, vector<1x1x52xf32>
    %1018 = vector.shape_cast %1017 : vector<1x1x52xf32> to vector<1x52xf32>
    %c35_745 = arith.constant 35 : index
    %c0_746 = arith.constant 0 : index
    %c0_747 = arith.constant 0 : index
    %1019 = vector.load %arg2[%c35_745, %c0_746, %c0_747] : memref<42x8x52xf32, #tpu.memory_space<vmem>>, vector<1x8x52xf32>
    %1020 = vector.shape_cast %1019 : vector<1x8x52xf32> to vector<8x52xf32>
    %1021 = vector.broadcast %1018 : vector<1x52xf32> to vector<8x52xf32>
    %1022 = arith.mulf %1020, %1021 : vector<8x52xf32>
    %c2_748 = arith.constant 2 : index
    %c37_749 = arith.constant 37 : index
    %c0_750 = arith.constant 0 : index
    %1023 = vector.load %arg6[%c2_748, %c37_749, %c0_750] : memref<3x51x52xf32, #tpu.memory_space<vmem>>, vector<1x1x52xf32>
    %1024 = vector.shape_cast %1023 : vector<1x1x52xf32> to vector<1x52xf32>
    %c36_751 = arith.constant 36 : index
    %c0_752 = arith.constant 0 : index
    %c0_753 = arith.constant 0 : index
    %1025 = vector.load %arg2[%c36_751, %c0_752, %c0_753] : memref<42x8x52xf32, #tpu.memory_space<vmem>>, vector<1x8x52xf32>
    %1026 = vector.shape_cast %1025 : vector<1x8x52xf32> to vector<8x52xf32>
    %1027 = vector.broadcast %1024 : vector<1x52xf32> to vector<8x52xf32>
    %1028 = arith.mulf %1026, %1027 : vector<8x52xf32>
    %1029 = arith.addf %1022, %1028 : vector<8x52xf32>
    %c2_754 = arith.constant 2 : index
    %c38_755 = arith.constant 38 : index
    %c0_756 = arith.constant 0 : index
    %1030 = vector.load %arg6[%c2_754, %c38_755, %c0_756] : memref<3x51x52xf32, #tpu.memory_space<vmem>>, vector<1x1x52xf32>
    %1031 = vector.shape_cast %1030 : vector<1x1x52xf32> to vector<1x52xf32>
    %c37_757 = arith.constant 37 : index
    %c0_758 = arith.constant 0 : index
    %c0_759 = arith.constant 0 : index
    %1032 = vector.load %arg2[%c37_757, %c0_758, %c0_759] : memref<42x8x52xf32, #tpu.memory_space<vmem>>, vector<1x8x52xf32>
    %1033 = vector.shape_cast %1032 : vector<1x8x52xf32> to vector<8x52xf32>
    %1034 = vector.broadcast %1031 : vector<1x52xf32> to vector<8x52xf32>
    %1035 = arith.mulf %1033, %1034 : vector<8x52xf32>
    %1036 = arith.addf %1029, %1035 : vector<8x52xf32>
    %c2_760 = arith.constant 2 : index
    %c39_761 = arith.constant 39 : index
    %c0_762 = arith.constant 0 : index
    %1037 = vector.load %arg6[%c2_760, %c39_761, %c0_762] : memref<3x51x52xf32, #tpu.memory_space<vmem>>, vector<1x1x52xf32>
    %1038 = vector.shape_cast %1037 : vector<1x1x52xf32> to vector<1x52xf32>
    %c38_763 = arith.constant 38 : index
    %c0_764 = arith.constant 0 : index
    %c0_765 = arith.constant 0 : index
    %1039 = vector.load %arg2[%c38_763, %c0_764, %c0_765] : memref<42x8x52xf32, #tpu.memory_space<vmem>>, vector<1x8x52xf32>
    %1040 = vector.shape_cast %1039 : vector<1x8x52xf32> to vector<8x52xf32>
    %1041 = vector.broadcast %1038 : vector<1x52xf32> to vector<8x52xf32>
    %1042 = arith.mulf %1040, %1041 : vector<8x52xf32>
    %1043 = arith.addf %1036, %1042 : vector<8x52xf32>
    %c2_766 = arith.constant 2 : index
    %c40_767 = arith.constant 40 : index
    %c0_768 = arith.constant 0 : index
    %1044 = vector.load %arg6[%c2_766, %c40_767, %c0_768] : memref<3x51x52xf32, #tpu.memory_space<vmem>>, vector<1x1x52xf32>
    %1045 = vector.shape_cast %1044 : vector<1x1x52xf32> to vector<1x52xf32>
    %c39_769 = arith.constant 39 : index
    %c0_770 = arith.constant 0 : index
    %c0_771 = arith.constant 0 : index
    %1046 = vector.load %arg2[%c39_769, %c0_770, %c0_771] : memref<42x8x52xf32, #tpu.memory_space<vmem>>, vector<1x8x52xf32>
    %1047 = vector.shape_cast %1046 : vector<1x8x52xf32> to vector<8x52xf32>
    %1048 = vector.broadcast %1045 : vector<1x52xf32> to vector<8x52xf32>
    %1049 = arith.mulf %1047, %1048 : vector<8x52xf32>
    %1050 = arith.addf %1043, %1049 : vector<8x52xf32>
    %c2_772 = arith.constant 2 : index
    %c41_773 = arith.constant 41 : index
    %c0_774 = arith.constant 0 : index
    %1051 = vector.load %arg6[%c2_772, %c41_773, %c0_774] : memref<3x51x52xf32, #tpu.memory_space<vmem>>, vector<1x1x52xf32>
    %1052 = vector.shape_cast %1051 : vector<1x1x52xf32> to vector<1x52xf32>
    %c40_775 = arith.constant 40 : index
    %c0_776 = arith.constant 0 : index
    %c0_777 = arith.constant 0 : index
    %1053 = vector.load %arg2[%c40_775, %c0_776, %c0_777] : memref<42x8x52xf32, #tpu.memory_space<vmem>>, vector<1x8x52xf32>
    %1054 = vector.shape_cast %1053 : vector<1x8x52xf32> to vector<8x52xf32>
    %1055 = vector.broadcast %1052 : vector<1x52xf32> to vector<8x52xf32>
    %1056 = arith.mulf %1054, %1055 : vector<8x52xf32>
    %1057 = arith.addf %1050, %1056 : vector<8x52xf32>
    %c2_778 = arith.constant 2 : index
    %c42_779 = arith.constant 42 : index
    %c0_780 = arith.constant 0 : index
    %1058 = vector.load %arg6[%c2_778, %c42_779, %c0_780] : memref<3x51x52xf32, #tpu.memory_space<vmem>>, vector<1x1x52xf32>
    %1059 = vector.shape_cast %1058 : vector<1x1x52xf32> to vector<1x52xf32>
    %c41_781 = arith.constant 41 : index
    %c0_782 = arith.constant 0 : index
    %c0_783 = arith.constant 0 : index
    %1060 = vector.load %arg2[%c41_781, %c0_782, %c0_783] : memref<42x8x52xf32, #tpu.memory_space<vmem>>, vector<1x8x52xf32>
    %1061 = vector.shape_cast %1060 : vector<1x8x52xf32> to vector<8x52xf32>
    %1062 = vector.broadcast %1059 : vector<1x52xf32> to vector<8x52xf32>
    %1063 = arith.mulf %1061, %1062 : vector<8x52xf32>
    %1064 = arith.addf %1057, %1063 : vector<8x52xf32>
    %1065 = arith.addf %824, %872 : vector<8x52xf32>
    %1066 = arith.addf %920, %968 : vector<8x52xf32>
    %1067 = arith.addf %1016, %1064 : vector<8x52xf32>
    %1068 = arith.addf %1065, %1066 : vector<8x52xf32>
    %1069 = arith.addf %1068, %1067 : vector<8x52xf32>
    %1070 = vector.extract_strided_slice %1069 {offsets = [0, 0], sizes = [8, 13], strides = [1, 1]} : vector<8x52xf32> to vector<8x13xf32>
    %cst_784 = arith.constant dense<0.000000e+00> : vector<8xf32>
    %1071 = vector.multi_reduction <add>, %1070, %cst_784 [1] : vector<8x13xf32> to vector<8xf32>
    %1072 = vector.shape_cast %1071 : vector<8xf32> to vector<8x1xf32>
    %1073 = vector.extract_strided_slice %1069 {offsets = [0, 14], sizes = [8, 14], strides = [1, 1]} : vector<8x52xf32> to vector<8x14xf32>
    %cst_785 = arith.constant dense<0.000000e+00> : vector<8xf32>
    %1074 = vector.multi_reduction <add>, %1073, %cst_785 [1] : vector<8x14xf32> to vector<8xf32>
    %1075 = vector.shape_cast %1074 : vector<8xf32> to vector<8x1xf32>
    %1076 = vector.extract_strided_slice %1069 {offsets = [0, 29], sizes = [8, 14], strides = [1, 1]} : vector<8x52xf32> to vector<8x14xf32>
    %cst_786 = arith.constant dense<0.000000e+00> : vector<8xf32>
    %1077 = vector.multi_reduction <add>, %1076, %cst_786 [1] : vector<8x14xf32> to vector<8xf32>
    %1078 = vector.shape_cast %1077 : vector<8xf32> to vector<8x1xf32>
    %1079 = tpu.iota {dimensions = array<i32: 1>} : vector<8x9xi32>
    %cst_787 = arith.constant 0.000000e+00 : f32
    %1080 = vector.broadcast %cst_787 : f32 to vector<8x9xf32>
    %c0_i32 = arith.constant 0 : i32
    %1081 = vector.broadcast %c0_i32 : i32 to vector<8x9xi32>
    %1082 = arith.cmpi eq, %1079, %1081 : vector<8x9xi32>
    %1083 = vector.shape_cast %468 : vector<8x1xf32> to vector<8x1xf32>
    %1084 = vector.broadcast %1083 : vector<8x1xf32> to vector<8x9xf32>
    %1085 = arith.select %1082, %1084, %1080 : vector<8x9xi1>, vector<8x9xf32>
    %c1_i32 = arith.constant 1 : i32
    %1086 = vector.broadcast %c1_i32 : i32 to vector<8x9xi32>
    %1087 = arith.cmpi eq, %1079, %1086 : vector<8x9xi32>
    %1088 = vector.shape_cast %471 : vector<8x1xf32> to vector<8x1xf32>
    %1089 = vector.broadcast %1088 : vector<8x1xf32> to vector<8x9xf32>
    %1090 = arith.select %1087, %1089, %1085 : vector<8x9xi1>, vector<8x9xf32>
    %c2_i32 = arith.constant 2 : i32
    %1091 = vector.broadcast %c2_i32 : i32 to vector<8x9xi32>
    %1092 = arith.cmpi eq, %1079, %1091 : vector<8x9xi32>
    %1093 = vector.shape_cast %474 : vector<8x1xf32> to vector<8x1xf32>
    %1094 = vector.broadcast %1093 : vector<8x1xf32> to vector<8x9xf32>
    %1095 = arith.select %1092, %1094, %1090 : vector<8x9xi1>, vector<8x9xf32>
    %c3_i32 = arith.constant 3 : i32
    %1096 = vector.broadcast %c3_i32 : i32 to vector<8x9xi32>
    %1097 = arith.cmpi eq, %1079, %1096 : vector<8x9xi32>
    %1098 = vector.shape_cast %770 : vector<8x1xf32> to vector<8x1xf32>
    %1099 = vector.broadcast %1098 : vector<8x1xf32> to vector<8x9xf32>
    %1100 = arith.select %1097, %1099, %1095 : vector<8x9xi1>, vector<8x9xf32>
    %c4_i32 = arith.constant 4 : i32
    %1101 = vector.broadcast %c4_i32 : i32 to vector<8x9xi32>
    %1102 = arith.cmpi eq, %1079, %1101 : vector<8x9xi32>
    %1103 = vector.shape_cast %773 : vector<8x1xf32> to vector<8x1xf32>
    %1104 = vector.broadcast %1103 : vector<8x1xf32> to vector<8x9xf32>
    %1105 = arith.select %1102, %1104, %1100 : vector<8x9xi1>, vector<8x9xf32>
    %c5_i32 = arith.constant 5 : i32
    %1106 = vector.broadcast %c5_i32 : i32 to vector<8x9xi32>
    %1107 = arith.cmpi eq, %1079, %1106 : vector<8x9xi32>
    %1108 = vector.shape_cast %776 : vector<8x1xf32> to vector<8x1xf32>
    %1109 = vector.broadcast %1108 : vector<8x1xf32> to vector<8x9xf32>
    %1110 = arith.select %1107, %1109, %1105 : vector<8x9xi1>, vector<8x9xf32>
    %c6_i32 = arith.constant 6 : i32
    %1111 = vector.broadcast %c6_i32 : i32 to vector<8x9xi32>
    %1112 = arith.cmpi eq, %1079, %1111 : vector<8x9xi32>
    %1113 = vector.shape_cast %1072 : vector<8x1xf32> to vector<8x1xf32>
    %1114 = vector.broadcast %1113 : vector<8x1xf32> to vector<8x9xf32>
    %1115 = arith.select %1112, %1114, %1110 : vector<8x9xi1>, vector<8x9xf32>
    %c7_i32 = arith.constant 7 : i32
    %1116 = vector.broadcast %c7_i32 : i32 to vector<8x9xi32>
    %1117 = arith.cmpi eq, %1079, %1116 : vector<8x9xi32>
    %1118 = vector.shape_cast %1075 : vector<8x1xf32> to vector<8x1xf32>
    %1119 = vector.broadcast %1118 : vector<8x1xf32> to vector<8x9xf32>
    %1120 = arith.select %1117, %1119, %1115 : vector<8x9xi1>, vector<8x9xf32>
    %c8_i32 = arith.constant 8 : i32
    %1121 = vector.broadcast %c8_i32 : i32 to vector<8x9xi32>
    %1122 = arith.cmpi eq, %1079, %1121 : vector<8x9xi32>
    %1123 = vector.shape_cast %1078 : vector<8x1xf32> to vector<8x1xf32>
    %1124 = vector.broadcast %1123 : vector<8x1xf32> to vector<8x9xf32>
    %1125 = arith.select %1122, %1124, %1120 : vector<8x9xi1>, vector<8x9xf32>
    %c0_788 = arith.constant 0 : index
    %c9_789 = arith.constant 9 : index
    %1126 = vector.load %arg3[%c0_788, %c9_789] : memref<8x16xf32, #tpu.memory_space<vmem>>, vector<8x1xf32>
    %1127 = vector.broadcast %1126 : vector<8x1xf32> to vector<8x9xf32>
    %1128 = arith.addf %1125, %1127 : vector<8x9xf32>
    %cst_790 = arith.constant 5.000000e-01 : f32
    %1129 = vector.broadcast %cst_790 : f32 to vector<8x9xf32>
    %1130 = arith.mulf %1128, %1129 : vector<8x9xf32>
    %cst_791 = arith.constant 0.707106769 : f32
    %1131 = vector.broadcast %cst_791 : f32 to vector<8x9xf32>
    %1132 = arith.mulf %1128, %1131 : vector<8x9xf32>
    %cst_792 = arith.constant 0.000000e+00 : f32
    %1133 = vector.broadcast %cst_792 : f32 to vector<8x9xf32>
    %1134 = arith.cmpf olt, %1132, %1133 : vector<8x9xf32>
    %cst_793 = arith.constant -1.000000e+00 : f32
    %cst_794 = arith.constant 1.000000e+00 : f32
    %1135 = vector.broadcast %cst_793 : f32 to vector<8x9xf32>
    %1136 = vector.broadcast %cst_794 : f32 to vector<8x9xf32>
    %1137 = arith.select %1134, %1135, %1136 : vector<8x9xi1>, vector<8x9xf32>
    %1138 = math.absf %1132 : vector<8x9xf32>
    %cst_795 = arith.constant 0.327591091 : f32
    %1139 = vector.broadcast %cst_795 : f32 to vector<8x9xf32>
    %1140 = arith.mulf %1139, %1138 : vector<8x9xf32>
    %cst_796 = arith.constant 1.000000e+00 : f32
    %1141 = vector.broadcast %cst_796 : f32 to vector<8x9xf32>
    %1142 = arith.addf %1141, %1140 : vector<8x9xf32>
    %cst_797 = arith.constant 1.000000e+00 : f32
    %1143 = vector.broadcast %cst_797 : f32 to vector<8x9xf32>
    %1144 = arith.divf %1143, %1142 : vector<8x9xf32>
    %cst_798 = arith.constant 1.06140542 : f32
    %1145 = vector.broadcast %cst_798 : f32 to vector<8x9xf32>
    %1146 = arith.mulf %1145, %1144 : vector<8x9xf32>
    %cst_799 = arith.constant -1.45315206 : f32
    %1147 = vector.broadcast %cst_799 : f32 to vector<8x9xf32>
    %1148 = arith.addf %1146, %1147 : vector<8x9xf32>
    %1149 = arith.mulf %1148, %1144 : vector<8x9xf32>
    %cst_800 = arith.constant 1.42141378 : f32
    %1150 = vector.broadcast %cst_800 : f32 to vector<8x9xf32>
    %1151 = arith.addf %1149, %1150 : vector<8x9xf32>
    %1152 = arith.mulf %1151, %1144 : vector<8x9xf32>
    %cst_801 = arith.constant -0.284496725 : f32
    %1153 = vector.broadcast %cst_801 : f32 to vector<8x9xf32>
    %1154 = arith.addf %1152, %1153 : vector<8x9xf32>
    %1155 = arith.mulf %1154, %1144 : vector<8x9xf32>
    %cst_802 = arith.constant 0.254829586 : f32
    %1156 = vector.broadcast %cst_802 : f32 to vector<8x9xf32>
    %1157 = arith.addf %1155, %1156 : vector<8x9xf32>
    %1158 = arith.mulf %1157, %1144 : vector<8x9xf32>
    %cst_803 = arith.constant 0.000000e+00 : f32
    %1159 = vector.broadcast %cst_803 : f32 to vector<8x9xf32>
    %1160 = arith.subf %1159, %1138 : vector<8x9xf32>
    %1161 = arith.mulf %1160, %1138 : vector<8x9xf32>
    %1162 = math.exp %1161 : vector<8x9xf32>
    %1163 = arith.mulf %1158, %1162 : vector<8x9xf32>
    %cst_804 = arith.constant 1.000000e+00 : f32
    %1164 = vector.broadcast %cst_804 : f32 to vector<8x9xf32>
    %1165 = arith.subf %1164, %1163 : vector<8x9xf32>
    %1166 = arith.mulf %1137, %1165 : vector<8x9xf32>
    %cst_805 = arith.constant 1.000000e+00 : f32
    %1167 = vector.broadcast %cst_805 : f32 to vector<8x9xf32>
    %1168 = arith.addf %1166, %1167 : vector<8x9xf32>
    %1169 = arith.mulf %1130, %1168 : vector<8x9xf32>
    %c0_806 = arith.constant 0 : index
    %c8_807 = arith.constant 8 : index
    %1170 = vector.load %arg3[%c0_806, %c8_807] : memref<8x16xf32, #tpu.memory_space<vmem>>, vector<5x1xf32>
    %c0_808 = arith.constant 0 : index
    %c0_809 = arith.constant 0 : index
    %1171 = vector.load %arg3[%c0_808, %c0_809] : memref<8x16xf32, #tpu.memory_space<vmem>>, vector<5x1xf32>
    %1172 = vector.extract_strided_slice %1169 {offsets = [0, 0], sizes = [1, 9], strides = [1, 1]} : vector<8x9xf32> to vector<1x9xf32>
    %1173 = vector.broadcast %1171 : vector<5x1xf32> to vector<5x9xf32>
    %1174 = vector.broadcast %1172 : vector<1x9xf32> to vector<5x9xf32>
    %1175 = arith.mulf %1173, %1174 : vector<5x9xf32>
    %c0_810 = arith.constant 0 : index
    %c1_811 = arith.constant 1 : index
    %1176 = vector.load %arg3[%c0_810, %c1_811] : memref<8x16xf32, #tpu.memory_space<vmem>>, vector<5x1xf32>
    %1177 = vector.extract_strided_slice %1169 {offsets = [1, 0], sizes = [1, 9], strides = [1, 1]} : vector<8x9xf32> to vector<1x9xf32>
    %1178 = vector.broadcast %1176 : vector<5x1xf32> to vector<5x9xf32>
    %1179 = vector.broadcast %1177 : vector<1x9xf32> to vector<5x9xf32>
    %1180 = arith.mulf %1178, %1179 : vector<5x9xf32>
    %1181 = arith.addf %1175, %1180 : vector<5x9xf32>
    %c0_812 = arith.constant 0 : index
    %c2_813 = arith.constant 2 : index
    %1182 = vector.load %arg3[%c0_812, %c2_813] : memref<8x16xf32, #tpu.memory_space<vmem>>, vector<5x1xf32>
    %1183 = vector.extract_strided_slice %1169 {offsets = [2, 0], sizes = [1, 9], strides = [1, 1]} : vector<8x9xf32> to vector<1x9xf32>
    %1184 = vector.broadcast %1182 : vector<5x1xf32> to vector<5x9xf32>
    %1185 = vector.broadcast %1183 : vector<1x9xf32> to vector<5x9xf32>
    %1186 = arith.mulf %1184, %1185 : vector<5x9xf32>
    %1187 = arith.addf %1181, %1186 : vector<5x9xf32>
    %c0_814 = arith.constant 0 : index
    %c3_815 = arith.constant 3 : index
    %1188 = vector.load %arg3[%c0_814, %c3_815] : memref<8x16xf32, #tpu.memory_space<vmem>>, vector<5x1xf32>
    %1189 = vector.extract_strided_slice %1169 {offsets = [3, 0], sizes = [1, 9], strides = [1, 1]} : vector<8x9xf32> to vector<1x9xf32>
    %1190 = vector.broadcast %1188 : vector<5x1xf32> to vector<5x9xf32>
    %1191 = vector.broadcast %1189 : vector<1x9xf32> to vector<5x9xf32>
    %1192 = arith.mulf %1190, %1191 : vector<5x9xf32>
    %1193 = arith.addf %1187, %1192 : vector<5x9xf32>
    %c0_816 = arith.constant 0 : index
    %c4_817 = arith.constant 4 : index
    %1194 = vector.load %arg3[%c0_816, %c4_817] : memref<8x16xf32, #tpu.memory_space<vmem>>, vector<5x1xf32>
    %1195 = vector.extract_strided_slice %1169 {offsets = [4, 0], sizes = [1, 9], strides = [1, 1]} : vector<8x9xf32> to vector<1x9xf32>
    %1196 = vector.broadcast %1194 : vector<5x1xf32> to vector<5x9xf32>
    %1197 = vector.broadcast %1195 : vector<1x9xf32> to vector<5x9xf32>
    %1198 = arith.mulf %1196, %1197 : vector<5x9xf32>
    %c0_818 = arith.constant 0 : index
    %c5_819 = arith.constant 5 : index
    %1199 = vector.load %arg3[%c0_818, %c5_819] : memref<8x16xf32, #tpu.memory_space<vmem>>, vector<5x1xf32>
    %1200 = vector.extract_strided_slice %1169 {offsets = [5, 0], sizes = [1, 9], strides = [1, 1]} : vector<8x9xf32> to vector<1x9xf32>
    %1201 = vector.broadcast %1199 : vector<5x1xf32> to vector<5x9xf32>
    %1202 = vector.broadcast %1200 : vector<1x9xf32> to vector<5x9xf32>
    %1203 = arith.mulf %1201, %1202 : vector<5x9xf32>
    %1204 = arith.addf %1198, %1203 : vector<5x9xf32>
    %c0_820 = arith.constant 0 : index
    %c6_821 = arith.constant 6 : index
    %1205 = vector.load %arg3[%c0_820, %c6_821] : memref<8x16xf32, #tpu.memory_space<vmem>>, vector<5x1xf32>
    %1206 = vector.extract_strided_slice %1169 {offsets = [6, 0], sizes = [1, 9], strides = [1, 1]} : vector<8x9xf32> to vector<1x9xf32>
    %1207 = vector.broadcast %1205 : vector<5x1xf32> to vector<5x9xf32>
    %1208 = vector.broadcast %1206 : vector<1x9xf32> to vector<5x9xf32>
    %1209 = arith.mulf %1207, %1208 : vector<5x9xf32>
    %1210 = arith.addf %1204, %1209 : vector<5x9xf32>
    %c0_822 = arith.constant 0 : index
    %c7_823 = arith.constant 7 : index
    %1211 = vector.load %arg3[%c0_822, %c7_823] : memref<8x16xf32, #tpu.memory_space<vmem>>, vector<5x1xf32>
    %1212 = vector.extract_strided_slice %1169 {offsets = [7, 0], sizes = [1, 9], strides = [1, 1]} : vector<8x9xf32> to vector<1x9xf32>
    %1213 = vector.broadcast %1211 : vector<5x1xf32> to vector<5x9xf32>
    %1214 = vector.broadcast %1212 : vector<1x9xf32> to vector<5x9xf32>
    %1215 = arith.mulf %1213, %1214 : vector<5x9xf32>
    %1216 = arith.addf %1210, %1215 : vector<5x9xf32>
    %1217 = arith.addf %1193, %1216 : vector<5x9xf32>
    %1218 = vector.broadcast %1170 : vector<5x1xf32> to vector<5x9xf32>
    %1219 = arith.addf %1217, %1218 : vector<5x9xf32>
    %1220 = tpu.iota {dimensions = array<i32: 0>} : vector<15x15xi32>
    %1221 = tpu.iota {dimensions = array<i32: 1>} : vector<15x15xi32>
    %c0_i32_824 = arith.constant 0 : i32
    %1222 = vector.broadcast %c0_i32_824 : i32 to vector<15x15xi32>
    %1223 = arith.cmpi eq, %1220, %1222 : vector<15x15xi32>
    %c0_i32_825 = arith.constant 0 : i32
    %1224 = vector.broadcast %c0_i32_825 : i32 to vector<15x15xi32>
    %1225 = arith.cmpi eq, %1221, %1224 : vector<15x15xi32>
    %1226 = arith.andi %1223, %1225 : vector<15x15xi1>
    %c0_i32_826 = arith.constant 0 : i32
    %1227 = vector.broadcast %c0_i32_826 : i32 to vector<15x15xi32>
    %1228 = arith.cmpi eq, %1220, %1227 : vector<15x15xi32>
    %c7_i32_827 = arith.constant 7 : i32
    %1229 = vector.broadcast %c7_i32_827 : i32 to vector<15x15xi32>
    %1230 = arith.cmpi eq, %1221, %1229 : vector<15x15xi32>
    %1231 = arith.andi %1228, %1230 : vector<15x15xi1>
    %c0_i32_828 = arith.constant 0 : i32
    %1232 = vector.broadcast %c0_i32_828 : i32 to vector<15x15xi32>
    %1233 = arith.cmpi eq, %1220, %1232 : vector<15x15xi32>
    %c14_i32 = arith.constant 14 : i32
    %1234 = vector.broadcast %c14_i32 : i32 to vector<15x15xi32>
    %1235 = arith.cmpi eq, %1221, %1234 : vector<15x15xi32>
    %1236 = arith.andi %1233, %1235 : vector<15x15xi1>
    %c7_i32_829 = arith.constant 7 : i32
    %1237 = vector.broadcast %c7_i32_829 : i32 to vector<15x15xi32>
    %1238 = arith.cmpi eq, %1220, %1237 : vector<15x15xi32>
    %c0_i32_830 = arith.constant 0 : i32
    %1239 = vector.broadcast %c0_i32_830 : i32 to vector<15x15xi32>
    %1240 = arith.cmpi eq, %1221, %1239 : vector<15x15xi32>
    %1241 = arith.andi %1238, %1240 : vector<15x15xi1>
    %c7_i32_831 = arith.constant 7 : i32
    %1242 = vector.broadcast %c7_i32_831 : i32 to vector<15x15xi32>
    %1243 = arith.cmpi eq, %1220, %1242 : vector<15x15xi32>
    %c7_i32_832 = arith.constant 7 : i32
    %1244 = vector.broadcast %c7_i32_832 : i32 to vector<15x15xi32>
    %1245 = arith.cmpi eq, %1221, %1244 : vector<15x15xi32>
    %1246 = arith.andi %1243, %1245 : vector<15x15xi1>
    %c7_i32_833 = arith.constant 7 : i32
    %1247 = vector.broadcast %c7_i32_833 : i32 to vector<15x15xi32>
    %1248 = arith.cmpi eq, %1220, %1247 : vector<15x15xi32>
    %c14_i32_834 = arith.constant 14 : i32
    %1249 = vector.broadcast %c14_i32_834 : i32 to vector<15x15xi32>
    %1250 = arith.cmpi eq, %1221, %1249 : vector<15x15xi32>
    %1251 = arith.andi %1248, %1250 : vector<15x15xi1>
    %c14_i32_835 = arith.constant 14 : i32
    %1252 = vector.broadcast %c14_i32_835 : i32 to vector<15x15xi32>
    %1253 = arith.cmpi eq, %1220, %1252 : vector<15x15xi32>
    %c0_i32_836 = arith.constant 0 : i32
    %1254 = vector.broadcast %c0_i32_836 : i32 to vector<15x15xi32>
    %1255 = arith.cmpi eq, %1221, %1254 : vector<15x15xi32>
    %1256 = arith.andi %1253, %1255 : vector<15x15xi1>
    %c14_i32_837 = arith.constant 14 : i32
    %1257 = vector.broadcast %c14_i32_837 : i32 to vector<15x15xi32>
    %1258 = arith.cmpi eq, %1220, %1257 : vector<15x15xi32>
    %c7_i32_838 = arith.constant 7 : i32
    %1259 = vector.broadcast %c7_i32_838 : i32 to vector<15x15xi32>
    %1260 = arith.cmpi eq, %1221, %1259 : vector<15x15xi32>
    %1261 = arith.andi %1258, %1260 : vector<15x15xi1>
    %c14_i32_839 = arith.constant 14 : i32
    %1262 = vector.broadcast %c14_i32_839 : i32 to vector<15x15xi32>
    %1263 = arith.cmpi eq, %1220, %1262 : vector<15x15xi32>
    %c14_i32_840 = arith.constant 14 : i32
    %1264 = vector.broadcast %c14_i32_840 : i32 to vector<15x15xi32>
    %1265 = arith.cmpi eq, %1221, %1264 : vector<15x15xi32>
    %1266 = arith.andi %1263, %1265 : vector<15x15xi1>
    %c0_841 = arith.constant 0 : index
    %c8_842 = arith.constant 8 : index
    %1267 = vector.load %arg3[%c0_841, %c8_842] : memref<8x16xf32, #tpu.memory_space<vmem>>, vector<1x1xf32>
    %1268 = vector.shape_cast %1267 : vector<1x1xf32> to vector<1x1xf32>
    %1269 = vector.broadcast %1268 : vector<1x1xf32> to vector<15x15xf32>
    %1270 = vector.extract_strided_slice %1219 {offsets = [0, 0], sizes = [1, 1], strides = [1, 1]} : vector<5x9xf32> to vector<1x1xf32>
    %1271 = vector.shape_cast %1270 : vector<1x1xf32> to vector<1x1xf32>
    %1272 = vector.broadcast %1271 : vector<1x1xf32> to vector<15x15xf32>
    %1273 = arith.select %1226, %1272, %1269 : vector<15x15xi1>, vector<15x15xf32>
    %1274 = vector.extract_strided_slice %1219 {offsets = [0, 1], sizes = [1, 1], strides = [1, 1]} : vector<5x9xf32> to vector<1x1xf32>
    %1275 = vector.shape_cast %1274 : vector<1x1xf32> to vector<1x1xf32>
    %1276 = vector.broadcast %1275 : vector<1x1xf32> to vector<15x15xf32>
    %1277 = arith.select %1231, %1276, %1273 : vector<15x15xi1>, vector<15x15xf32>
    %1278 = vector.extract_strided_slice %1219 {offsets = [0, 2], sizes = [1, 1], strides = [1, 1]} : vector<5x9xf32> to vector<1x1xf32>
    %1279 = vector.shape_cast %1278 : vector<1x1xf32> to vector<1x1xf32>
    %1280 = vector.broadcast %1279 : vector<1x1xf32> to vector<15x15xf32>
    %1281 = arith.select %1236, %1280, %1277 : vector<15x15xi1>, vector<15x15xf32>
    %1282 = vector.extract_strided_slice %1219 {offsets = [0, 3], sizes = [1, 1], strides = [1, 1]} : vector<5x9xf32> to vector<1x1xf32>
    %1283 = vector.shape_cast %1282 : vector<1x1xf32> to vector<1x1xf32>
    %1284 = vector.broadcast %1283 : vector<1x1xf32> to vector<15x15xf32>
    %1285 = arith.select %1241, %1284, %1281 : vector<15x15xi1>, vector<15x15xf32>
    %1286 = vector.extract_strided_slice %1219 {offsets = [0, 4], sizes = [1, 1], strides = [1, 1]} : vector<5x9xf32> to vector<1x1xf32>
    %1287 = vector.shape_cast %1286 : vector<1x1xf32> to vector<1x1xf32>
    %1288 = vector.broadcast %1287 : vector<1x1xf32> to vector<15x15xf32>
    %1289 = arith.select %1246, %1288, %1285 : vector<15x15xi1>, vector<15x15xf32>
    %1290 = vector.extract_strided_slice %1219 {offsets = [0, 5], sizes = [1, 1], strides = [1, 1]} : vector<5x9xf32> to vector<1x1xf32>
    %1291 = vector.shape_cast %1290 : vector<1x1xf32> to vector<1x1xf32>
    %1292 = vector.broadcast %1291 : vector<1x1xf32> to vector<15x15xf32>
    %1293 = arith.select %1251, %1292, %1289 : vector<15x15xi1>, vector<15x15xf32>
    %1294 = vector.extract_strided_slice %1219 {offsets = [0, 6], sizes = [1, 1], strides = [1, 1]} : vector<5x9xf32> to vector<1x1xf32>
    %1295 = vector.shape_cast %1294 : vector<1x1xf32> to vector<1x1xf32>
    %1296 = vector.broadcast %1295 : vector<1x1xf32> to vector<15x15xf32>
    %1297 = arith.select %1256, %1296, %1293 : vector<15x15xi1>, vector<15x15xf32>
    %1298 = vector.extract_strided_slice %1219 {offsets = [0, 7], sizes = [1, 1], strides = [1, 1]} : vector<5x9xf32> to vector<1x1xf32>
    %1299 = vector.shape_cast %1298 : vector<1x1xf32> to vector<1x1xf32>
    %1300 = vector.broadcast %1299 : vector<1x1xf32> to vector<15x15xf32>
    %1301 = arith.select %1261, %1300, %1297 : vector<15x15xi1>, vector<15x15xf32>
    %1302 = vector.extract_strided_slice %1219 {offsets = [0, 8], sizes = [1, 1], strides = [1, 1]} : vector<5x9xf32> to vector<1x1xf32>
    %1303 = vector.shape_cast %1302 : vector<1x1xf32> to vector<1x1xf32>
    %1304 = vector.broadcast %1303 : vector<1x1xf32> to vector<15x15xf32>
    %1305 = arith.select %1266, %1304, %1301 : vector<15x15xi1>, vector<15x15xf32>
    %c0_843 = arith.constant 0 : index
    %c0_844 = arith.constant 0 : index
    %c0_845 = arith.constant 0 : index
    %1306 = vector.load %arg5[%c0_843, %c0_844, %c0_845] : memref<5x15x15xf32, #tpu.memory_space<vmem>>, vector<1x15x15xf32>
    %1307 = vector.shape_cast %1306 : vector<1x15x15xf32> to vector<15x15xf32>
    %1308 = vector.shape_cast %1305 : vector<15x15xf32> to vector<1x15x15xf32>
    tpu.vector_store %arg5[%c0_843, %c0_844, %c0_845], %1308 {strides = array<i32>} : memref<5x15x15xf32, #tpu.memory_space<vmem>>, vector<1x15x15xf32>,
    %c1_846 = arith.constant 1 : index
    %c8_847 = arith.constant 8 : index
    %1309 = vector.load %arg3[%c1_846, %c8_847] : memref<8x16xf32, #tpu.memory_space<vmem>>, vector<1x1xf32>
    %1310 = vector.shape_cast %1309 : vector<1x1xf32> to vector<1x1xf32>
    %1311 = vector.broadcast %1310 : vector<1x1xf32> to vector<15x15xf32>
    %1312 = vector.extract_strided_slice %1219 {offsets = [1, 0], sizes = [1, 1], strides = [1, 1]} : vector<5x9xf32> to vector<1x1xf32>
    %1313 = vector.shape_cast %1312 : vector<1x1xf32> to vector<1x1xf32>
    %1314 = vector.broadcast %1313 : vector<1x1xf32> to vector<15x15xf32>
    %1315 = arith.select %1226, %1314, %1311 : vector<15x15xi1>, vector<15x15xf32>
    %1316 = vector.extract_strided_slice %1219 {offsets = [1, 1], sizes = [1, 1], strides = [1, 1]} : vector<5x9xf32> to vector<1x1xf32>
    %1317 = vector.shape_cast %1316 : vector<1x1xf32> to vector<1x1xf32>
    %1318 = vector.broadcast %1317 : vector<1x1xf32> to vector<15x15xf32>
    %1319 = arith.select %1231, %1318, %1315 : vector<15x15xi1>, vector<15x15xf32>
    %1320 = vector.extract_strided_slice %1219 {offsets = [1, 2], sizes = [1, 1], strides = [1, 1]} : vector<5x9xf32> to vector<1x1xf32>
    %1321 = vector.shape_cast %1320 : vector<1x1xf32> to vector<1x1xf32>
    %1322 = vector.broadcast %1321 : vector<1x1xf32> to vector<15x15xf32>
    %1323 = arith.select %1236, %1322, %1319 : vector<15x15xi1>, vector<15x15xf32>
    %1324 = vector.extract_strided_slice %1219 {offsets = [1, 3], sizes = [1, 1], strides = [1, 1]} : vector<5x9xf32> to vector<1x1xf32>
    %1325 = vector.shape_cast %1324 : vector<1x1xf32> to vector<1x1xf32>
    %1326 = vector.broadcast %1325 : vector<1x1xf32> to vector<15x15xf32>
    %1327 = arith.select %1241, %1326, %1323 : vector<15x15xi1>, vector<15x15xf32>
    %1328 = vector.extract_strided_slice %1219 {offsets = [1, 4], sizes = [1, 1], strides = [1, 1]} : vector<5x9xf32> to vector<1x1xf32>
    %1329 = vector.shape_cast %1328 : vector<1x1xf32> to vector<1x1xf32>
    %1330 = vector.broadcast %1329 : vector<1x1xf32> to vector<15x15xf32>
    %1331 = arith.select %1246, %1330, %1327 : vector<15x15xi1>, vector<15x15xf32>
    %1332 = vector.extract_strided_slice %1219 {offsets = [1, 5], sizes = [1, 1], strides = [1, 1]} : vector<5x9xf32> to vector<1x1xf32>
    %1333 = vector.shape_cast %1332 : vector<1x1xf32> to vector<1x1xf32>
    %1334 = vector.broadcast %1333 : vector<1x1xf32> to vector<15x15xf32>
    %1335 = arith.select %1251, %1334, %1331 : vector<15x15xi1>, vector<15x15xf32>
    %1336 = vector.extract_strided_slice %1219 {offsets = [1, 6], sizes = [1, 1], strides = [1, 1]} : vector<5x9xf32> to vector<1x1xf32>
    %1337 = vector.shape_cast %1336 : vector<1x1xf32> to vector<1x1xf32>
    %1338 = vector.broadcast %1337 : vector<1x1xf32> to vector<15x15xf32>
    %1339 = arith.select %1256, %1338, %1335 : vector<15x15xi1>, vector<15x15xf32>
    %1340 = vector.extract_strided_slice %1219 {offsets = [1, 7], sizes = [1, 1], strides = [1, 1]} : vector<5x9xf32> to vector<1x1xf32>
    %1341 = vector.shape_cast %1340 : vector<1x1xf32> to vector<1x1xf32>
    %1342 = vector.broadcast %1341 : vector<1x1xf32> to vector<15x15xf32>
    %1343 = arith.select %1261, %1342, %1339 : vector<15x15xi1>, vector<15x15xf32>
    %1344 = vector.extract_strided_slice %1219 {offsets = [1, 8], sizes = [1, 1], strides = [1, 1]} : vector<5x9xf32> to vector<1x1xf32>
    %1345 = vector.shape_cast %1344 : vector<1x1xf32> to vector<1x1xf32>
    %1346 = vector.broadcast %1345 : vector<1x1xf32> to vector<15x15xf32>
    %1347 = arith.select %1266, %1346, %1343 : vector<15x15xi1>, vector<15x15xf32>
    %c1_848 = arith.constant 1 : index
    %c0_849 = arith.constant 0 : index
    %c0_850 = arith.constant 0 : index
    %1348 = vector.load %arg5[%c1_848, %c0_849, %c0_850] : memref<5x15x15xf32, #tpu.memory_space<vmem>>, vector<1x15x15xf32>
    %1349 = vector.shape_cast %1348 : vector<1x15x15xf32> to vector<15x15xf32>
    %1350 = vector.shape_cast %1347 : vector<15x15xf32> to vector<1x15x15xf32>
    tpu.vector_store %arg5[%c1_848, %c0_849, %c0_850], %1350 {strides = array<i32>} : memref<5x15x15xf32, #tpu.memory_space<vmem>>, vector<1x15x15xf32>,
    %c2_851 = arith.constant 2 : index
    %c8_852 = arith.constant 8 : index
    %1351 = vector.load %arg3[%c2_851, %c8_852] : memref<8x16xf32, #tpu.memory_space<vmem>>, vector<1x1xf32>
    %1352 = vector.shape_cast %1351 : vector<1x1xf32> to vector<1x1xf32>
    %1353 = vector.broadcast %1352 : vector<1x1xf32> to vector<15x15xf32>
    %1354 = vector.extract_strided_slice %1219 {offsets = [2, 0], sizes = [1, 1], strides = [1, 1]} : vector<5x9xf32> to vector<1x1xf32>
    %1355 = vector.shape_cast %1354 : vector<1x1xf32> to vector<1x1xf32>
    %1356 = vector.broadcast %1355 : vector<1x1xf32> to vector<15x15xf32>
    %1357 = arith.select %1226, %1356, %1353 : vector<15x15xi1>, vector<15x15xf32>
    %1358 = vector.extract_strided_slice %1219 {offsets = [2, 1], sizes = [1, 1], strides = [1, 1]} : vector<5x9xf32> to vector<1x1xf32>
    %1359 = vector.shape_cast %1358 : vector<1x1xf32> to vector<1x1xf32>
    %1360 = vector.broadcast %1359 : vector<1x1xf32> to vector<15x15xf32>
    %1361 = arith.select %1231, %1360, %1357 : vector<15x15xi1>, vector<15x15xf32>
    %1362 = vector.extract_strided_slice %1219 {offsets = [2, 2], sizes = [1, 1], strides = [1, 1]} : vector<5x9xf32> to vector<1x1xf32>
    %1363 = vector.shape_cast %1362 : vector<1x1xf32> to vector<1x1xf32>
    %1364 = vector.broadcast %1363 : vector<1x1xf32> to vector<15x15xf32>
    %1365 = arith.select %1236, %1364, %1361 : vector<15x15xi1>, vector<15x15xf32>
    %1366 = vector.extract_strided_slice %1219 {offsets = [2, 3], sizes = [1, 1], strides = [1, 1]} : vector<5x9xf32> to vector<1x1xf32>
    %1367 = vector.shape_cast %1366 : vector<1x1xf32> to vector<1x1xf32>
    %1368 = vector.broadcast %1367 : vector<1x1xf32> to vector<15x15xf32>
    %1369 = arith.select %1241, %1368, %1365 : vector<15x15xi1>, vector<15x15xf32>
    %1370 = vector.extract_strided_slice %1219 {offsets = [2, 4], sizes = [1, 1], strides = [1, 1]} : vector<5x9xf32> to vector<1x1xf32>
    %1371 = vector.shape_cast %1370 : vector<1x1xf32> to vector<1x1xf32>
    %1372 = vector.broadcast %1371 : vector<1x1xf32> to vector<15x15xf32>
    %1373 = arith.select %1246, %1372, %1369 : vector<15x15xi1>, vector<15x15xf32>
    %1374 = vector.extract_strided_slice %1219 {offsets = [2, 5], sizes = [1, 1], strides = [1, 1]} : vector<5x9xf32> to vector<1x1xf32>
    %1375 = vector.shape_cast %1374 : vector<1x1xf32> to vector<1x1xf32>
    %1376 = vector.broadcast %1375 : vector<1x1xf32> to vector<15x15xf32>
    %1377 = arith.select %1251, %1376, %1373 : vector<15x15xi1>, vector<15x15xf32>
    %1378 = vector.extract_strided_slice %1219 {offsets = [2, 6], sizes = [1, 1], strides = [1, 1]} : vector<5x9xf32> to vector<1x1xf32>
    %1379 = vector.shape_cast %1378 : vector<1x1xf32> to vector<1x1xf32>
    %1380 = vector.broadcast %1379 : vector<1x1xf32> to vector<15x15xf32>
    %1381 = arith.select %1256, %1380, %1377 : vector<15x15xi1>, vector<15x15xf32>
    %1382 = vector.extract_strided_slice %1219 {offsets = [2, 7], sizes = [1, 1], strides = [1, 1]} : vector<5x9xf32> to vector<1x1xf32>
    %1383 = vector.shape_cast %1382 : vector<1x1xf32> to vector<1x1xf32>
    %1384 = vector.broadcast %1383 : vector<1x1xf32> to vector<15x15xf32>
    %1385 = arith.select %1261, %1384, %1381 : vector<15x15xi1>, vector<15x15xf32>
    %1386 = vector.extract_strided_slice %1219 {offsets = [2, 8], sizes = [1, 1], strides = [1, 1]} : vector<5x9xf32> to vector<1x1xf32>
    %1387 = vector.shape_cast %1386 : vector<1x1xf32> to vector<1x1xf32>
    %1388 = vector.broadcast %1387 : vector<1x1xf32> to vector<15x15xf32>
    %1389 = arith.select %1266, %1388, %1385 : vector<15x15xi1>, vector<15x15xf32>
    %c2_853 = arith.constant 2 : index
    %c0_854 = arith.constant 0 : index
    %c0_855 = arith.constant 0 : index
    %1390 = vector.load %arg5[%c2_853, %c0_854, %c0_855] : memref<5x15x15xf32, #tpu.memory_space<vmem>>, vector<1x15x15xf32>
    %1391 = vector.shape_cast %1390 : vector<1x15x15xf32> to vector<15x15xf32>
    %1392 = vector.shape_cast %1389 : vector<15x15xf32> to vector<1x15x15xf32>
    tpu.vector_store %arg5[%c2_853, %c0_854, %c0_855], %1392 {strides = array<i32>} : memref<5x15x15xf32, #tpu.memory_space<vmem>>, vector<1x15x15xf32>,
    %c3_856 = arith.constant 3 : index
    %c8_857 = arith.constant 8 : index
    %1393 = vector.load %arg3[%c3_856, %c8_857] : memref<8x16xf32, #tpu.memory_space<vmem>>, vector<1x1xf32>
    %1394 = vector.shape_cast %1393 : vector<1x1xf32> to vector<1x1xf32>
    %1395 = vector.broadcast %1394 : vector<1x1xf32> to vector<15x15xf32>
    %1396 = vector.extract_strided_slice %1219 {offsets = [3, 0], sizes = [1, 1], strides = [1, 1]} : vector<5x9xf32> to vector<1x1xf32>
    %1397 = vector.shape_cast %1396 : vector<1x1xf32> to vector<1x1xf32>
    %1398 = vector.broadcast %1397 : vector<1x1xf32> to vector<15x15xf32>
    %1399 = arith.select %1226, %1398, %1395 : vector<15x15xi1>, vector<15x15xf32>
    %1400 = vector.extract_strided_slice %1219 {offsets = [3, 1], sizes = [1, 1], strides = [1, 1]} : vector<5x9xf32> to vector<1x1xf32>
    %1401 = vector.shape_cast %1400 : vector<1x1xf32> to vector<1x1xf32>
    %1402 = vector.broadcast %1401 : vector<1x1xf32> to vector<15x15xf32>
    %1403 = arith.select %1231, %1402, %1399 : vector<15x15xi1>, vector<15x15xf32>
    %1404 = vector.extract_strided_slice %1219 {offsets = [3, 2], sizes = [1, 1], strides = [1, 1]} : vector<5x9xf32> to vector<1x1xf32>
    %1405 = vector.shape_cast %1404 : vector<1x1xf32> to vector<1x1xf32>
    %1406 = vector.broadcast %1405 : vector<1x1xf32> to vector<15x15xf32>
    %1407 = arith.select %1236, %1406, %1403 : vector<15x15xi1>, vector<15x15xf32>
    %1408 = vector.extract_strided_slice %1219 {offsets = [3, 3], sizes = [1, 1], strides = [1, 1]} : vector<5x9xf32> to vector<1x1xf32>
    %1409 = vector.shape_cast %1408 : vector<1x1xf32> to vector<1x1xf32>
    %1410 = vector.broadcast %1409 : vector<1x1xf32> to vector<15x15xf32>
    %1411 = arith.select %1241, %1410, %1407 : vector<15x15xi1>, vector<15x15xf32>
    %1412 = vector.extract_strided_slice %1219 {offsets = [3, 4], sizes = [1, 1], strides = [1, 1]} : vector<5x9xf32> to vector<1x1xf32>
    %1413 = vector.shape_cast %1412 : vector<1x1xf32> to vector<1x1xf32>
    %1414 = vector.broadcast %1413 : vector<1x1xf32> to vector<15x15xf32>
    %1415 = arith.select %1246, %1414, %1411 : vector<15x15xi1>, vector<15x15xf32>
    %1416 = vector.extract_strided_slice %1219 {offsets = [3, 5], sizes = [1, 1], strides = [1, 1]} : vector<5x9xf32> to vector<1x1xf32>
    %1417 = vector.shape_cast %1416 : vector<1x1xf32> to vector<1x1xf32>
    %1418 = vector.broadcast %1417 : vector<1x1xf32> to vector<15x15xf32>
    %1419 = arith.select %1251, %1418, %1415 : vector<15x15xi1>, vector<15x15xf32>
    %1420 = vector.extract_strided_slice %1219 {offsets = [3, 6], sizes = [1, 1], strides = [1, 1]} : vector<5x9xf32> to vector<1x1xf32>
    %1421 = vector.shape_cast %1420 : vector<1x1xf32> to vector<1x1xf32>
    %1422 = vector.broadcast %1421 : vector<1x1xf32> to vector<15x15xf32>
    %1423 = arith.select %1256, %1422, %1419 : vector<15x15xi1>, vector<15x15xf32>
    %1424 = vector.extract_strided_slice %1219 {offsets = [3, 7], sizes = [1, 1], strides = [1, 1]} : vector<5x9xf32> to vector<1x1xf32>
    %1425 = vector.shape_cast %1424 : vector<1x1xf32> to vector<1x1xf32>
    %1426 = vector.broadcast %1425 : vector<1x1xf32> to vector<15x15xf32>
    %1427 = arith.select %1261, %1426, %1423 : vector<15x15xi1>, vector<15x15xf32>
    %1428 = vector.extract_strided_slice %1219 {offsets = [3, 8], sizes = [1, 1], strides = [1, 1]} : vector<5x9xf32> to vector<1x1xf32>
    %1429 = vector.shape_cast %1428 : vector<1x1xf32> to vector<1x1xf32>
    %1430 = vector.broadcast %1429 : vector<1x1xf32> to vector<15x15xf32>
    %1431 = arith.select %1266, %1430, %1427 : vector<15x15xi1>, vector<15x15xf32>
    %c3_858 = arith.constant 3 : index
    %c0_859 = arith.constant 0 : index
    %c0_860 = arith.constant 0 : index
    %1432 = vector.load %arg5[%c3_858, %c0_859, %c0_860] : memref<5x15x15xf32, #tpu.memory_space<vmem>>, vector<1x15x15xf32>
    %1433 = vector.shape_cast %1432 : vector<1x15x15xf32> to vector<15x15xf32>
    %1434 = vector.shape_cast %1431 : vector<15x15xf32> to vector<1x15x15xf32>
    tpu.vector_store %arg5[%c3_858, %c0_859, %c0_860], %1434 {strides = array<i32>} : memref<5x15x15xf32, #tpu.memory_space<vmem>>, vector<1x15x15xf32>,
    %c4_861 = arith.constant 4 : index
    %c8_862 = arith.constant 8 : index
    %1435 = vector.load %arg3[%c4_861, %c8_862] : memref<8x16xf32, #tpu.memory_space<vmem>>, vector<1x1xf32>
    %1436 = vector.shape_cast %1435 : vector<1x1xf32> to vector<1x1xf32>
    %1437 = vector.broadcast %1436 : vector<1x1xf32> to vector<15x15xf32>
    %1438 = vector.extract_strided_slice %1219 {offsets = [4, 0], sizes = [1, 1], strides = [1, 1]} : vector<5x9xf32> to vector<1x1xf32>
    %1439 = vector.shape_cast %1438 : vector<1x1xf32> to vector<1x1xf32>
    %1440 = vector.broadcast %1439 : vector<1x1xf32> to vector<15x15xf32>
    %1441 = arith.select %1226, %1440, %1437 : vector<15x15xi1>, vector<15x15xf32>
    %1442 = vector.extract_strided_slice %1219 {offsets = [4, 1], sizes = [1, 1], strides = [1, 1]} : vector<5x9xf32> to vector<1x1xf32>
    %1443 = vector.shape_cast %1442 : vector<1x1xf32> to vector<1x1xf32>
    %1444 = vector.broadcast %1443 : vector<1x1xf32> to vector<15x15xf32>
    %1445 = arith.select %1231, %1444, %1441 : vector<15x15xi1>, vector<15x15xf32>
    %1446 = vector.extract_strided_slice %1219 {offsets = [4, 2], sizes = [1, 1], strides = [1, 1]} : vector<5x9xf32> to vector<1x1xf32>
    %1447 = vector.shape_cast %1446 : vector<1x1xf32> to vector<1x1xf32>
    %1448 = vector.broadcast %1447 : vector<1x1xf32> to vector<15x15xf32>
    %1449 = arith.select %1236, %1448, %1445 : vector<15x15xi1>, vector<15x15xf32>
    %1450 = vector.extract_strided_slice %1219 {offsets = [4, 3], sizes = [1, 1], strides = [1, 1]} : vector<5x9xf32> to vector<1x1xf32>
    %1451 = vector.shape_cast %1450 : vector<1x1xf32> to vector<1x1xf32>
    %1452 = vector.broadcast %1451 : vector<1x1xf32> to vector<15x15xf32>
    %1453 = arith.select %1241, %1452, %1449 : vector<15x15xi1>, vector<15x15xf32>
    %1454 = vector.extract_strided_slice %1219 {offsets = [4, 4], sizes = [1, 1], strides = [1, 1]} : vector<5x9xf32> to vector<1x1xf32>
    %1455 = vector.shape_cast %1454 : vector<1x1xf32> to vector<1x1xf32>
    %1456 = vector.broadcast %1455 : vector<1x1xf32> to vector<15x15xf32>
    %1457 = arith.select %1246, %1456, %1453 : vector<15x15xi1>, vector<15x15xf32>
    %1458 = vector.extract_strided_slice %1219 {offsets = [4, 5], sizes = [1, 1], strides = [1, 1]} : vector<5x9xf32> to vector<1x1xf32>
    %1459 = vector.shape_cast %1458 : vector<1x1xf32> to vector<1x1xf32>
    %1460 = vector.broadcast %1459 : vector<1x1xf32> to vector<15x15xf32>
    %1461 = arith.select %1251, %1460, %1457 : vector<15x15xi1>, vector<15x15xf32>
    %1462 = vector.extract_strided_slice %1219 {offsets = [4, 6], sizes = [1, 1], strides = [1, 1]} : vector<5x9xf32> to vector<1x1xf32>
    %1463 = vector.shape_cast %1462 : vector<1x1xf32> to vector<1x1xf32>
    %1464 = vector.broadcast %1463 : vector<1x1xf32> to vector<15x15xf32>
    %1465 = arith.select %1256, %1464, %1461 : vector<15x15xi1>, vector<15x15xf32>
    %1466 = vector.extract_strided_slice %1219 {offsets = [4, 7], sizes = [1, 1], strides = [1, 1]} : vector<5x9xf32> to vector<1x1xf32>
    %1467 = vector.shape_cast %1466 : vector<1x1xf32> to vector<1x1xf32>
    %1468 = vector.broadcast %1467 : vector<1x1xf32> to vector<15x15xf32>
    %1469 = arith.select %1261, %1468, %1465 : vector<15x15xi1>, vector<15x15xf32>
    %1470 = vector.extract_strided_slice %1219 {offsets = [4, 8], sizes = [1, 1], strides = [1, 1]} : vector<5x9xf32> to vector<1x1xf32>
    %1471 = vector.shape_cast %1470 : vector<1x1xf32> to vector<1x1xf32>
    %1472 = vector.broadcast %1471 : vector<1x1xf32> to vector<15x15xf32>
    %1473 = arith.select %1266, %1472, %1469 : vector<15x15xi1>, vector<15x15xf32>
    %c4_863 = arith.constant 4 : index
    %c0_864 = arith.constant 0 : index
    %c0_865 = arith.constant 0 : index
    %1474 = vector.load %arg5[%c4_863, %c0_864, %c0_865] : memref<5x15x15xf32, #tpu.memory_space<vmem>>, vector<1x15x15xf32>
    %1475 = vector.shape_cast %1474 : vector<1x15x15xf32> to vector<15x15xf32>
    %1476 = vector.shape_cast %1473 : vector<15x15xf32> to vector<1x15x15xf32>
    tpu.vector_store %arg5[%c4_863, %c0_864, %c0_865], %1476 {strides = array<i32>} : memref<5x15x15xf32, #tpu.memory_space<vmem>>, vector<1x15x15xf32>,
    return
  }
  func.func @transform_0(%arg0: i32) -> (i32, i32, i32) {
    %c0_i32 = arith.constant 0 : i32
    %c0_i32_0 = arith.constant 0 : i32
    %c0_i32_1 = arith.constant 0 : i32
    %c0_i32_2 = arith.constant 0 : i32
    return %c0_i32, %c0_i32_0, %c0_i32_1 : i32, i32, i32
  }
  func.func @transform_1(%arg0: i32) -> (i32, i32, i32) {
    %c0_i32 = arith.constant 0 : i32
    %c0_i32_0 = arith.constant 0 : i32
    %c0_i32_1 = arith.constant 0 : i32
    %c0_i32_2 = arith.constant 0 : i32
    return %c0_i32, %c0_i32_0, %c0_i32_1 : i32, i32, i32
  }
  func.func @transform_2(%arg0: i32) -> (i32, i32) {
    %c0_i32 = arith.constant 0 : i32
    %c0_i32_0 = arith.constant 0 : i32
    %c0_i32_1 = arith.constant 0 : i32
    return %c0_i32, %c0_i32_0 : i32, i32
  }
  func.func @transform_3(%arg0: i32) -> i32 {
    %c0_i32 = arith.constant 0 : i32
    %c0_i32_0 = arith.constant 0 : i32
    return %c0_i32 : i32
  }
  func.func @transform_4(%arg0: i32) -> (i32, i32, i32) {
    %c0_i32 = arith.constant 0 : i32
    %c0_i32_0 = arith.constant 0 : i32
    %c0_i32_1 = arith.constant 0 : i32
    %c0_i32_2 = arith.constant 0 : i32
    return %c0_i32, %c0_i32_0, %c0_i32_1 : i32, i32, i32
  }
}

</mosaic_0001>

<llo_original>
// kernel: model_forward.1
$region0: #{model_forward.1}
  #allocation0 [shape = 'u32[]', space=smem, size = 0x4, offset = 0x4, fixed_abs, tag = 'smem constant byte address 0x4 - core index']
  #allocation1 [shape = 'u32[144,128]{1,0:T(1,128)}', space=vmem, size = 0x12000, scoped, tag = 'internal scratch']
  #allocation2 [shape = 'f32[3,51,52]{2,1,0:T(8,128)}', space=vmem, size = 0x15000, scoped, tag = 'scratch operand']
  %s0 = inlined_call_operand.vmem [shape: f32[4,51,52], index: 0, kind: input, shape index: {}]
  %s1 = inlined_call_operand.vmem [shape: f32[42,8,52], index: 1, kind: input, shape index: {}]
  %s2 = inlined_call_operand.vmem [shape: f32[8,16], index: 2, kind: input, shape index: {}]
  %s3 = inlined_call_operand.vmem [shape: f32[16], index: 3, kind: input, shape index: {}]
  %s4 = inlined_call_operand.vmem [shape: f32[5,15,15], index: 4, kind: output, shape index: {}]
  %s5 = sld [smem:[#allocation0]]
  $region30: #{model_forward.1} parent=0
    _
  %s7 = ssub.s32 1, %s5
  %s8 = scalar_select 0, %s7, %s5
  $region1: #{model_forward.1} parent=0
    #allocation3 [shape = 'u8[512]{0}', space=smem, size = 0x200, scoped, tag = 'input window, operand 3, single buffered']
    #allocation4 [shape = 's32[1]{0}', space=sflag, size = 0x4, scoped, tag = 'scoped memory for model_forward.1']
    %9 = vsyncpa [#allocation4], 0
    // Predicated region
    $region2: #{model_forward.1} parent=1 // pred_check
      _
    $region3: #{model_forward.1} parent=1 // pred_check_branch
      %11 = sbr.rel (0) target = $region5
    $region4: #{model_forward.1} parent=1 // pred_region
      _
    $region5: #{model_forward.1} parent=1 // pred_fallthru
      _
    // Predicated region
    $region6: #{model_forward.1} parent=1 // pred_check
      _
    $region7: #{model_forward.1} parent=1 // pred_check_branch
      %13 = sbr.rel (0) target = $region9
    $region8: #{model_forward.1} parent=1 // pred_region
      _
    $region9: #{model_forward.1} parent=1 // pred_fallthru
      _
    // Predicated region
    $region10: #{model_forward.1} parent=1 // pred_check
      _
    $region11: #{model_forward.1} parent=1 // pred_check_branch
      %15 = sbr.rel (0) target = $region13
    $region12: #{model_forward.1} parent=1 // pred_region
      _
    $region13: #{model_forward.1} parent=1 // pred_fallthru
      _
    // Predicated region
    $region14: #{model_forward.1} parent=1 // pred_check
      _
    $region15: #{model_forward.1} parent=1 // pred_check_branch
      %17 = sbr.rel (0) target = $region17
    $region16: #{model_forward.1} parent=1 // pred_region
      %s19 = ssub.s32 16, 16
      %20 = vsyncadd [#allocation4], %s19
      %s22 = sshll.u32 %s3, 4
      %s23 = int_to_ptr.vmem [resolvable:$true] %s22
      %25 = dma.vmem_to_smem %s23, 16, [#allocation3], [#allocation4]
    $region17: #{model_forward.1} parent=1 // pred_fallthru
      _
    // Predicated region
    $region18: #{model_forward.1} parent=1 // pred_check
      _
    $region19: #{model_forward.1} parent=1 // pred_check_branch
      %27 = sbr.rel (0) target = $region21
    $region20: #{model_forward.1} parent=1 // pred_region
      %28 = dma.done [#allocation4], 16
    $region21: #{model_forward.1} parent=1 // pred_fallthru
      _
    %29 = sfence
    %v30 = vld [vmem:[%s0] sm:$0xff]
    %v31 = vld [vmem:[%s0 + $0x8] sm:$0xff]
    %v32 = vld [vmem:[%s0 + $0x10] sm:$0xff]
    %v33 = vld [vmem:[%s0 + $0x18] sm:$0xff]
    %v34 = vld [vmem:[%s0 + $0x20] sm:$0xff]
    %v35 = vld [vmem:[%s0 + $0x28] sm:$0xff]
    %v36 = vld [vmem:[%s0 + $0x30] sm:$0x7]
    %s37 = scalar_lea.vmem %s0, 56
    %v38 = vld [vmem:[%s37] sm:$0xff]
    %v39 = vld [vmem:[%s37 + $0x8] sm:$0xff]
    %v40 = vld [vmem:[%s37 + $0x10] sm:$0xff]
    %v41 = vld [vmem:[%s37 + $0x18] sm:$0xff]
    %v42 = vld [vmem:[%s37 + $0x20] sm:$0xff]
    %v43 = vld [vmem:[%s37 + $0x28] sm:$0xff]
    %v44 = vld [vmem:[%s37 + $0x30] sm:$0x7]
    %s45 = scalar_lea.vmem %s0, 112
    %v46 = vld [vmem:[%s45] sm:$0xff]
    %v47 = vld [vmem:[%s45 + $0x8] sm:$0xff]
    %v48 = vld [vmem:[%s45 + $0x10] sm:$0xff]
    %v49 = vld [vmem:[%s45 + $0x18] sm:$0xff]
    %v50 = vld [vmem:[%s45 + $0x20] sm:$0xff]
    %v51 = vld [vmem:[%s45 + $0x28] sm:$0xff]
    %v52 = vld [vmem:[%s45 + $0x30] sm:$0x7]
    %s53 = scalar_lea.vmem %s0, 168
    %v54 = vld [vmem:[%s53] sm:$0xff]
    %v55 = vld [vmem:[%s53 + $0x8] sm:$0xff]
    %v56 = vld [vmem:[%s53 + $0x10] sm:$0xff]
    %v57 = vld [vmem:[%s53 + $0x18] sm:$0xff]
    %v58 = vld [vmem:[%s53 + $0x20] sm:$0xff]
    %v59 = vld [vmem:[%s53 + $0x28] sm:$0xff]
    %v60 = vld [vmem:[%s53 + $0x30] sm:$0x7]
    %s61 = sld [smem:[#allocation3]]
    %v62 = vstv %s61
    %v63 = vmul.f32 %v30, %v62
    %v64 = vmul.f32 %v31, %v62
    %v65 = vmul.f32 %v32, %v62
    %v66 = vmul.f32 %v33, %v62
    %v67 = vmul.f32 %v34, %v62
    %v68 = vmul.f32 %v35, %v62
    %v69 = vmul.f32 %v36, %v62
    %s70 = sld [smem:[#allocation3 + $0x1]]
    %v71 = vstv %s70
    %v72 = vmul.f32 %v38, %v71
    %v73 = vmul.f32 %v39, %v71
    %v74 = vmul.f32 %v40, %v71
    %v75 = vmul.f32 %v41, %v71
    %v76 = vmul.f32 %v42, %v71
    %v77 = vmul.f32 %v43, %v71
    %v78 = vmul.f32 %v44, %v71
    %v79 = vadd.f32 %v63, %v72
    %v80 = vadd.f32 %v64, %v73
    %v81 = vadd.f32 %v65, %v74
    %v82 = vadd.f32 %v66, %v75
    %v83 = vadd.f32 %v67, %v76
    %v84 = vadd.f32 %v68, %v77
    %v85 = vadd.f32 %v69, %v78
    %s86 = sld [smem:[#allocation3 + $0x2]]
    %v87 = vstv %s86
    %v88 = vmul.f32 %v46, %v87
    %v89 = vmul.f32 %v47, %v87
    %v90 = vmul.f32 %v48, %v87
    %v91 = vmul.f32 %v49, %v87
    %v92 = vmul.f32 %v50, %v87
    %v93 = vmul.f32 %v51, %v87
    %v94 = vmul.f32 %v52, %v87
    %v95 = vadd.f32 %v79, %v88
    %v96 = vadd.f32 %v80, %v89
    %v97 = vadd.f32 %v81, %v90
    %v98 = vadd.f32 %v82, %v91
    %v99 = vadd.f32 %v83, %v92
    %v100 = vadd.f32 %v84, %v93
    %v101 = vadd.f32 %v85, %v94
    %s102 = sld [smem:[#allocation3 + $0x3]]
    %v103 = vstv %s102
    %v104 = vmul.f32 %v54, %v103
    %v105 = vmul.f32 %v55, %v103
    %v106 = vmul.f32 %v56, %v103
    %v107 = vmul.f32 %v57, %v103
    %v108 = vmul.f32 %v58, %v103
    %v109 = vmul.f32 %v59, %v103
    %v110 = vmul.f32 %v60, %v103
    %v111 = vadd.f32 %v95, %v104
    %v112 = vadd.f32 %v96, %v105
    %v113 = vadd.f32 %v97, %v106
    %v114 = vadd.f32 %v98, %v107
    %v115 = vadd.f32 %v99, %v108
    %v116 = vadd.f32 %v100, %v109
    %v117 = vadd.f32 %v101, %v110
    %s118 = sld [smem:[#allocation3 + $0xc]]
    %v119 = vstv %s118
    %v120 = vadd.f32 %v111, %v119
    %v121 = vadd.f32 %v112, %v119
    %v122 = vadd.f32 %v113, %v119
    %v123 = vadd.f32 %v114, %v119
    %v124 = vadd.f32 %v115, %v119
    %v125 = vadd.f32 %v116, %v119
    %v126 = vadd.f32 %v117, %v119
    %v127 = vmul.f32 %v120, 0.5
    %v128 = vmul.f32 %v121, 0.5
    %v129 = vmul.f32 %v122, 0.5
    %v130 = vmul.f32 %v123, 0.5
    %v131 = vmul.f32 %v124, 0.5
    %v132 = vmul.f32 %v125, 0.5
    %v133 = vmul.f32 %v126, 0.5
    %v134 = vmul.f32 %v120, 0.5011512
    %v135 = vmul.f32 %v121, 0.5011512
    %v136 = vmul.f32 %v122, 0.5011512
    %v137 = vmul.f32 %v123, 0.5011512
    %v138 = vmul.f32 %v124, 0.5011512
    %v139 = vmul.f32 %v125, 0.5011512
    %v140 = vmul.f32 %v126, 0.5011512
    %vm141 = vcmp.lt.f32.partialorder %v134, 0.0
    %vm142 = vcmp.lt.f32.partialorder %v135, 0.0
    %vm143 = vcmp.lt.f32.partialorder %v136, 0.0
    %vm144 = vcmp.lt.f32.partialorder %v137, 0.0
    %vm145 = vcmp.lt.f32.partialorder %v138, 0.0
    %vm146 = vcmp.lt.f32.partialorder %v139, 0.0
    %vm147 = vcmp.lt.f32.partialorder %v140, 0.0
    %v148 = vsel %vm141, -1.0, 1.0
    %v149 = vsel %vm142, -1.0, 1.0
    %v150 = vsel %vm143, -1.0, 1.0
    %v151 = vsel %vm144, -1.0, 1.0
    %v152 = vsel %vm145, -1.0, 1.0
    %v153 = vsel %vm146, -1.0, 1.0
    %v154 = vsel %vm147, -1.0, 1.0
    %v155 = vand.u32 2147483647, %v134
    %v156 = vand.u32 2147483647, %v135
    %v157 = vand.u32 2147483647, %v136
    %v158 = vand.u32 2147483647, %v137
    %v159 = vand.u32 2147483647, %v138
    %v160 = vand.u32 2147483647, %v139
    %v161 = vand.u32 2147483647, %v140
    %v162 = vmul.f32 %v155, 0.3275911
    %v163 = vmul.f32 %v156, 0.3275911
    %v164 = vmul.f32 %v157, 0.3275911
    %v165 = vmul.f32 %v158, 0.3275911
    %v166 = vmul.f32 %v159, 0.3275911
    %v167 = vmul.f32 %v160, 0.3275911
    %v168 = vmul.f32 %v161, 0.3275911
    %v169 = vadd.f32 %v162, 1.0
    %v170 = vadd.f32 %v163, 1.0
    %v171 = vadd.f32 %v164, 1.0
    %v172 = vadd.f32 %v165, 1.0
    %v173 = vadd.f32 %v166, 1.0
    %v174 = vadd.f32 %v167, 1.0
    %v175 = vadd.f32 %v168, 1.0
    %v176 = vrcp.pop %v169
    %v177 = vmul.f32 1.0, %v176
    %v178 = vrcp.pop %v170
    %v179 = vmul.f32 1.0, %v178
    %v180 = vrcp.pop %v171
    %v181 = vmul.f32 1.0, %v180
    %v182 = vrcp.pop %v172
    %v183 = vmul.f32 1.0, %v182
    %v184 = vrcp.pop %v173
    %v185 = vmul.f32 1.0, %v184
    %v186 = vrcp.pop %v174
    %v187 = vmul.f32 1.0, %v186
    %v188 = vrcp.pop %v175
    %v189 = vmul.f32 1.0, %v188
    %v190 = vmul.f32 %v177, 1.0614054
    %v191 = vmul.f32 %v179, 1.0614054
    %v192 = vmul.f32 %v181, 1.0614054
    %v193 = vmul.f32 %v183, 1.0614054
    %v194 = vmul.f32 %v185, 1.0614054
    %v195 = vmul.f32 %v187, 1.0614054
    %v196 = vmul.f32 %v189, 1.0614054
    %v197 = vadd.f32 %v190, -1.4531521
    %v198 = vadd.f32 %v191, -1.4531521
    %v199 = vadd.f32 %v192, -1.4531521
    %v200 = vadd.f32 %v193, -1.4531521
    %v201 = vadd.f32 %v194, -1.4531521
    %v202 = vadd.f32 %v195, -1.4531521
    %v203 = vadd.f32 %v196, -1.4531521
    %v204 = vmul.f32 %v197, %v177
    %v205 = vmul.f32 %v198, %v179
    %v206 = vmul.f32 %v199, %v181
    %v207 = vmul.f32 %v200, %v183
    %v208 = vmul.f32 %v201, %v185
    %v209 = vmul.f32 %v202, %v187
    %v210 = vmul.f32 %v203, %v189
    %v211 = vadd.f32 %v204, 1.4214138
    %v212 = vadd.f32 %v205, 1.4214138
    %v213 = vadd.f32 %v206, 1.4214138
    %v214 = vadd.f32 %v207, 1.4214138
    %v215 = vadd.f32 %v208, 1.4214138
    %v216 = vadd.f32 %v209, 1.4214138
    %v217 = vadd.f32 %v210, 1.4214138
    %v218 = vmul.f32 %v211, %v177
    %v219 = vmul.f32 %v212, %v179
    %v220 = vmul.f32 %v213, %v181
    %v221 = vmul.f32 %v214, %v183
    %v222 = vmul.f32 %v215, %v185
    %v223 = vmul.f32 %v216, %v187
    %v224 = vmul.f32 %v217, %v189
    %v225 = vadd.f32 %v218, -0.28449672
    %v226 = vadd.f32 %v219, -0.28449672
    %v227 = vadd.f32 %v220, -0.28449672
    %v228 = vadd.f32 %v221, -0.28449672
    %v229 = vadd.f32 %v222, -0.28449672
    %v230 = vadd.f32 %v223, -0.28449672
    %v231 = vadd.f32 %v224, -0.28449672
    %v232 = vmul.f32 %v225, %v177
    %v233 = vmul.f32 %v226, %v179
    %v234 = vmul.f32 %v227, %v181
    %v235 = vmul.f32 %v228, %v183
    %v236 = vmul.f32 %v229, %v185
    %v237 = vmul.f32 %v230, %v187
    %v238 = vmul.f32 %v231, %v189
    %v239 = vadd.f32 %v232, 0.2548296
    %v240 = vadd.f32 %v233, 0.2548296
    %v241 = vadd.f32 %v234, 0.2548296
    %v242 = vadd.f32 %v235, 0.2548296
    %v243 = vadd.f32 %v236, 0.2548296
    %v244 = vadd.f32 %v237, 0.2548296
    %v245 = vadd.f32 %v238, 0.2548296
    %v246 = vmul.f32 %v239, %v177
    %v247 = vmul.f32 %v240, %v179
    %v248 = vmul.f32 %v241, %v181
    %v249 = vmul.f32 %v242, %v183
    %v250 = vmul.f32 %v243, %v185
    %v251 = vmul.f32 %v244, %v187
    %v252 = vmul.f32 %v245, %v189
    %v253 = vsub.f32 0.0, %v155
    %v254 = vsub.f32 0.0, %v156
    %v255 = vsub.f32 0.0, %v157
    %v256 = vsub.f32 0.0, %v158
    %v257 = vsub.f32 0.0, %v159
    %v258 = vsub.f32 0.0, %v160
    %v259 = vsub.f32 0.0, %v161
    %v260 = vmul.f32 %v253, %v155
    %v261 = vmul.f32 %v254, %v156
    %v262 = vmul.f32 %v255, %v157
    %v263 = vmul.f32 %v256, %v158
    %v264 = vmul.f32 %v257, %v159
    %v265 = vmul.f32 %v258, %v160
    %v266 = vmul.f32 %v259, %v161
    %v267 = vmul.f32 %v260, 1.442695
    %v268 = vpow.pop %v267
    %v269 = vmul.f32 %v261, 1.442695
    %v270 = vpow.pop %v269
    %v271 = vmul.f32 %v262, 1.442695
    %v272 = vpow.pop %v271
    %v273 = vmul.f32 %v263, 1.442695
    %v274 = vpow.pop %v273
    %v275 = vmul.f32 %v264, 1.442695
    %v276 = vpow.pop %v275
    %v277 = vmul.f32 %v265, 1.442695
    %v278 = vpow.pop %v277
    %v279 = vmul.f32 %v266, 1.442695
    %v280 = vpow.pop %v279
    %v281 = vmul.f32 %v246, %v268
    %v282 = vmul.f32 %v247, %v270
    %v283 = vmul.f32 %v248, %v272
    %v284 = vmul.f32 %v249, %v274
    %v285 = vmul.f32 %v250, %v276
    %v286 = vmul.f32 %v251, %v278
    %v287 = vmul.f32 %v252, %v280
    %v288 = vsub.f32 1.0, %v281
    %v289 = vsub.f32 1.0, %v282
    %v290 = vsub.f32 1.0, %v283
    %v291 = vsub.f32 1.0, %v284
    %v292 = vsub.f32 1.0, %v285
    %v293 = vsub.f32 1.0, %v286
    %v294 = vsub.f32 1.0, %v287
    %v295 = vmul.f32 %v148, %v288
    %v296 = vmul.f32 %v149, %v289
    %v297 = vmul.f32 %v150, %v290
    %v298 = vmul.f32 %v151, %v291
    %v299 = vmul.f32 %v152, %v292
    %v300 = vmul.f32 %v153, %v293
    %v301 = vmul.f32 %v154, %v294
    %v302 = vadd.f32 %v295, 1.0
    %v303 = vadd.f32 %v296, 1.0
    %v304 = vadd.f32 %v297, 1.0
    %v305 = vadd.f32 %v298, 1.0
    %v306 = vadd.f32 %v299, 1.0
    %v307 = vadd.f32 %v300, 1.0
    %v308 = vadd.f32 %v301, 1.0
    %v309 = vmul.f32 %v127, %v302
    %v310 = vmul.f32 %v128, %v303
    %v311 = vmul.f32 %v129, %v304
    %v312 = vmul.f32 %v130, %v305
    %v313 = vmul.f32 %v131, %v306
    %v314 = vmul.f32 %v132, %v307
    %v315 = vmul.f32 %v133, %v308
    %vm316 = vcmask 424960
    %317 = vst.msk [vmem:[#allocation2] sm:$0xff] %vm316, %v309
    %318 = vst.msk [vmem:[#allocation2 + $0x8] sm:$0xff] %vm316, %v310
    %319 = vst.msk [vmem:[#allocation2 + $0x10] sm:$0xff] %vm316, %v311
    %320 = vst.msk [vmem:[#allocation2 + $0x18] sm:$0xff] %vm316, %v312
    %321 = vst.msk [vmem:[#allocation2 + $0x20] sm:$0xff] %vm316, %v313
    %322 = vst.msk [vmem:[#allocation2 + $0x28] sm:$0xff] %vm316, %v314
    %vm323 = vcmask 419840
    %324 = vst.msk [vmem:[#allocation2 + $0x30] sm:$0x7] %vm323, %v315
    %s325 = sld [smem:[#allocation3 + $0x4]]
    %v326 = vstv %s325
    %v327 = vmul.f32 %v30, %v326
    %v328 = vmul.f32 %v31, %v326
    %v329 = vmul.f32 %v32, %v326
    %v330 = vmul.f32 %v33, %v326
    %v331 = vmul.f32 %v34, %v326
    %v332 = vmul.f32 %v35, %v326
    %v333 = vmul.f32 %v36, %v326
    %s334 = sld [smem:[#allocation3 + $0x5]]
    %v335 = vstv %s334
    %v336 = vmul.f32 %v38, %v335
    %v337 = vmul.f32 %v39, %v335
    %v338 = vmul.f32 %v40, %v335
    %v339 = vmul.f32 %v41, %v335
    %v340 = vmul.f32 %v42, %v335
    %v341 = vmul.f32 %v43, %v335
    %v342 = vmul.f32 %v44, %v335
    %v343 = vadd.f32 %v327, %v336
    %v344 = vadd.f32 %v328, %v337
    %v345 = vadd.f32 %v329, %v338
    %v346 = vadd.f32 %v330, %v339
    %v347 = vadd.f32 %v331, %v340
    %v348 = vadd.f32 %v332, %v341
    %v349 = vadd.f32 %v333, %v342
    %s350 = sld [smem:[#allocation3 + $0x6]]
    %v351 = vstv %s350
    %v352 = vmul.f32 %v46, %v351
    %v353 = vmul.f32 %v47, %v351
    %v354 = vmul.f32 %v48, %v351
    %v355 = vmul.f32 %v49, %v351
    %v356 = vmul.f32 %v50, %v351
    %v357 = vmul.f32 %v51, %v351
    %v358 = vmul.f32 %v52, %v351
    %v359 = vadd.f32 %v343, %v352
    %v360 = vadd.f32 %v344, %v353
    %v361 = vadd.f32 %v345, %v354
    %v362 = vadd.f32 %v346, %v355
    %v363 = vadd.f32 %v347, %v356
    %v364 = vadd.f32 %v348, %v357
    %v365 = vadd.f32 %v349, %v358
    %s366 = sld [smem:[#allocation3 + $0x7]]
    %v367 = vstv %s366
    %v368 = vmul.f32 %v54, %v367
    %v369 = vmul.f32 %v55, %v367
    %v370 = vmul.f32 %v56, %v367
    %v371 = vmul.f32 %v57, %v367
    %v372 = vmul.f32 %v58, %v367
    %v373 = vmul.f32 %v59, %v367
    %v374 = vmul.f32 %v60, %v367
    %v375 = vadd.f32 %v359, %v368
    %v376 = vadd.f32 %v360, %v369
    %v377 = vadd.f32 %v361, %v370
    %v378 = vadd.f32 %v362, %v371
    %v379 = vadd.f32 %v363, %v372
    %v380 = vadd.f32 %v364, %v373
    %v381 = vadd.f32 %v365, %v374
    %s382 = sld [smem:[#allocation3 + $0xd]]
    %v383 = vstv %s382
    %v384 = vadd.f32 %v375, %v383
    %v385 = vadd.f32 %v376, %v383
    %v386 = vadd.f32 %v377, %v383
    %v387 = vadd.f32 %v378, %v383
    %v388 = vadd.f32 %v379, %v383
    %v389 = vadd.f32 %v380, %v383
    %v390 = vadd.f32 %v381, %v383
    %v391 = vmul.f32 %v384, 0.5
    %v392 = vmul.f32 %v385, 0.5
    %v393 = vmul.f32 %v386, 0.5
    %v394 = vmul.f32 %v387, 0.5
    %v395 = vmul.f32 %v388, 0.5
    %v396 = vmul.f32 %v389, 0.5
    %v397 = vmul.f32 %v390, 0.5
    %v398 = vmul.f32 %v384, 0.5011512
    %v399 = vmul.f32 %v385, 0.5011512
    %v400 = vmul.f32 %v386, 0.5011512
    %v401 = vmul.f32 %v387, 0.5011512
    %v402 = vmul.f32 %v388, 0.5011512
    %v403 = vmul.f32 %v389, 0.5011512
    %v404 = vmul.f32 %v390, 0.5011512
    %vm405 = vcmp.lt.f32.partialorder %v398, 0.0
    %vm406 = vcmp.lt.f32.partialorder %v399, 0.0
    %vm407 = vcmp.lt.f32.partialorder %v400, 0.0
    %vm408 = vcmp.lt.f32.partialorder %v401, 0.0
    %vm409 = vcmp.lt.f32.partialorder %v402, 0.0
    %vm410 = vcmp.lt.f32.partialorder %v403, 0.0
    %vm411 = vcmp.lt.f32.partialorder %v404, 0.0
    %v412 = vsel %vm405, -1.0, 1.0
    %v413 = vsel %vm406, -1.0, 1.0
    %v414 = vsel %vm407, -1.0, 1.0
    %v415 = vsel %vm408, -1.0, 1.0
    %v416 = vsel %vm409, -1.0, 1.0
    %v417 = vsel %vm410, -1.0, 1.0
    %v418 = vsel %vm411, -1.0, 1.0
    %v419 = vand.u32 2147483647, %v398
    %v420 = vand.u32 2147483647, %v399
    %v421 = vand.u32 2147483647, %v400
    %v422 = vand.u32 2147483647, %v401
    %v423 = vand.u32 2147483647, %v402
    %v424 = vand.u32 2147483647, %v403
    %v425 = vand.u32 2147483647, %v404
    %v426 = vmul.f32 %v419, 0.3275911
    %v427 = vmul.f32 %v420, 0.3275911
    %v428 = vmul.f32 %v421, 0.3275911
    %v429 = vmul.f32 %v422, 0.3275911
    %v430 = vmul.f32 %v423, 0.3275911
    %v431 = vmul.f32 %v424, 0.3275911
    %v432 = vmul.f32 %v425, 0.3275911
    %v433 = vadd.f32 %v426, 1.0
    %v434 = vadd.f32 %v427, 1.0
    %v435 = vadd.f32 %v428, 1.0
    %v436 = vadd.f32 %v429, 1.0
    %v437 = vadd.f32 %v430, 1.0
    %v438 = vadd.f32 %v431, 1.0
    %v439 = vadd.f32 %v432, 1.0
    %v440 = vrcp.pop %v433
    %v441 = vmul.f32 1.0, %v440
    %v442 = vrcp.pop %v434
    %v443 = vmul.f32 1.0, %v442
    %v444 = vrcp.pop %v435
    %v445 = vmul.f32 1.0, %v444
    %v446 = vrcp.pop %v436
    %v447 = vmul.f32 1.0, %v446
    %v448 = vrcp.pop %v437
    %v449 = vmul.f32 1.0, %v448
    %v450 = vrcp.pop %v438
    %v451 = vmul.f32 1.0, %v450
    %v452 = vrcp.pop %v439
    %v453 = vmul.f32 1.0, %v452
    %v454 = vmul.f32 %v441, 1.0614054
    %v455 = vmul.f32 %v443, 1.0614054
    %v456 = vmul.f32 %v445, 1.0614054
    %v457 = vmul.f32 %v447, 1.0614054
    %v458 = vmul.f32 %v449, 1.0614054
    %v459 = vmul.f32 %v451, 1.0614054
    %v460 = vmul.f32 %v453, 1.0614054
    %v461 = vadd.f32 %v454, -1.4531521
    %v462 = vadd.f32 %v455, -1.4531521
    %v463 = vadd.f32 %v456, -1.4531521
    %v464 = vadd.f32 %v457, -1.4531521
    %v465 = vadd.f32 %v458, -1.4531521
    %v466 = vadd.f32 %v459, -1.4531521
    %v467 = vadd.f32 %v460, -1.4531521
    %v468 = vmul.f32 %v461, %v441
    %v469 = vmul.f32 %v462, %v443
    %v470 = vmul.f32 %v463, %v445
    %v471 = vmul.f32 %v464, %v447
    %v472 = vmul.f32 %v465, %v449
    %v473 = vmul.f32 %v466, %v451
    %v474 = vmul.f32 %v467, %v453
    %v475 = vadd.f32 %v468, 1.4214138
    %v476 = vadd.f32 %v469, 1.4214138
    %v477 = vadd.f32 %v470, 1.4214138
    %v478 = vadd.f32 %v471, 1.4214138
    %v479 = vadd.f32 %v472, 1.4214138
    %v480 = vadd.f32 %v473, 1.4214138
    %v481 = vadd.f32 %v474, 1.4214138
    %v482 = vmul.f32 %v475, %v441
    %v483 = vmul.f32 %v476, %v443
    %v484 = vmul.f32 %v477, %v445
    %v485 = vmul.f32 %v478, %v447
    %v486 = vmul.f32 %v479, %v449
    %v487 = vmul.f32 %v480, %v451
    %v488 = vmul.f32 %v481, %v453
    %v489 = vadd.f32 %v482, -0.28449672
    %v490 = vadd.f32 %v483, -0.28449672
    %v491 = vadd.f32 %v484, -0.28449672
    %v492 = vadd.f32 %v485, -0.28449672
    %v493 = vadd.f32 %v486, -0.28449672
    %v494 = vadd.f32 %v487, -0.28449672
    %v495 = vadd.f32 %v488, -0.28449672
    %v496 = vmul.f32 %v489, %v441
    %v497 = vmul.f32 %v490, %v443
    %v498 = vmul.f32 %v491, %v445
    %v499 = vmul.f32 %v492, %v447
    %v500 = vmul.f32 %v493, %v449
    %v501 = vmul.f32 %v494, %v451
    %v502 = vmul.f32 %v495, %v453
    %v503 = vadd.f32 %v496, 0.2548296
    %v504 = vadd.f32 %v497, 0.2548296
    %v505 = vadd.f32 %v498, 0.2548296
    %v506 = vadd.f32 %v499, 0.2548296
    %v507 = vadd.f32 %v500, 0.2548296
    %v508 = vadd.f32 %v501, 0.2548296
    %v509 = vadd.f32 %v502, 0.2548296
    %v510 = vmul.f32 %v503, %v441
    %v511 = vmul.f32 %v504, %v443
    %v512 = vmul.f32 %v505, %v445
    %v513 = vmul.f32 %v506, %v447
    %v514 = vmul.f32 %v507, %v449
    %v515 = vmul.f32 %v508, %v451
    %v516 = vmul.f32 %v509, %v453
    %v517 = vsub.f32 0.0, %v419
    %v518 = vsub.f32 0.0, %v420
    %v519 = vsub.f32 0.0, %v421
    %v520 = vsub.f32 0.0, %v422
    %v521 = vsub.f32 0.0, %v423
    %v522 = vsub.f32 0.0, %v424
    %v523 = vsub.f32 0.0, %v425
    %v524 = vmul.f32 %v517, %v419
    %v525 = vmul.f32 %v518, %v420
    %v526 = vmul.f32 %v519, %v421
    %v527 = vmul.f32 %v520, %v422
    %v528 = vmul.f32 %v521, %v423
    %v529 = vmul.f32 %v522, %v424
    %v530 = vmul.f32 %v523, %v425
    %v531 = vmul.f32 %v524, 1.442695
    %v532 = vpow.pop %v531
    %v533 = vmul.f32 %v525, 1.442695
    %v534 = vpow.pop %v533
    %v535 = vmul.f32 %v526, 1.442695
    %v536 = vpow.pop %v535
    %v537 = vmul.f32 %v527, 1.442695
    %v538 = vpow.pop %v537
    %v539 = vmul.f32 %v528, 1.442695
    %v540 = vpow.pop %v539
    %v541 = vmul.f32 %v529, 1.442695
    %v542 = vpow.pop %v541
    %v543 = vmul.f32 %v530, 1.442695
    %v544 = vpow.pop %v543
    %v545 = vmul.f32 %v510, %v532
    %v546 = vmul.f32 %v511, %v534
    %v547 = vmul.f32 %v512, %v536
    %v548 = vmul.f32 %v513, %v538
    %v549 = vmul.f32 %v514, %v540
    %v550 = vmul.f32 %v515, %v542
    %v551 = vmul.f32 %v516, %v544
    %v552 = vsub.f32 1.0, %v545
    %v553 = vsub.f32 1.0, %v546
    %v554 = vsub.f32 1.0, %v547
    %v555 = vsub.f32 1.0, %v548
    %v556 = vsub.f32 1.0, %v549
    %v557 = vsub.f32 1.0, %v550
    %v558 = vsub.f32 1.0, %v551
    %v559 = vmul.f32 %v412, %v552
    %v560 = vmul.f32 %v413, %v553
    %v561 = vmul.f32 %v414, %v554
    %v562 = vmul.f32 %v415, %v555
    %v563 = vmul.f32 %v416, %v556
    %v564 = vmul.f32 %v417, %v557
    %v565 = vmul.f32 %v418, %v558
    %v566 = vadd.f32 %v559, 1.0
    %v567 = vadd.f32 %v560, 1.0
    %v568 = vadd.f32 %v561, 1.0
    %v569 = vadd.f32 %v562, 1.0
    %v570 = vadd.f32 %v563, 1.0
    %v571 = vadd.f32 %v564, 1.0
    %v572 = vadd.f32 %v565, 1.0
    %v573 = vmul.f32 %v391, %v566
    %v574 = vmul.f32 %v392, %v567
    %v575 = vmul.f32 %v393, %v568
    %v576 = vmul.f32 %v394, %v569
    %v577 = vmul.f32 %v395, %v570
    %v578 = vmul.f32 %v396, %v571
    %v579 = vmul.f32 %v397, %v572
    %s580 = scalar_lea.vmem [#allocation2], 56
    %581 = vst.msk [vmem:[%s580] sm:$0xff] %vm316, %v573
    %582 = vst.msk [vmem:[%s580 + $0x8] sm:$0xff] %vm316, %v574
    %583 = vst.msk [vmem:[%s580 + $0x10] sm:$0xff] %vm316, %v575
    %584 = vst.msk [vmem:[%s580 + $0x18] sm:$0xff] %vm316, %v576
    %585 = vst.msk [vmem:[%s580 + $0x20] sm:$0xff] %vm316, %v577
    %586 = vst.msk [vmem:[%s580 + $0x28] sm:$0xff] %vm316, %v578
    %587 = vst.msk [vmem:[%s580 + $0x30] sm:$0x7] %vm323, %v579
    %s588 = sld [smem:[#allocation3 + $0x8]]
    %v589 = vstv %s588
    %v590 = vmul.f32 %v30, %v589
    %v591 = vmul.f32 %v31, %v589
    %v592 = vmul.f32 %v32, %v589
    %v593 = vmul.f32 %v33, %v589
    %v594 = vmul.f32 %v34, %v589
    %v595 = vmul.f32 %v35, %v589
    %v596 = vmul.f32 %v36, %v589
    %s597 = sld [smem:[#allocation3 + $0x9]]
    %v598 = vstv %s597
    %v599 = vmul.f32 %v38, %v598
    %v600 = vmul.f32 %v39, %v598
    %v601 = vmul.f32 %v40, %v598
    %v602 = vmul.f32 %v41, %v598
    %v603 = vmul.f32 %v42, %v598
    %v604 = vmul.f32 %v43, %v598
    %v605 = vmul.f32 %v44, %v598
    %v606 = vadd.f32 %v590, %v599
    %v607 = vadd.f32 %v591, %v600
    %v608 = vadd.f32 %v592, %v601
    %v609 = vadd.f32 %v593, %v602
    %v610 = vadd.f32 %v594, %v603
    %v611 = vadd.f32 %v595, %v604
    %v612 = vadd.f32 %v596, %v605
    %s613 = sld [smem:[#allocation3 + $0xa]]
    %v614 = vstv %s613
    %v615 = vmul.f32 %v46, %v614
    %v616 = vmul.f32 %v47, %v614
    %v617 = vmul.f32 %v48, %v614
    %v618 = vmul.f32 %v49, %v614
    %v619 = vmul.f32 %v50, %v614
    %v620 = vmul.f32 %v51, %v614
    %v621 = vmul.f32 %v52, %v614
    %v622 = vadd.f32 %v606, %v615
    %v623 = vadd.f32 %v607, %v616
    %v624 = vadd.f32 %v608, %v617
    %v625 = vadd.f32 %v609, %v618
    %v626 = vadd.f32 %v610, %v619
    %v627 = vadd.f32 %v611, %v620
    %v628 = vadd.f32 %v612, %v621
    %s629 = sld [smem:[#allocation3 + $0xb]]
    %v630 = vstv %s629
    %v631 = vmul.f32 %v54, %v630
    %v632 = vmul.f32 %v55, %v630
    %v633 = vmul.f32 %v56, %v630
    %v634 = vmul.f32 %v57, %v630
    %v635 = vmul.f32 %v58, %v630
    %v636 = vmul.f32 %v59, %v630
    %v637 = vmul.f32 %v60, %v630
    %v638 = vadd.f32 %v622, %v631
    %v639 = vadd.f32 %v623, %v632
    %v640 = vadd.f32 %v624, %v633
    %v641 = vadd.f32 %v625, %v634
    %v642 = vadd.f32 %v626, %v635
    %v643 = vadd.f32 %v627, %v636
    %v644 = vadd.f32 %v628, %v637
    %s645 = sld [smem:[#allocation3 + $0xe]]
    %v646 = vstv %s645
    %v647 = vadd.f32 %v638, %v646
    %v648 = vadd.f32 %v639, %v646
    %v649 = vadd.f32 %v640, %v646
    %v650 = vadd.f32 %v641, %v646
    %v651 = vadd.f32 %v642, %v646
    %v652 = vadd.f32 %v643, %v646
    %v653 = vadd.f32 %v644, %v646
    %v654 = vmul.f32 %v647, 0.5
    %v655 = vmul.f32 %v648, 0.5
    %v656 = vmul.f32 %v649, 0.5
    %v657 = vmul.f32 %v650, 0.5
    %v658 = vmul.f32 %v651, 0.5
    %v659 = vmul.f32 %v652, 0.5
    %v660 = vmul.f32 %v653, 0.5
    %v661 = vmul.f32 %v647, 0.5011512
    %v662 = vmul.f32 %v648, 0.5011512
    %v663 = vmul.f32 %v649, 0.5011512
    %v664 = vmul.f32 %v650, 0.5011512
    %v665 = vmul.f32 %v651, 0.5011512
    %v666 = vmul.f32 %v652, 0.5011512
    %v667 = vmul.f32 %v653, 0.5011512
    %vm668 = vcmp.lt.f32.partialorder %v661, 0.0
    %vm669 = vcmp.lt.f32.partialorder %v662, 0.0
    %vm670 = vcmp.lt.f32.partialorder %v663, 0.0
    %vm671 = vcmp.lt.f32.partialorder %v664, 0.0
    %vm672 = vcmp.lt.f32.partialorder %v665, 0.0
    %vm673 = vcmp.lt.f32.partialorder %v666, 0.0
    %vm674 = vcmp.lt.f32.partialorder %v667, 0.0
    %v675 = vsel %vm668, -1.0, 1.0
    %v676 = vsel %vm669, -1.0, 1.0
    %v677 = vsel %vm670, -1.0, 1.0
    %v678 = vsel %vm671, -1.0, 1.0
    %v679 = vsel %vm672, -1.0, 1.0
    %v680 = vsel %vm673, -1.0, 1.0
    %v681 = vsel %vm674, -1.0, 1.0
    %v682 = vand.u32 2147483647, %v661
    %v683 = vand.u32 2147483647, %v662
    %v684 = vand.u32 2147483647, %v663
    %v685 = vand.u32 2147483647, %v664
    %v686 = vand.u32 2147483647, %v665
    %v687 = vand.u32 2147483647, %v666
    %v688 = vand.u32 2147483647, %v667
    %v689 = vmul.f32 %v682, 0.3275911
    %v690 = vmul.f32 %v683, 0.3275911
    %v691 = vmul.f32 %v684, 0.3275911
    %v692 = vmul.f32 %v685, 0.3275911
    %v693 = vmul.f32 %v686, 0.3275911
    %v694 = vmul.f32 %v687, 0.3275911
    %v695 = vmul.f32 %v688, 0.3275911
    %v696 = vadd.f32 %v689, 1.0
    %v697 = vadd.f32 %v690, 1.0
    %v698 = vadd.f32 %v691, 1.0
    %v699 = vadd.f32 %v692, 1.0
    %v700 = vadd.f32 %v693, 1.0
    %v701 = vadd.f32 %v694, 1.0
    %v702 = vadd.f32 %v695, 1.0
    %v703 = vrcp.pop %v696
    %v704 = vmul.f32 1.0, %v703
    %v705 = vrcp.pop %v697
    %v706 = vmul.f32 1.0, %v705
    %v707 = vrcp.pop %v698
    %v708 = vmul.f32 1.0, %v707
    %v709 = vrcp.pop %v699
    %v710 = vmul.f32 1.0, %v709
    %v711 = vrcp.pop %v700
    %v712 = vmul.f32 1.0, %v711
    %v713 = vrcp.pop %v701
    %v714 = vmul.f32 1.0, %v713
    %v715 = vrcp.pop %v702
    %v716 = vmul.f32 1.0, %v715
    %v717 = vmul.f32 %v704, 1.0614054
    %v718 = vmul.f32 %v706, 1.0614054
    %v719 = vmul.f32 %v708, 1.0614054
    %v720 = vmul.f32 %v710, 1.0614054
    %v721 = vmul.f32 %v712, 1.0614054
    %v722 = vmul.f32 %v714, 1.0614054
    %v723 = vmul.f32 %v716, 1.0614054
    %v724 = vadd.f32 %v717, -1.4531521
    %v725 = vadd.f32 %v718, -1.4531521
    %v726 = vadd.f32 %v719, -1.4531521
    %v727 = vadd.f32 %v720, -1.4531521
    %v728 = vadd.f32 %v721, -1.4531521
    %v729 = vadd.f32 %v722, -1.4531521
    %v730 = vadd.f32 %v723, -1.4531521
    %v731 = vmul.f32 %v724, %v704
    %v732 = vmul.f32 %v725, %v706
    %v733 = vmul.f32 %v726, %v708
    %v734 = vmul.f32 %v727, %v710
    %v735 = vmul.f32 %v728, %v712
    %v736 = vmul.f32 %v729, %v714
    %v737 = vmul.f32 %v730, %v716
    %v738 = vadd.f32 %v731, 1.4214138
    %v739 = vadd.f32 %v732, 1.4214138
    %v740 = vadd.f32 %v733, 1.4214138
    %v741 = vadd.f32 %v734, 1.4214138
    %v742 = vadd.f32 %v735, 1.4214138
    %v743 = vadd.f32 %v736, 1.4214138
    %v744 = vadd.f32 %v737, 1.4214138
    %v745 = vmul.f32 %v738, %v704
    %v746 = vmul.f32 %v739, %v706
    %v747 = vmul.f32 %v740, %v708
    %v748 = vmul.f32 %v741, %v710
    %v749 = vmul.f32 %v742, %v712
    %v750 = vmul.f32 %v743, %v714
    %v751 = vmul.f32 %v744, %v716
    %v752 = vadd.f32 %v745, -0.28449672
    %v753 = vadd.f32 %v746, -0.28449672
    %v754 = vadd.f32 %v747, -0.28449672
    %v755 = vadd.f32 %v748, -0.28449672
    %v756 = vadd.f32 %v749, -0.28449672
    %v757 = vadd.f32 %v750, -0.28449672
    %v758 = vadd.f32 %v751, -0.28449672
    %v759 = vmul.f32 %v752, %v704
    %v760 = vmul.f32 %v753, %v706
    %v761 = vmul.f32 %v754, %v708
    %v762 = vmul.f32 %v755, %v710
    %v763 = vmul.f32 %v756, %v712
    %v764 = vmul.f32 %v757, %v714
    %v765 = vmul.f32 %v758, %v716
    %v766 = vadd.f32 %v759, 0.2548296
    %v767 = vadd.f32 %v760, 0.2548296
    %v768 = vadd.f32 %v761, 0.2548296
    %v769 = vadd.f32 %v762, 0.2548296
    %v770 = vadd.f32 %v763, 0.2548296
    %v771 = vadd.f32 %v764, 0.2548296
    %v772 = vadd.f32 %v765, 0.2548296
    %v773 = vmul.f32 %v766, %v704
    %v774 = vmul.f32 %v767, %v706
    %v775 = vmul.f32 %v768, %v708
    %v776 = vmul.f32 %v769, %v710
    %v777 = vmul.f32 %v770, %v712
    %v778 = vmul.f32 %v771, %v714
    %v779 = vmul.f32 %v772, %v716
    %v780 = vsub.f32 0.0, %v682
    %v781 = vsub.f32 0.0, %v683
    %v782 = vsub.f32 0.0, %v684
    %v783 = vsub.f32 0.0, %v685
    %v784 = vsub.f32 0.0, %v686
    %v785 = vsub.f32 0.0, %v687
    %v786 = vsub.f32 0.0, %v688
    %v787 = vmul.f32 %v780, %v682
    %v788 = vmul.f32 %v781, %v683
    %v789 = vmul.f32 %v782, %v684
    %v790 = vmul.f32 %v783, %v685
    %v791 = vmul.f32 %v784, %v686
    %v792 = vmul.f32 %v785, %v687
    %v793 = vmul.f32 %v786, %v688
    %v794 = vmul.f32 %v787, 1.442695
    %v795 = vpow.pop %v794
    %v796 = vmul.f32 %v788, 1.442695
    %v797 = vpow.pop %v796
    %v798 = vmul.f32 %v789, 1.442695
    %v799 = vpow.pop %v798
    %v800 = vmul.f32 %v790, 1.442695
    %v801 = vpow.pop %v800
    %v802 = vmul.f32 %v791, 1.442695
    %v803 = vpow.pop %v802
    %v804 = vmul.f32 %v792, 1.442695
    %v805 = vpow.pop %v804
    %v806 = vmul.f32 %v793, 1.442695
    %v807 = vpow.pop %v806
    %v808 = vmul.f32 %v773, %v795
    %v809 = vmul.f32 %v774, %v797
    %v810 = vmul.f32 %v775, %v799
    %v811 = vmul.f32 %v776, %v801
    %v812 = vmul.f32 %v777, %v803
    %v813 = vmul.f32 %v778, %v805
    %v814 = vmul.f32 %v779, %v807
    %v815 = vsub.f32 1.0, %v808
    %v816 = vsub.f32 1.0, %v809
    %v817 = vsub.f32 1.0, %v810
    %v818 = vsub.f32 1.0, %v811
    %v819 = vsub.f32 1.0, %v812
    %v820 = vsub.f32 1.0, %v813
    %v821 = vsub.f32 1.0, %v814
    %v822 = vmul.f32 %v675, %v815
    %v823 = vmul.f32 %v676, %v816
    %v824 = vmul.f32 %v677, %v817
    %v825 = vmul.f32 %v678, %v818
    %v826 = vmul.f32 %v679, %v819
    %v827 = vmul.f32 %v680, %v820
    %v828 = vmul.f32 %v681, %v821
    %v829 = vadd.f32 %v822, 1.0
    %v830 = vadd.f32 %v823, 1.0
    %v831 = vadd.f32 %v824, 1.0
    %v832 = vadd.f32 %v825, 1.0
    %v833 = vadd.f32 %v826, 1.0
    %v834 = vadd.f32 %v827, 1.0
    %v835 = vadd.f32 %v828, 1.0
    %v836 = vmul.f32 %v654, %v829
    %v837 = vmul.f32 %v655, %v830
    %v838 = vmul.f32 %v656, %v831
    %v839 = vmul.f32 %v657, %v832
    %v840 = vmul.f32 %v658, %v833
    %v841 = vmul.f32 %v659, %v834
    %v842 = vmul.f32 %v660, %v835
    %s843 = scalar_lea.vmem [#allocation2], 112
    %844 = vst.msk [vmem:[%s843] sm:$0xff] %vm316, %v836
    %845 = vst.msk [vmem:[%s843 + $0x8] sm:$0xff] %vm316, %v837
    %846 = vst.msk [vmem:[%s843 + $0x10] sm:$0xff] %vm316, %v838
    %847 = vst.msk [vmem:[%s843 + $0x18] sm:$0xff] %vm316, %v839
    %848 = vst.msk [vmem:[%s843 + $0x20] sm:$0xff] %vm316, %v840
    %849 = vst.msk [vmem:[%s843 + $0x28] sm:$0xff] %vm316, %v841
    %850 = vst.msk [vmem:[%s843 + $0x30] sm:$0x7] %vm323, %v842
    %v851 = vld [vmem:[#allocation2] sm:$0x1]
    %s852 = scalar_lea.vmem %s1, 8
    %v853 = vld [vmem:[%s852] sm:$0xff]
    %v854 = vlaneseq
    %v855 = vshrl.u32 %v854, 7
    %v856 = vsub.s32 0, %v855
    %v857 = vrot.slane %v851, %v856
    %v858 = vmul.f32 %v853, %v857
    %v859 = vld [vmem:[#allocation2 + $0x1] sm:$0x1]
    %s860 = scalar_lea.vmem %s1, 16
    %v861 = vld [vmem:[%s860] sm:$0xff]
    %v862 = vlaneseq
    %v863 = vshrl.u32 %v862, 7
    %v864 = vsub.s32 0, %v863
    %v865 = vrot.slane %v859, %v864
    %v866 = vmul.f32 %v861, %v865
    %v867 = vadd.f32 %v858, %v866
    %v868 = vld [vmem:[#allocation2 + $0x2] sm:$0x1]
    %s869 = scalar_lea.vmem %s1, 24
    %v870 = vld [vmem:[%s869] sm:$0xff]
    %v871 = vlaneseq
    %v872 = vshrl.u32 %v871, 7
    %v873 = vsub.s32 0, %v872
    %v874 = vrot.slane %v868, %v873
    %v875 = vmul.f32 %v870, %v874
    %v876 = vadd.f32 %v867, %v875
    %v877 = vld [vmem:[#allocation2 + $0x3] sm:$0x1]
    %s878 = scalar_lea.vmem %s1, 32
    %v879 = vld [vmem:[%s878] sm:$0xff]
    %v880 = vlaneseq
    %v881 = vshrl.u32 %v880, 7
    %v882 = vsub.s32 0, %v881
    %v883 = vrot.slane %v877, %v882
    %v884 = vmul.f32 %v879, %v883
    %v885 = vadd.f32 %v876, %v884
    %v886 = vld [vmem:[#allocation2 + $0x4] sm:$0x1]
    %s887 = scalar_lea.vmem %s1, 40
    %v888 = vld [vmem:[%s887] sm:$0xff]
    %v889 = vlaneseq
    %v890 = vshrl.u32 %v889, 7
    %v891 = vsub.s32 0, %v890
    %v892 = vrot.slane %v886, %v891
    %v893 = vmul.f32 %v888, %v892
    %v894 = vadd.f32 %v885, %v893
    %v895 = vld [vmem:[#allocation2 + $0x5] sm:$0x1]
    %s896 = scalar_lea.vmem %s1, 48
    %v897 = vld [vmem:[%s896] sm:$0xff]
    %v898 = vlaneseq
    %v899 = vshrl.u32 %v898, 7
    %v900 = vsub.s32 0, %v899
    %v901 = vrot.slane %v895, %v900
    %v902 = vmul.f32 %v897, %v901
    %v903 = vadd.f32 %v894, %v902
    %v904 = vld [vmem:[#allocation2 + $0x6] sm:$0x1]
    %s905 = scalar_lea.vmem %s1, 56
    %v906 = vld [vmem:[%s905] sm:$0xff]
    %v907 = vlaneseq
    %v908 = vshrl.u32 %v907, 7
    %v909 = vsub.s32 0, %v908
    %v910 = vrot.slane %v904, %v909
    %v911 = vmul.f32 %v906, %v910
    %v912 = vadd.f32 %v903, %v911
    %v913 = vld [vmem:[#allocation2 + $0x7] sm:$0x1]
    %s914 = scalar_lea.vmem %s1, 64
    %v915 = vld [vmem:[%s914] sm:$0xff]
    %v916 = vlaneseq
    %v917 = vshrl.u32 %v916, 7
    %v918 = vsub.s32 0, %v917
    %v919 = vrot.slane %v913, %v918
    %v920 = vmul.f32 %v915, %v919
    %v921 = vld [vmem:[#allocation2 + $0x8] sm:$0x1]
    %s922 = scalar_lea.vmem %s1, 72
    %v923 = vld [vmem:[%s922] sm:$0xff]
    %v924 = vlaneseq
    %v925 = vshrl.u32 %v924, 7
    %v926 = vsub.s32 0, %v925
    %v927 = vrot.slane %v921, %v926
    %v928 = vmul.f32 %v923, %v927
    %v929 = vadd.f32 %v920, %v928
    %v930 = vld [vmem:[#allocation2 + $0x9] sm:$0x1]
    %s931 = scalar_lea.vmem %s1, 80
    %v932 = vld [vmem:[%s931] sm:$0xff]
    %v933 = vlaneseq
    %v934 = vshrl.u32 %v933, 7
    %v935 = vsub.s32 0, %v934
    %v936 = vrot.slane %v930, %v935
    %v937 = vmul.f32 %v932, %v936
    %v938 = vadd.f32 %v929, %v937
    %v939 = vld [vmem:[#allocation2 + $0xa] sm:$0x1]
    %s940 = scalar_lea.vmem %s1, 88
    %v941 = vld [vmem:[%s940] sm:$0xff]
    %v942 = vlaneseq
    %v943 = vshrl.u32 %v942, 7
    %v944 = vsub.s32 0, %v943
    %v945 = vrot.slane %v939, %v944
    %v946 = vmul.f32 %v941, %v945
    %v947 = vadd.f32 %v938, %v946
    %v948 = vld [vmem:[#allocation2 + $0xb] sm:$0x1]
    %s949 = scalar_lea.vmem %s1, 96
    %v950 = vld [vmem:[%s949] sm:$0xff]
    %v951 = vlaneseq
    %v952 = vshrl.u32 %v951, 7
    %v953 = vsub.s32 0, %v952
    %v954 = vrot.slane %v948, %v953
    %v955 = vmul.f32 %v950, %v954
    %v956 = vadd.f32 %v947, %v955
    %v957 = vld [vmem:[#allocation2 + $0xc] sm:$0x1]
    %s958 = scalar_lea.vmem %s1, 104
    %v959 = vld [vmem:[%s958] sm:$0xff]
    %v960 = vlaneseq
    %v961 = vshrl.u32 %v960, 7
    %v962 = vsub.s32 0, %v961
    %v963 = vrot.slane %v957, %v962
    %v964 = vmul.f32 %v959, %v963
    %v965 = vadd.f32 %v956, %v964
    %v966 = vld [vmem:[%s580] sm:$0x1]
    %s967 = scalar_lea.vmem %s1, 120
    %v968 = vld [vmem:[%s967] sm:$0xff]
    %v969 = vlaneseq
    %v970 = vshrl.u32 %v969, 7
    %v971 = vsub.s32 0, %v970
    %v972 = vrot.slane %v966, %v971
    %v973 = vmul.f32 %v968, %v972
    %v974 = vadd.f32 %v965, %v973
    %v975 = vld [vmem:[%s580 + $0x1] sm:$0x1]
    %s976 = scalar_lea.vmem %s1, 128
    %v977 = vld [vmem:[%s976] sm:$0xff]
    %v978 = vlaneseq
    %v979 = vshrl.u32 %v978, 7
    %v980 = vsub.s32 0, %v979
    %v981 = vrot.slane %v975, %v980
    %v982 = vmul.f32 %v977, %v981
    %v983 = vld [vmem:[%s580 + $0x2] sm:$0x1]
    %s984 = scalar_lea.vmem %s1, 136
    %v985 = vld [vmem:[%s984] sm:$0xff]
    %v986 = vlaneseq
    %v987 = vshrl.u32 %v986, 7
    %v988 = vsub.s32 0, %v987
    %v989 = vrot.slane %v983, %v988
    %v990 = vmul.f32 %v985, %v989
    %v991 = vadd.f32 %v982, %v990
    %v992 = vld [vmem:[%s580 + $0x3] sm:$0x1]
    %s993 = scalar_lea.vmem %s1, 144
    %v994 = vld [vmem:[%s993] sm:$0xff]
    %v995 = vlaneseq
    %v996 = vshrl.u32 %v995, 7
    %v997 = vsub.s32 0, %v996
    %v998 = vrot.slane %v992, %v997
    %v999 = vmul.f32 %v994, %v998
    %v1000 = vadd.f32 %v991, %v999
    %v1001 = vld [vmem:[%s580 + $0x4] sm:$0x1]
    %s1002 = scalar_lea.vmem %s1, 152
    %v1003 = vld [vmem:[%s1002] sm:$0xff]
    %v1004 = vlaneseq
    %v1005 = vshrl.u32 %v1004, 7
    %v1006 = vsub.s32 0, %v1005
    %v1007 = vrot.slane %v1001, %v1006
    %v1008 = vmul.f32 %v1003, %v1007
    %v1009 = vadd.f32 %v1000, %v1008
    %v1010 = vld [vmem:[%s580 + $0x5] sm:$0x1]
    %s1011 = scalar_lea.vmem %s1, 160
    %v1012 = vld [vmem:[%s1011] sm:$0xff]
    %v1013 = vlaneseq
    %v1014 = vshrl.u32 %v1013, 7
    %v1015 = vsub.s32 0, %v1014
    %v1016 = vrot.slane %v1010, %v1015
    %v1017 = vmul.f32 %v1012, %v1016
    %v1018 = vadd.f32 %v1009, %v1017
    %v1019 = vld [vmem:[%s580 + $0x6] sm:$0x1]
    %s1020 = scalar_lea.vmem %s1, 168
    %v1021 = vld [vmem:[%s1020] sm:$0xff]
    %v1022 = vlaneseq
    %v1023 = vshrl.u32 %v1022, 7
    %v1024 = vsub.s32 0, %v1023
    %v1025 = vrot.slane %v1019, %v1024
    %v1026 = vmul.f32 %v1021, %v1025
    %v1027 = vadd.f32 %v1018, %v1026
    %v1028 = vld [vmem:[%s580 + $0x7] sm:$0x1]
    %s1029 = scalar_lea.vmem %s1, 176
    %v1030 = vld [vmem:[%s1029] sm:$0xff]
    %v1031 = vlaneseq
    %v1032 = vshrl.u32 %v1031, 7
    %v1033 = vsub.s32 0, %v1032
    %v1034 = vrot.slane %v1028, %v1033
    %v1035 = vmul.f32 %v1030, %v1034
    %v1036 = vadd.f32 %v1027, %v1035
    %v1037 = vld [vmem:[%s580 + $0x8] sm:$0x1]
    %s1038 = scalar_lea.vmem %s1, 184
    %v1039 = vld [vmem:[%s1038] sm:$0xff]
    %v1040 = vlaneseq
    %v1041 = vshrl.u32 %v1040, 7
    %v1042 = vsub.s32 0, %v1041
    %v1043 = vrot.slane %v1037, %v1042
    %v1044 = vmul.f32 %v1039, %v1043
    %v1045 = vld [vmem:[%s580 + $0x9] sm:$0x1]
    %s1046 = scalar_lea.vmem %s1, 192
    %v1047 = vld [vmem:[%s1046] sm:$0xff]
    %v1048 = vlaneseq
    %v1049 = vshrl.u32 %v1048, 7
    %v1050 = vsub.s32 0, %v1049
    %v1051 = vrot.slane %v1045, %v1050
    %v1052 = vmul.f32 %v1047, %v1051
    %v1053 = vadd.f32 %v1044, %v1052
    %v1054 = vld [vmem:[%s580 + $0xa] sm:$0x1]
    %s1055 = scalar_lea.vmem %s1, 200
    %v1056 = vld [vmem:[%s1055] sm:$0xff]
    %v1057 = vlaneseq
    %v1058 = vshrl.u32 %v1057, 7
    %v1059 = vsub.s32 0, %v1058
    %v1060 = vrot.slane %v1054, %v1059
    %v1061 = vmul.f32 %v1056, %v1060
    %v1062 = vadd.f32 %v1053, %v1061
    %v1063 = vld [vmem:[%s580 + $0xb] sm:$0x1]
    %s1064 = scalar_lea.vmem %s1, 208
    %v1065 = vld [vmem:[%s1064] sm:$0xff]
    %v1066 = vlaneseq
    %v1067 = vshrl.u32 %v1066, 7
    %v1068 = vsub.s32 0, %v1067
    %v1069 = vrot.slane %v1063, %v1068
    %v1070 = vmul.f32 %v1065, %v1069
    %v1071 = vadd.f32 %v1062, %v1070
    %v1072 = vld [vmem:[%s580 + $0xc] sm:$0x1]
    %s1073 = scalar_lea.vmem %s1, 216
    %v1074 = vld [vmem:[%s1073] sm:$0xff]
    %v1075 = vlaneseq
    %v1076 = vshrl.u32 %v1075, 7
    %v1077 = vsub.s32 0, %v1076
    %v1078 = vrot.slane %v1072, %v1077
    %v1079 = vmul.f32 %v1074, %v1078
    %v1080 = vadd.f32 %v1071, %v1079
    %v1081 = vld [vmem:[%s843] sm:$0x1]
    %s1082 = scalar_lea.vmem %s1, 232
    %v1083 = vld [vmem:[%s1082] sm:$0xff]
    %v1084 = vlaneseq
    %v1085 = vshrl.u32 %v1084, 7
    %v1086 = vsub.s32 0, %v1085
    %v1087 = vrot.slane %v1081, %v1086
    %v1088 = vmul.f32 %v1083, %v1087
    %v1089 = vadd.f32 %v1080, %v1088
    %v1090 = vld [vmem:[%s843 + $0x1] sm:$0x1]
    %s1091 = scalar_lea.vmem %s1, 240
    %v1092 = vld [vmem:[%s1091] sm:$0xff]
    %v1093 = vlaneseq
    %v1094 = vshrl.u32 %v1093, 7
    %v1095 = vsub.s32 0, %v1094
    %v1096 = vrot.slane %v1090, %v1095
    %v1097 = vmul.f32 %v1092, %v1096
    %v1098 = vadd.f32 %v1089, %v1097
    %v1099 = vld [vmem:[%s843 + $0x2] sm:$0x1]
    %s1100 = scalar_lea.vmem %s1, 248
    %v1101 = vld [vmem:[%s1100] sm:$0xff]
    %v1102 = vlaneseq
    %v1103 = vshrl.u32 %v1102, 7
    %v1104 = vsub.s32 0, %v1103
    %v1105 = vrot.slane %v1099, %v1104
    %v1106 = vmul.f32 %v1101, %v1105
    %v1107 = vld [vmem:[%s843 + $0x3] sm:$0x1]
    %s1108 = scalar_lea.vmem %s1, 256
    %v1109 = vld [vmem:[%s1108] sm:$0xff]
    %v1110 = vlaneseq
    %v1111 = vshrl.u32 %v1110, 7
    %v1112 = vsub.s32 0, %v1111
    %v1113 = vrot.slane %v1107, %v1112
    %v1114 = vmul.f32 %v1109, %v1113
    %v1115 = vadd.f32 %v1106, %v1114
    %v1116 = vld [vmem:[%s843 + $0x4] sm:$0x1]
    %s1117 = scalar_lea.vmem %s1, 264
    %v1118 = vld [vmem:[%s1117] sm:$0xff]
    %v1119 = vlaneseq
    %v1120 = vshrl.u32 %v1119, 7
    %v1121 = vsub.s32 0, %v1120
    %v1122 = vrot.slane %v1116, %v1121
    %v1123 = vmul.f32 %v1118, %v1122
    %v1124 = vadd.f32 %v1115, %v1123
    %v1125 = vld [vmem:[%s843 + $0x5] sm:$0x1]
    %s1126 = scalar_lea.vmem %s1, 272
    %v1127 = vld [vmem:[%s1126] sm:$0xff]
    %v1128 = vlaneseq
    %v1129 = vshrl.u32 %v1128, 7
    %v1130 = vsub.s32 0, %v1129
    %v1131 = vrot.slane %v1125, %v1130
    %v1132 = vmul.f32 %v1127, %v1131
    %v1133 = vadd.f32 %v1124, %v1132
    %v1134 = vld [vmem:[%s843 + $0x6] sm:$0x1]
    %s1135 = scalar_lea.vmem %s1, 280
    %v1136 = vld [vmem:[%s1135] sm:$0xff]
    %v1137 = vlaneseq
    %v1138 = vshrl.u32 %v1137, 7
    %v1139 = vsub.s32 0, %v1138
    %v1140 = vrot.slane %v1134, %v1139
    %v1141 = vmul.f32 %v1136, %v1140
    %v1142 = vadd.f32 %v1133, %v1141
    %v1143 = vld [vmem:[%s843 + $0x7] sm:$0x1]
    %s1144 = scalar_lea.vmem %s1, 288
    %v1145 = vld [vmem:[%s1144] sm:$0xff]
    %v1146 = vlaneseq
    %v1147 = vshrl.u32 %v1146, 7
    %v1148 = vsub.s32 0, %v1147
    %v1149 = vrot.slane %v1143, %v1148
    %v1150 = vmul.f32 %v1145, %v1149
    %v1151 = vadd.f32 %v1142, %v1150
    %v1152 = vld [vmem:[%s843 + $0x8] sm:$0x1]
    %s1153 = scalar_lea.vmem %s1, 296
    %v1154 = vld [vmem:[%s1153] sm:$0xff]
    %v1155 = vlaneseq
    %v1156 = vshrl.u32 %v1155, 7
    %v1157 = vsub.s32 0, %v1156
    %v1158 = vrot.slane %v1152, %v1157
    %v1159 = vmul.f32 %v1154, %v1158
    %v1160 = vadd.f32 %v1151, %v1159
    %v1161 = vld [vmem:[%s843 + $0x9] sm:$0x1]
    %s1162 = scalar_lea.vmem %s1, 304
    %v1163 = vld [vmem:[%s1162] sm:$0xff]
    %v1164 = vlaneseq
    %v1165 = vshrl.u32 %v1164, 7
    %v1166 = vsub.s32 0, %v1165
    %v1167 = vrot.slane %v1161, %v1166
    %v1168 = vmul.f32 %v1163, %v1167
    %v1169 = vld [vmem:[%s843 + $0xa] sm:$0x1]
    %s1170 = scalar_lea.vmem %s1, 312
    %v1171 = vld [vmem:[%s1170] sm:$0xff]
    %v1172 = vlaneseq
    %v1173 = vshrl.u32 %v1172, 7
    %v1174 = vsub.s32 0, %v1173
    %v1175 = vrot.slane %v1169, %v1174
    %v1176 = vmul.f32 %v1171, %v1175
    %v1177 = vadd.f32 %v1168, %v1176
    %v1178 = vld [vmem:[%s843 + $0xb] sm:$0x1]
    %s1179 = scalar_lea.vmem %s1, 320
    %v1180 = vld [vmem:[%s1179] sm:$0xff]
    %v1181 = vlaneseq
    %v1182 = vshrl.u32 %v1181, 7
    %v1183 = vsub.s32 0, %v1182
    %v1184 = vrot.slane %v1178, %v1183
    %v1185 = vmul.f32 %v1180, %v1184
    %v1186 = vadd.f32 %v1177, %v1185
    %v1187 = vld [vmem:[%s843 + $0xc] sm:$0x1]
    %s1188 = scalar_lea.vmem %s1, 328
    %v1189 = vld [vmem:[%s1188] sm:$0xff]
    %v1190 = vlaneseq
    %v1191 = vshrl.u32 %v1190, 7
    %v1192 = vsub.s32 0, %v1191
    %v1193 = vrot.slane %v1187, %v1192
    %v1194 = vmul.f32 %v1189, %v1193
    %v1195 = vadd.f32 %v1186, %v1194
    %v1196 = vadd.f32 %v912, %v974
    %v1197 = vadd.f32 %v1036, %v1098
    %v1198 = vadd.f32 %v1160, %v1195
    %v1199 = vadd.f32 %v1196, %v1197
    %v1200 = vadd.f32 %v1199, %v1198
    %vm1201 = vcmask 105472
    %v1202 = vsel %vm1201, %v1200, 0.0
    %1203 = vadd.xlane.f32.xlu0 %v1202
    %v1204 = vpop.xlane.xlu0 %1203
    %1206 = vrot.lane.b32.xlu0 %v1200, 114
    %v1207 = vpop.permute.xlu0 %1206
    %vm1209 = vcmask 113664
    %v1210 = vsel %vm1209, %v1207, 0.0
    %1211 = vadd.xlane.f32.xlu0 %v1210
    %v1212 = vpop.xlane.xlu0 %1211
    %1213 = vrot.lane.b32.xlu0 %v1200, 99
    %v1214 = vpop.permute.xlu0 %1213
    %v1216 = vsel %vm1209, %v1214, 0.0
    %1217 = vadd.xlane.f32.xlu0 %v1216
    %v1218 = vpop.xlane.xlu0 %1217
    %v1219 = vld [vmem:[#allocation2 + $0xe] sm:$0x1]
    %v1220 = vld [vmem:[%s1] sm:$0xff]
    %v1221 = vlaneseq
    %v1222 = vshrl.u32 %v1221, 7
    %v1223 = vsub.s32 0, %v1222
    %v1224 = vrot.slane %v1219, %v1223
    %v1225 = vmul.f32 %v1220, %v1224
    %v1226 = vld [vmem:[#allocation2 + $0xf] sm:$0x1]
    %v1227 = vlaneseq
    %v1228 = vshrl.u32 %v1227, 7
    %v1229 = vsub.s32 0, %v1228
    %v1230 = vrot.slane %v1226, %v1229
    %v1231 = vmul.f32 %v853, %v1230
    %v1232 = vadd.f32 %v1225, %v1231
    %v1233 = vld [vmem:[#allocation2 + $0x10] sm:$0x1]
    %v1234 = vlaneseq
    %v1235 = vshrl.u32 %v1234, 7
    %v1236 = vsub.s32 0, %v1235
    %v1237 = vrot.slane %v1233, %v1236
    %v1238 = vmul.f32 %v861, %v1237
    %v1239 = vadd.f32 %v1232, %v1238
    %v1240 = vld [vmem:[#allocation2 + $0x11] sm:$0x1]
    %v1241 = vlaneseq
    %v1242 = vshrl.u32 %v1241, 7
    %v1243 = vsub.s32 0, %v1242
    %v1244 = vrot.slane %v1240, %v1243
    %v1245 = vmul.f32 %v870, %v1244
    %v1246 = vadd.f32 %v1239, %v1245
    %v1247 = vld [vmem:[#allocation2 + $0x12] sm:$0x1]
    %v1248 = vlaneseq
    %v1249 = vshrl.u32 %v1248, 7
    %v1250 = vsub.s32 0, %v1249
    %v1251 = vrot.slane %v1247, %v1250
    %v1252 = vmul.f32 %v879, %v1251
    %v1253 = vadd.f32 %v1246, %v1252
    %v1254 = vld [vmem:[#allocation2 + $0x13] sm:$0x1]
    %v1255 = vlaneseq
    %v1256 = vshrl.u32 %v1255, 7
    %v1257 = vsub.s32 0, %v1256
    %v1258 = vrot.slane %v1254, %v1257
    %v1259 = vmul.f32 %v888, %v1258
    %v1260 = vadd.f32 %v1253, %v1259
    %v1261 = vld [vmem:[#allocation2 + $0x14] sm:$0x1]
    %v1262 = vlaneseq
    %v1263 = vshrl.u32 %v1262, 7
    %v1264 = vsub.s32 0, %v1263
    %v1265 = vrot.slane %v1261, %v1264
    %v1266 = vmul.f32 %v897, %v1265
    %v1267 = vadd.f32 %v1260, %v1266
    %v1268 = vld [vmem:[#allocation2 + $0x15] sm:$0x1]
    %v1269 = vlaneseq
    %v1270 = vshrl.u32 %v1269, 7
    %v1271 = vsub.s32 0, %v1270
    %v1272 = vrot.slane %v1268, %v1271
    %v1273 = vmul.f32 %v906, %v1272
    %v1274 = vld [vmem:[#allocation2 + $0x16] sm:$0x1]
    %v1275 = vlaneseq
    %v1276 = vshrl.u32 %v1275, 7
    %v1277 = vsub.s32 0, %v1276
    %v1278 = vrot.slane %v1274, %v1277
    %v1279 = vmul.f32 %v915, %v1278
    %v1280 = vadd.f32 %v1273, %v1279
    %v1281 = vld [vmem:[#allocation2 + $0x17] sm:$0x1]
    %v1282 = vlaneseq
    %v1283 = vshrl.u32 %v1282, 7
    %v1284 = vsub.s32 0, %v1283
    %v1285 = vrot.slane %v1281, %v1284
    %v1286 = vmul.f32 %v923, %v1285
    %v1287 = vadd.f32 %v1280, %v1286
    %v1288 = vld [vmem:[#allocation2 + $0x18] sm:$0x1]
    %v1289 = vlaneseq
    %v1290 = vshrl.u32 %v1289, 7
    %v1291 = vsub.s32 0, %v1290
    %v1292 = vrot.slane %v1288, %v1291
    %v1293 = vmul.f32 %v932, %v1292
    %v1294 = vadd.f32 %v1287, %v1293
    %v1295 = vld [vmem:[#allocation2 + $0x19] sm:$0x1]
    %v1296 = vlaneseq
    %v1297 = vshrl.u32 %v1296, 7
    %v1298 = vsub.s32 0, %v1297
    %v1299 = vrot.slane %v1295, %v1298
    %v1300 = vmul.f32 %v941, %v1299
    %v1301 = vadd.f32 %v1294, %v1300
    %v1302 = vld [vmem:[#allocation2 + $0x1a] sm:$0x1]
    %v1303 = vlaneseq
    %v1304 = vshrl.u32 %v1303, 7
    %v1305 = vsub.s32 0, %v1304
    %v1306 = vrot.slane %v1302, %v1305
    %v1307 = vmul.f32 %v950, %v1306
    %v1308 = vadd.f32 %v1301, %v1307
    %v1309 = vld [vmem:[#allocation2 + $0x1b] sm:$0x1]
    %v1310 = vlaneseq
    %v1311 = vshrl.u32 %v1310, 7
    %v1312 = vsub.s32 0, %v1311
    %v1313 = vrot.slane %v1309, %v1312
    %v1314 = vmul.f32 %v959, %v1313
    %v1315 = vadd.f32 %v1308, %v1314
    %v1316 = vld [vmem:[%s580 + $0xe] sm:$0x1]
    %s1317 = scalar_lea.vmem %s1, 112
    %v1318 = vld [vmem:[%s1317] sm:$0xff]
    %v1319 = vlaneseq
    %v1320 = vshrl.u32 %v1319, 7
    %v1321 = vsub.s32 0, %v1320
    %v1322 = vrot.slane %v1316, %v1321
    %v1323 = vmul.f32 %v1318, %v1322
    %v1324 = vld [vmem:[%s580 + $0xf] sm:$0x1]
    %v1325 = vlaneseq
    %v1326 = vshrl.u32 %v1325, 7
    %v1327 = vsub.s32 0, %v1326
    %v1328 = vrot.slane %v1324, %v1327
    %v1329 = vmul.f32 %v968, %v1328
    %v1330 = vadd.f32 %v1323, %v1329
    %v1331 = vld [vmem:[%s580 + $0x10] sm:$0x1]
    %v1332 = vlaneseq
    %v1333 = vshrl.u32 %v1332, 7
    %v1334 = vsub.s32 0, %v1333
    %v1335 = vrot.slane %v1331, %v1334
    %v1336 = vmul.f32 %v977, %v1335
    %v1337 = vadd.f32 %v1330, %v1336
    %v1338 = vld [vmem:[%s580 + $0x11] sm:$0x1]
    %v1339 = vlaneseq
    %v1340 = vshrl.u32 %v1339, 7
    %v1341 = vsub.s32 0, %v1340
    %v1342 = vrot.slane %v1338, %v1341
    %v1343 = vmul.f32 %v985, %v1342
    %v1344 = vadd.f32 %v1337, %v1343
    %v1345 = vld [vmem:[%s580 + $0x12] sm:$0x1]
    %v1346 = vlaneseq
    %v1347 = vshrl.u32 %v1346, 7
    %v1348 = vsub.s32 0, %v1347
    %v1349 = vrot.slane %v1345, %v1348
    %v1350 = vmul.f32 %v994, %v1349
    %v1351 = vadd.f32 %v1344, %v1350
    %v1352 = vld [vmem:[%s580 + $0x13] sm:$0x1]
    %v1353 = vlaneseq
    %v1354 = vshrl.u32 %v1353, 7
    %v1355 = vsub.s32 0, %v1354
    %v1356 = vrot.slane %v1352, %v1355
    %v1357 = vmul.f32 %v1003, %v1356
    %v1358 = vadd.f32 %v1351, %v1357
    %v1359 = vld [vmem:[%s580 + $0x14] sm:$0x1]
    %v1360 = vlaneseq
    %v1361 = vshrl.u32 %v1360, 7
    %v1362 = vsub.s32 0, %v1361
    %v1363 = vrot.slane %v1359, %v1362
    %v1364 = vmul.f32 %v1012, %v1363
    %v1365 = vadd.f32 %v1358, %v1364
    %v1366 = vld [vmem:[%s580 + $0x15] sm:$0x1]
    %v1367 = vlaneseq
    %v1368 = vshrl.u32 %v1367, 7
    %v1369 = vsub.s32 0, %v1368
    %v1370 = vrot.slane %v1366, %v1369
    %v1371 = vmul.f32 %v1021, %v1370
    %v1372 = vld [vmem:[%s580 + $0x16] sm:$0x1]
    %v1373 = vlaneseq
    %v1374 = vshrl.u32 %v1373, 7
    %v1375 = vsub.s32 0, %v1374
    %v1376 = vrot.slane %v1372, %v1375
    %v1377 = vmul.f32 %v1030, %v1376
    %v1378 = vadd.f32 %v1371, %v1377
    %v1379 = vld [vmem:[%s580 + $0x17] sm:$0x1]
    %v1380 = vlaneseq
    %v1381 = vshrl.u32 %v1380, 7
    %v1382 = vsub.s32 0, %v1381
    %v1383 = vrot.slane %v1379, %v1382
    %v1384 = vmul.f32 %v1039, %v1383
    %v1385 = vadd.f32 %v1378, %v1384
    %v1386 = vld [vmem:[%s580 + $0x18] sm:$0x1]
    %v1387 = vlaneseq
    %v1388 = vshrl.u32 %v1387, 7
    %v1389 = vsub.s32 0, %v1388
    %v1390 = vrot.slane %v1386, %v1389
    %v1391 = vmul.f32 %v1047, %v1390
    %v1392 = vadd.f32 %v1385, %v1391
    %v1393 = vld [vmem:[%s580 + $0x19] sm:$0x1]
    %v1394 = vlaneseq
    %v1395 = vshrl.u32 %v1394, 7
    %v1396 = vsub.s32 0, %v1395
    %v1397 = vrot.slane %v1393, %v1396
    %v1398 = vmul.f32 %v1056, %v1397
    %v1399 = vadd.f32 %v1392, %v1398
    %v1400 = vld [vmem:[%s580 + $0x1a] sm:$0x1]
    %v1401 = vlaneseq
    %v1402 = vshrl.u32 %v1401, 7
    %v1403 = vsub.s32 0, %v1402
    %v1404 = vrot.slane %v1400, %v1403
    %v1405 = vmul.f32 %v1065, %v1404
    %v1406 = vadd.f32 %v1399, %v1405
    %v1407 = vld [vmem:[%s580 + $0x1b] sm:$0x1]
    %v1408 = vlaneseq
    %v1409 = vshrl.u32 %v1408, 7
    %v1410 = vsub.s32 0, %v1409
    %v1411 = vrot.slane %v1407, %v1410
    %v1412 = vmul.f32 %v1074, %v1411
    %v1413 = vadd.f32 %v1406, %v1412
    %v1414 = vld [vmem:[%s843 + $0xe] sm:$0x1]
    %s1415 = scalar_lea.vmem %s1, 224
    %v1416 = vld [vmem:[%s1415] sm:$0xff]
    %v1417 = vlaneseq
    %v1418 = vshrl.u32 %v1417, 7
    %v1419 = vsub.s32 0, %v1418
    %v1420 = vrot.slane %v1414, %v1419
    %v1421 = vmul.f32 %v1416, %v1420
    %v1422 = vld [vmem:[%s843 + $0xf] sm:$0x1]
    %v1423 = vlaneseq
    %v1424 = vshrl.u32 %v1423, 7
    %v1425 = vsub.s32 0, %v1424
    %v1426 = vrot.slane %v1422, %v1425
    %v1427 = vmul.f32 %v1083, %v1426
    %v1428 = vadd.f32 %v1421, %v1427
    %v1429 = vld [vmem:[%s843 + $0x10] sm:$0x1]
    %v1430 = vlaneseq
    %v1431 = vshrl.u32 %v1430, 7
    %v1432 = vsub.s32 0, %v1431
    %v1433 = vrot.slane %v1429, %v1432
    %v1434 = vmul.f32 %v1092, %v1433
    %v1435 = vadd.f32 %v1428, %v1434
    %v1436 = vld [vmem:[%s843 + $0x11] sm:$0x1]
    %v1437 = vlaneseq
    %v1438 = vshrl.u32 %v1437, 7
    %v1439 = vsub.s32 0, %v1438
    %v1440 = vrot.slane %v1436, %v1439
    %v1441 = vmul.f32 %v1101, %v1440
    %v1442 = vadd.f32 %v1435, %v1441
    %v1443 = vld [vmem:[%s843 + $0x12] sm:$0x1]
    %v1444 = vlaneseq
    %v1445 = vshrl.u32 %v1444, 7
    %v1446 = vsub.s32 0, %v1445
    %v1447 = vrot.slane %v1443, %v1446
    %v1448 = vmul.f32 %v1109, %v1447
    %v1449 = vadd.f32 %v1442, %v1448
    %v1450 = vld [vmem:[%s843 + $0x13] sm:$0x1]
    %v1451 = vlaneseq
    %v1452 = vshrl.u32 %v1451, 7
    %v1453 = vsub.s32 0, %v1452
    %v1454 = vrot.slane %v1450, %v1453
    %v1455 = vmul.f32 %v1118, %v1454
    %v1456 = vadd.f32 %v1449, %v1455
    %v1457 = vld [vmem:[%s843 + $0x14] sm:$0x1]
    %v1458 = vlaneseq
    %v1459 = vshrl.u32 %v1458, 7
    %v1460 = vsub.s32 0, %v1459
    %v1461 = vrot.slane %v1457, %v1460
    %v1462 = vmul.f32 %v1127, %v1461
    %v1463 = vadd.f32 %v1456, %v1462
    %v1464 = vld [vmem:[%s843 + $0x15] sm:$0x1]
    %v1465 = vlaneseq
    %v1466 = vshrl.u32 %v1465, 7
    %v1467 = vsub.s32 0, %v1466
    %v1468 = vrot.slane %v1464, %v1467
    %v1469 = vmul.f32 %v1136, %v1468
    %v1470 = vld [vmem:[%s843 + $0x16] sm:$0x1]
    %v1471 = vlaneseq
    %v1472 = vshrl.u32 %v1471, 7
    %v1473 = vsub.s32 0, %v1472
    %v1474 = vrot.slane %v1470, %v1473
    %v1475 = vmul.f32 %v1145, %v1474
    %v1476 = vadd.f32 %v1469, %v1475
    %v1477 = vld [vmem:[%s843 + $0x17] sm:$0x1]
    %v1478 = vlaneseq
    %v1479 = vshrl.u32 %v1478, 7
    %v1480 = vsub.s32 0, %v1479
    %v1481 = vrot.slane %v1477, %v1480
    %v1482 = vmul.f32 %v1154, %v1481
    %v1483 = vadd.f32 %v1476, %v1482
    %v1484 = vld [vmem:[%s843 + $0x18] sm:$0x1]
    %v1485 = vlaneseq
    %v1486 = vshrl.u32 %v1485, 7
    %v1487 = vsub.s32 0, %v1486
    %v1488 = vrot.slane %v1484, %v1487
    %v1489 = vmul.f32 %v1163, %v1488
    %v1490 = vadd.f32 %v1483, %v1489
    %v1491 = vld [vmem:[%s843 + $0x19] sm:$0x1]
    %v1492 = vlaneseq
    %v1493 = vshrl.u32 %v1492, 7
    %v1494 = vsub.s32 0, %v1493
    %v1495 = vrot.slane %v1491, %v1494
    %v1496 = vmul.f32 %v1171, %v1495
    %v1497 = vadd.f32 %v1490, %v1496
    %v1498 = vld [vmem:[%s843 + $0x1a] sm:$0x1]
    %v1499 = vlaneseq
    %v1500 = vshrl.u32 %v1499, 7
    %v1501 = vsub.s32 0, %v1500
    %v1502 = vrot.slane %v1498, %v1501
    %v1503 = vmul.f32 %v1180, %v1502
    %v1504 = vadd.f32 %v1497, %v1503
    %v1505 = vld [vmem:[%s843 + $0x1b] sm:$0x1]
    %v1506 = vlaneseq
    %v1507 = vshrl.u32 %v1506, 7
    %v1508 = vsub.s32 0, %v1507
    %v1509 = vrot.slane %v1505, %v1508
    %v1510 = vmul.f32 %v1189, %v1509
    %v1511 = vadd.f32 %v1504, %v1510
    %v1512 = vadd.f32 %v1267, %v1315
    %v1513 = vadd.f32 %v1365, %v1413
    %v1514 = vadd.f32 %v1463, %v1511
    %v1515 = vadd.f32 %v1512, %v1513
    %v1516 = vadd.f32 %v1515, %v1514
    %v1517 = vsel %vm1201, %v1516, 0.0
    %1518 = vadd.xlane.f32.xlu0 %v1517
    %v1519 = vpop.xlane.xlu0 %1518
    %1521 = vrot.lane.b32.xlu0 %v1516, 114
    %v1522 = vpop.permute.xlu0 %1521
    %v1524 = vsel %vm1209, %v1522, 0.0
    %1525 = vadd.xlane.f32.xlu0 %v1524
    %v1526 = vpop.xlane.xlu0 %1525
    %1527 = vrot.lane.b32.xlu0 %v1516, 99
    %v1528 = vpop.permute.xlu0 %1527
    %v1530 = vsel %vm1209, %v1528, 0.0
    %1531 = vadd.xlane.f32.xlu0 %v1530
    %v1532 = vpop.xlane.xlu0 %1531
    %v1533 = vld [vmem:[#allocation2 + $0x1d] sm:$0x1]
    %v1534 = vlaneseq
    %v1535 = vshrl.u32 %v1534, 7
    %v1536 = vsub.s32 0, %v1535
    %v1537 = vrot.slane %v1533, %v1536
    %v1538 = vmul.f32 %v1220, %v1537
    %v1539 = vld [vmem:[#allocation2 + $0x1e] sm:$0x1]
    %v1540 = vlaneseq
    %v1541 = vshrl.u32 %v1540, 7
    %v1542 = vsub.s32 0, %v1541
    %v1543 = vrot.slane %v1539, %v1542
    %v1544 = vmul.f32 %v853, %v1543
    %v1545 = vadd.f32 %v1538, %v1544
    %v1546 = vld [vmem:[#allocation2 + $0x1f] sm:$0x1]
    %v1547 = vlaneseq
    %v1548 = vshrl.u32 %v1547, 7
    %v1549 = vsub.s32 0, %v1548
    %v1550 = vrot.slane %v1546, %v1549
    %v1551 = vmul.f32 %v861, %v1550
    %v1552 = vadd.f32 %v1545, %v1551
    %v1553 = vld [vmem:[#allocation2 + $0x20] sm:$0x1]
    %v1554 = vlaneseq
    %v1555 = vshrl.u32 %v1554, 7
    %v1556 = vsub.s32 0, %v1555
    %v1557 = vrot.slane %v1553, %v1556
    %v1558 = vmul.f32 %v870, %v1557
    %v1559 = vadd.f32 %v1552, %v1558
    %v1560 = vld [vmem:[#allocation2 + $0x21] sm:$0x1]
    %v1561 = vlaneseq
    %v1562 = vshrl.u32 %v1561, 7
    %v1563 = vsub.s32 0, %v1562
    %v1564 = vrot.slane %v1560, %v1563
    %v1565 = vmul.f32 %v879, %v1564
    %v1566 = vadd.f32 %v1559, %v1565
    %v1567 = vld [vmem:[#allocation2 + $0x22] sm:$0x1]
    %v1568 = vlaneseq
    %v1569 = vshrl.u32 %v1568, 7
    %v1570 = vsub.s32 0, %v1569
    %v1571 = vrot.slane %v1567, %v1570
    %v1572 = vmul.f32 %v888, %v1571
    %v1573 = vadd.f32 %v1566, %v1572
    %v1574 = vld [vmem:[#allocation2 + $0x23] sm:$0x1]
    %v1575 = vlaneseq
    %v1576 = vshrl.u32 %v1575, 7
    %v1577 = vsub.s32 0, %v1576
    %v1578 = vrot.slane %v1574, %v1577
    %v1579 = vmul.f32 %v897, %v1578
    %v1580 = vadd.f32 %v1573, %v1579
    %v1581 = vld [vmem:[#allocation2 + $0x24] sm:$0x1]
    %v1582 = vlaneseq
    %v1583 = vshrl.u32 %v1582, 7
    %v1584 = vsub.s32 0, %v1583
    %v1585 = vrot.slane %v1581, %v1584
    %v1586 = vmul.f32 %v906, %v1585
    %v1587 = vld [vmem:[#allocation2 + $0x25] sm:$0x1]
    %v1588 = vlaneseq
    %v1589 = vshrl.u32 %v1588, 7
    %v1590 = vsub.s32 0, %v1589
    %v1591 = vrot.slane %v1587, %v1590
    %v1592 = vmul.f32 %v915, %v1591
    %v1593 = vadd.f32 %v1586, %v1592
    %v1594 = vld [vmem:[#allocation2 + $0x26] sm:$0x1]
    %v1595 = vlaneseq
    %v1596 = vshrl.u32 %v1595, 7
    %v1597 = vsub.s32 0, %v1596
    %v1598 = vrot.slane %v1594, %v1597
    %v1599 = vmul.f32 %v923, %v1598
    %v1600 = vadd.f32 %v1593, %v1599
    %v1601 = vld [vmem:[#allocation2 + $0x27] sm:$0x1]
    %v1602 = vlaneseq
    %v1603 = vshrl.u32 %v1602, 7
    %v1604 = vsub.s32 0, %v1603
    %v1605 = vrot.slane %v1601, %v1604
    %v1606 = vmul.f32 %v932, %v1605
    %v1607 = vadd.f32 %v1600, %v1606
    %v1608 = vld [vmem:[#allocation2 + $0x28] sm:$0x1]
    %v1609 = vlaneseq
    %v1610 = vshrl.u32 %v1609, 7
    %v1611 = vsub.s32 0, %v1610
    %v1612 = vrot.slane %v1608, %v1611
    %v1613 = vmul.f32 %v941, %v1612
    %v1614 = vadd.f32 %v1607, %v1613
    %v1615 = vld [vmem:[#allocation2 + $0x29] sm:$0x1]
    %v1616 = vlaneseq
    %v1617 = vshrl.u32 %v1616, 7
    %v1618 = vsub.s32 0, %v1617
    %v1619 = vrot.slane %v1615, %v1618
    %v1620 = vmul.f32 %v950, %v1619
    %v1621 = vadd.f32 %v1614, %v1620
    %v1622 = vld [vmem:[#allocation2 + $0x2a] sm:$0x1]
    %v1623 = vlaneseq
    %v1624 = vshrl.u32 %v1623, 7
    %v1625 = vsub.s32 0, %v1624
    %v1626 = vrot.slane %v1622, %v1625
    %v1627 = vmul.f32 %v959, %v1626
    %v1628 = vadd.f32 %v1621, %v1627
    %v1629 = vld [vmem:[%s580 + $0x1d] sm:$0x1]
    %v1630 = vlaneseq
    %v1631 = vshrl.u32 %v1630, 7
    %v1632 = vsub.s32 0, %v1631
    %v1633 = vrot.slane %v1629, %v1632
    %v1634 = vmul.f32 %v1318, %v1633
    %v1635 = vld [vmem:[%s580 + $0x1e] sm:$0x1]
    %v1636 = vlaneseq
    %v1637 = vshrl.u32 %v1636, 7
    %v1638 = vsub.s32 0, %v1637
    %v1639 = vrot.slane %v1635, %v1638
    %v1640 = vmul.f32 %v968, %v1639
    %v1641 = vadd.f32 %v1634, %v1640
    %v1642 = vld [vmem:[%s580 + $0x1f] sm:$0x1]
    %v1643 = vlaneseq
    %v1644 = vshrl.u32 %v1643, 7
    %v1645 = vsub.s32 0, %v1644
    %v1646 = vrot.slane %v1642, %v1645
    %v1647 = vmul.f32 %v977, %v1646
    %v1648 = vadd.f32 %v1641, %v1647
    %v1649 = vld [vmem:[%s580 + $0x20] sm:$0x1]
    %v1650 = vlaneseq
    %v1651 = vshrl.u32 %v1650, 7
    %v1652 = vsub.s32 0, %v1651
    %v1653 = vrot.slane %v1649, %v1652
    %v1654 = vmul.f32 %v985, %v1653
    %v1655 = vadd.f32 %v1648, %v1654
    %v1656 = vld [vmem:[%s580 + $0x21] sm:$0x1]
    %v1657 = vlaneseq
    %v1658 = vshrl.u32 %v1657, 7
    %v1659 = vsub.s32 0, %v1658
    %v1660 = vrot.slane %v1656, %v1659
    %v1661 = vmul.f32 %v994, %v1660
    %v1662 = vadd.f32 %v1655, %v1661
    %v1663 = vld [vmem:[%s580 + $0x22] sm:$0x1]
    %v1664 = vlaneseq
    %v1665 = vshrl.u32 %v1664, 7
    %v1666 = vsub.s32 0, %v1665
    %v1667 = vrot.slane %v1663, %v1666
    %v1668 = vmul.f32 %v1003, %v1667
    %v1669 = vadd.f32 %v1662, %v1668
    %v1670 = vld [vmem:[%s580 + $0x23] sm:$0x1]
    %v1671 = vlaneseq
    %v1672 = vshrl.u32 %v1671, 7
    %v1673 = vsub.s32 0, %v1672
    %v1674 = vrot.slane %v1670, %v1673
    %v1675 = vmul.f32 %v1012, %v1674
    %v1676 = vadd.f32 %v1669, %v1675
    %v1677 = vld [vmem:[%s580 + $0x24] sm:$0x1]
    %v1678 = vlaneseq
    %v1679 = vshrl.u32 %v1678, 7
    %v1680 = vsub.s32 0, %v1679
    %v1681 = vrot.slane %v1677, %v1680
    %v1682 = vmul.f32 %v1021, %v1681
    %v1683 = vld [vmem:[%s580 + $0x25] sm:$0x1]
    %v1684 = vlaneseq
    %v1685 = vshrl.u32 %v1684, 7
    %v1686 = vsub.s32 0, %v1685
    %v1687 = vrot.slane %v1683, %v1686
    %v1688 = vmul.f32 %v1030, %v1687
    %v1689 = vadd.f32 %v1682, %v1688
    %v1690 = vld [vmem:[%s580 + $0x26] sm:$0x1]
    %v1691 = vlaneseq
    %v1692 = vshrl.u32 %v1691, 7
    %v1693 = vsub.s32 0, %v1692
    %v1694 = vrot.slane %v1690, %v1693
    %v1695 = vmul.f32 %v1039, %v1694
    %v1696 = vadd.f32 %v1689, %v1695
    %v1697 = vld [vmem:[%s580 + $0x27] sm:$0x1]
    %v1698 = vlaneseq
    %v1699 = vshrl.u32 %v1698, 7
    %v1700 = vsub.s32 0, %v1699
    %v1701 = vrot.slane %v1697, %v1700
    %v1702 = vmul.f32 %v1047, %v1701
    %v1703 = vadd.f32 %v1696, %v1702
    %v1704 = vld [vmem:[%s580 + $0x28] sm:$0x1]
    %v1705 = vlaneseq
    %v1706 = vshrl.u32 %v1705, 7
    %v1707 = vsub.s32 0, %v1706
    %v1708 = vrot.slane %v1704, %v1707
    %v1709 = vmul.f32 %v1056, %v1708
    %v1710 = vadd.f32 %v1703, %v1709
    %v1711 = vld [vmem:[%s580 + $0x29] sm:$0x1]
    %v1712 = vlaneseq
    %v1713 = vshrl.u32 %v1712, 7
    %v1714 = vsub.s32 0, %v1713
    %v1715 = vrot.slane %v1711, %v1714
    %v1716 = vmul.f32 %v1065, %v1715
    %v1717 = vadd.f32 %v1710, %v1716
    %v1718 = vld [vmem:[%s580 + $0x2a] sm:$0x1]
    %v1719 = vlaneseq
    %v1720 = vshrl.u32 %v1719, 7
    %v1721 = vsub.s32 0, %v1720
    %v1722 = vrot.slane %v1718, %v1721
    %v1723 = vmul.f32 %v1074, %v1722
    %v1724 = vadd.f32 %v1717, %v1723
    %v1725 = vld [vmem:[%s843 + $0x1d] sm:$0x1]
    %v1726 = vlaneseq
    %v1727 = vshrl.u32 %v1726, 7
    %v1728 = vsub.s32 0, %v1727
    %v1729 = vrot.slane %v1725, %v1728
    %v1730 = vmul.f32 %v1416, %v1729
    %v1731 = vld [vmem:[%s843 + $0x1e] sm:$0x1]
    %v1732 = vlaneseq
    %v1733 = vshrl.u32 %v1732, 7
    %v1734 = vsub.s32 0, %v1733
    %v1735 = vrot.slane %v1731, %v1734
    %v1736 = vmul.f32 %v1083, %v1735
    %v1737 = vadd.f32 %v1730, %v1736
    %v1738 = vld [vmem:[%s843 + $0x1f] sm:$0x1]
    %v1739 = vlaneseq
    %v1740 = vshrl.u32 %v1739, 7
    %v1741 = vsub.s32 0, %v1740
    %v1742 = vrot.slane %v1738, %v1741
    %v1743 = vmul.f32 %v1092, %v1742
    %v1744 = vadd.f32 %v1737, %v1743
    %v1745 = vld [vmem:[%s843 + $0x20] sm:$0x1]
    %v1746 = vlaneseq
    %v1747 = vshrl.u32 %v1746, 7
    %v1748 = vsub.s32 0, %v1747
    %v1749 = vrot.slane %v1745, %v1748
    %v1750 = vmul.f32 %v1101, %v1749
    %v1751 = vadd.f32 %v1744, %v1750
    %v1752 = vld [vmem:[%s843 + $0x21] sm:$0x1]
    %v1753 = vlaneseq
    %v1754 = vshrl.u32 %v1753, 7
    %v1755 = vsub.s32 0, %v1754
    %v1756 = vrot.slane %v1752, %v1755
    %v1757 = vmul.f32 %v1109, %v1756
    %v1758 = vadd.f32 %v1751, %v1757
    %v1759 = vld [vmem:[%s843 + $0x22] sm:$0x1]
    %v1760 = vlaneseq
    %v1761 = vshrl.u32 %v1760, 7
    %v1762 = vsub.s32 0, %v1761
    %v1763 = vrot.slane %v1759, %v1762
    %v1764 = vmul.f32 %v1118, %v1763
    %v1765 = vadd.f32 %v1758, %v1764
    %v1766 = vld [vmem:[%s843 + $0x23] sm:$0x1]
    %v1767 = vlaneseq
    %v1768 = vshrl.u32 %v1767, 7
    %v1769 = vsub.s32 0, %v1768
    %v1770 = vrot.slane %v1766, %v1769
    %v1771 = vmul.f32 %v1127, %v1770
    %v1772 = vadd.f32 %v1765, %v1771
    %v1773 = vld [vmem:[%s843 + $0x24] sm:$0x1]
    %v1774 = vlaneseq
    %v1775 = vshrl.u32 %v1774, 7
    %v1776 = vsub.s32 0, %v1775
    %v1777 = vrot.slane %v1773, %v1776
    %v1778 = vmul.f32 %v1136, %v1777
    %v1779 = vld [vmem:[%s843 + $0x25] sm:$0x1]
    %v1780 = vlaneseq
    %v1781 = vshrl.u32 %v1780, 7
    %v1782 = vsub.s32 0, %v1781
    %v1783 = vrot.slane %v1779, %v1782
    %v1784 = vmul.f32 %v1145, %v1783
    %v1785 = vadd.f32 %v1778, %v1784
    %v1786 = vld [vmem:[%s843 + $0x26] sm:$0x1]
    %v1787 = vlaneseq
    %v1788 = vshrl.u32 %v1787, 7
    %v1789 = vsub.s32 0, %v1788
    %v1790 = vrot.slane %v1786, %v1789
    %v1791 = vmul.f32 %v1154, %v1790
    %v1792 = vadd.f32 %v1785, %v1791
    %v1793 = vld [vmem:[%s843 + $0x27] sm:$0x1]
    %v1794 = vlaneseq
    %v1795 = vshrl.u32 %v1794, 7
    %v1796 = vsub.s32 0, %v1795
    %v1797 = vrot.slane %v1793, %v1796
    %v1798 = vmul.f32 %v1163, %v1797
    %v1799 = vadd.f32 %v1792, %v1798
    %v1800 = vld [vmem:[%s843 + $0x28] sm:$0x1]
    %v1801 = vlaneseq
    %v1802 = vshrl.u32 %v1801, 7
    %v1803 = vsub.s32 0, %v1802
    %v1804 = vrot.slane %v1800, %v1803
    %v1805 = vmul.f32 %v1171, %v1804
    %v1806 = vadd.f32 %v1799, %v1805
    %v1807 = vld [vmem:[%s843 + $0x29] sm:$0x1]
    %v1808 = vlaneseq
    %v1809 = vshrl.u32 %v1808, 7
    %v1810 = vsub.s32 0, %v1809
    %v1811 = vrot.slane %v1807, %v1810
    %v1812 = vmul.f32 %v1180, %v1811
    %v1813 = vadd.f32 %v1806, %v1812
    %v1814 = vld [vmem:[%s843 + $0x2a] sm:$0x1]
    %v1815 = vlaneseq
    %v1816 = vshrl.u32 %v1815, 7
    %v1817 = vsub.s32 0, %v1816
    %v1818 = vrot.slane %v1814, %v1817
    %v1819 = vmul.f32 %v1189, %v1818
    %v1820 = vadd.f32 %v1813, %v1819
    %v1821 = vadd.f32 %v1580, %v1628
    %v1822 = vadd.f32 %v1676, %v1724
    %v1823 = vadd.f32 %v1772, %v1820
    %v1824 = vadd.f32 %v1821, %v1822
    %v1825 = vadd.f32 %v1824, %v1823
    %v1826 = vsel %vm1201, %v1825, 0.0
    %1827 = vadd.xlane.f32.xlu0 %v1826
    %v1828 = vpop.xlane.xlu0 %1827
    %1830 = vrot.lane.b32.xlu0 %v1825, 114
    %v1831 = vpop.permute.xlu0 %1830
    %v1833 = vsel %vm1209, %v1831, 0.0
    %1834 = vadd.xlane.f32.xlu0 %v1833
    %v1835 = vpop.xlane.xlu0 %1834
    %1836 = vrot.lane.b32.xlu0 %v1825, 99
    %v1837 = vpop.permute.xlu0 %1836
    %v1839 = vsel %vm1209, %v1837, 0.0
    %1840 = vadd.xlane.f32.xlu0 %v1839
    %v1841 = vpop.xlane.xlu0 %1840
    %v1842 = vlaneseq
    %v1843 = vand.u32 %v1842, 127
    %vm1844 = vcmp.eq.s32.totalorder %v1843, 0
    %v1845 = vsel %vm1844, %v1204, 0.0
    %vm1846 = vcmp.eq.s32.totalorder %v1843, 1
    %v1847 = vsel %vm1846, %v1212, %v1845
    %vm1848 = vcmp.eq.s32.totalorder %v1843, 2
    %v1849 = vsel %vm1848, %v1218, %v1847
    %vm1850 = vcmp.eq.s32.totalorder %v1843, 3
    %v1851 = vsel %vm1850, %v1519, %v1849
    %vm1852 = vcmp.eq.s32.totalorder %v1843, 4
    %v1853 = vsel %vm1852, %v1526, %v1851
    %vm1854 = vcmp.eq.s32.totalorder %v1843, 5
    %v1855 = vsel %vm1854, %v1532, %v1853
    %vm1856 = vcmp.eq.s32.totalorder %v1843, 6
    %v1857 = vsel %vm1856, %v1828, %v1855
    %vm1858 = vcmp.eq.s32.totalorder %v1843, 7
    %v1859 = vsel %vm1858, %v1835, %v1857
    %vm1860 = vcmp.eq.s32.totalorder %v1843, 8
    %v1861 = vsel %vm1860, %v1841, %v1859
    %v1862 = vld [vmem:[%s2] sm:$0xff]
    %1864 = vset.pattern.permute.xlu0 9
    %1865 = vperm.xlu0 %1864, %v1862
    %v1866 = vpop.permute.xlu0 %1865
    %v1868 = vadd.f32 %v1861, %v1866
    %v1869 = vmul.f32 %v1868, 0.5
    %v1870 = vmul.f32 %v1868, 0.70710677
    %vm1871 = vcmp.lt.f32.partialorder %v1870, 0.0
    %v1872 = vsel %vm1871, -1.0, 1.0
    %v1873 = vand.u32 2147483647, %v1870
    %v1874 = vmul.f32 %v1873, 0.3275911
    %v1875 = vadd.f32 %v1874, 1.0
    %v1876 = vrcp.pop %v1875
    %v1877 = vmul.f32 1.0, %v1876
    %v1878 = vmul.f32 %v1877, 1.0614054
    %v1879 = vadd.f32 %v1878, -1.4531521
    %v1880 = vmul.f32 %v1879, %v1877
    %v1881 = vadd.f32 %v1880, 1.4214138
    %v1882 = vmul.f32 %v1881, %v1877
    %v1883 = vadd.f32 %v1882, -0.28449672
    %v1884 = vmul.f32 %v1883, %v1877
    %v1885 = vadd.f32 %v1884, 0.2548296
    %v1886 = vmul.f32 %v1885, %v1877
    %v1887 = vsub.f32 0.0, %v1873
    %v1888 = vmul.f32 %v1887, %v1873
    %v1889 = vmul.f32 %v1888, 1.442695
    %v1890 = vpow.pop %v1889
    %v1891 = vmul.f32 %v1886, %v1890
    %v1892 = vsub.f32 1.0, %v1891
    %v1893 = vmul.f32 %v1872, %v1892
    %v1894 = vadd.f32 %v1893, 1.0
    %v1895 = vmul.f32 %v1869, %v1894
    %v1896 = vld [vmem:[%s2] sm:$0x1f]
    %1898 = vset.pattern.permute.xlu0 0
    %1899 = vperm.xlu0 %1898, %v1896
    %v1900 = vpop.permute.xlu0 %1899
    %v1902 = vlaneseq
    %v1903 = vshrl.u32 %v1902, 7
    %v1904 = vsub.s32 0, %v1903
    %v1905 = vrot.slane %v1895, %v1904
    %v1906 = vmul.f32 %v1900, %v1905
    %1907 = vset.pattern.permute.xlu0 1
    %1908 = vperm.xlu0 %1907, %v1896
    %v1909 = vpop.permute.xlu0 %1908
    %v1911 = vlaneseq
    %v1912 = vshrl.u32 %v1911, 7
    %v1913 = vsub.s32 1, %v1912
    %v1914 = vrot.slane %v1895, %v1913
    %v1915 = vmul.f32 %v1909, %v1914
    %v1916 = vadd.f32 %v1906, %v1915
    %1917 = vset.pattern.permute.xlu0 2
    %1918 = vperm.xlu0 %1917, %v1896
    %v1919 = vpop.permute.xlu0 %1918
    %v1921 = vlaneseq
    %v1922 = vshrl.u32 %v1921, 7
    %v1923 = vsub.s32 2, %v1922
    %v1924 = vrot.slane %v1895, %v1923
    %v1925 = vmul.f32 %v1919, %v1924
    %v1926 = vadd.f32 %v1916, %v1925
    %1927 = vset.pattern.permute.xlu0 3
    %1928 = vperm.xlu0 %1927, %v1896
    %v1929 = vpop.permute.xlu0 %1928
    %v1931 = vlaneseq
    %v1932 = vshrl.u32 %v1931, 7
    %v1933 = vsub.s32 3, %v1932
    %v1934 = vrot.slane %v1895, %v1933
    %v1935 = vmul.f32 %v1929, %v1934
    %v1936 = vadd.f32 %v1926, %v1935
    %1937 = vset.pattern.permute.xlu0 4
    %1938 = vperm.xlu0 %1937, %v1896
    %v1939 = vpop.permute.xlu0 %1938
    %v1941 = vlaneseq
    %v1942 = vshrl.u32 %v1941, 7
    %v1943 = vsub.s32 4, %v1942
    %v1944 = vrot.slane %v1895, %v1943
    %v1945 = vmul.f32 %v1939, %v1944
    %1946 = vset.pattern.permute.xlu0 5
    %1947 = vperm.xlu0 %1946, %v1896
    %v1948 = vpop.permute.xlu0 %1947
    %v1950 = vlaneseq
    %v1951 = vshrl.u32 %v1950, 7
    %v1952 = vsub.s32 5, %v1951
    %v1953 = vrot.slane %v1895, %v1952
    %v1954 = vmul.f32 %v1948, %v1953
    %v1955 = vadd.f32 %v1945, %v1954
    %1956 = vset.pattern.permute.xlu0 6
    %1957 = vperm.xlu0 %1956, %v1896
    %v1958 = vpop.permute.xlu0 %1957
    %v1960 = vlaneseq
    %v1961 = vshrl.u32 %v1960, 7
    %v1962 = vsub.s32 6, %v1961
    %v1963 = vrot.slane %v1895, %v1962
    %v1964 = vmul.f32 %v1958, %v1963
    %v1965 = vadd.f32 %v1955, %v1964
    %1966 = vset.pattern.permute.xlu0 7
    %1967 = vperm.xlu0 %1966, %v1896
    %v1968 = vpop.permute.xlu0 %1967
    %v1970 = vlaneseq
    %v1971 = vshrl.u32 %v1970, 7
    %v1972 = vsub.s32 7, %v1971
    %v1973 = vrot.slane %v1895, %v1972
    %v1974 = vmul.f32 %v1968, %v1973
    %v1975 = vadd.f32 %v1965, %v1974
    %v1976 = vadd.f32 %v1936, %v1975
    %1977 = vset.pattern.permute.xlu0 8
    %1978 = vperm.xlu0 %1977, %v1896
    %v1979 = vpop.permute.xlu0 %1978
    %v1981 = vadd.f32 %v1976, %v1979
    %v1982 = vlaneseq
    %v1983 = vshrl.u32 %v1982, 7
    %v1984 = vadd.s32 %v1983, 8
    %vm1985 = vcmp.eq.s32.totalorder %v1983, 0
    %vm1986 = vcmp.eq.s32.totalorder %v1984, 0
    %vm1987 = vmand %vm1985, %vm1844
    %vm1988 = vmand %vm1986, %vm1844
    %vm1989 = vmand %vm1985, %vm1858
    %vm1990 = vmand %vm1986, %vm1858
    %vm1991 = vcmp.eq.s32.totalorder %v1843, 14
    %vm1992 = vmand %vm1985, %vm1991
    %vm1993 = vmand %vm1986, %vm1991
    %vm1994 = vcmp.eq.s32.totalorder %v1983, 7
    %vm1995 = vcmp.eq.s32.totalorder %v1984, 7
    %vm1996 = vmand %vm1994, %vm1844
    %vm1997 = vmand %vm1995, %vm1844
    %vm1998 = vmand %vm1994, %vm1858
    %vm1999 = vmand %vm1995, %vm1858
    %vm2000 = vmand %vm1994, %vm1991
    %vm2001 = vmand %vm1995, %vm1991
    %vm2002 = vcmp.eq.s32.totalorder %v1983, 14
    %vm2003 = vcmp.eq.s32.totalorder %v1984, 14
    %vm2004 = vmand %vm2002, %vm1844
    %vm2005 = vmand %vm2003, %vm1844
    %vm2006 = vmand %vm2002, %vm1858
    %vm2007 = vmand %vm2003, %vm1858
    %vm2008 = vmand %vm2002, %vm1991
    %vm2009 = vmand %vm2003, %vm1991
    %v2010 = vld [vmem:[%s2] sm:$0x1]
    %2012 = vrot.lane.b32.xlu0 %v2010, 120
    %v2013 = vpop.permute.xlu0 %2012
    %s2014 = vtos %v2013
    %v2015 = vstv %s2014
    %s2018 = vtos %v1981
    %v2019 = vstv %s2018
    %v2021 = vsel %vm1987, %v2019, %v2015
    %v2022 = vsel %vm1988, %v2019, %v2015
    %2023 = vrot.lane.b32.xlu0 %v1981, 127
    %v2024 = vpop.permute.xlu0 %2023
    %s2025 = vtos %v2024
    %v2026 = vstv %s2025
    %v2028 = vsel %vm1989, %v2026, %v2021
    %v2029 = vsel %vm1990, %v2026, %v2022
    %2030 = vrot.lane.b32.xlu0 %v1981, 126
    %v2031 = vpop.permute.xlu0 %2030
    %s2032 = vtos %v2031
    %v2033 = vstv %s2032
    %v2035 = vsel %vm1992, %v2033, %v2028
    %v2036 = vsel %vm1993, %v2033, %v2029
    %2037 = vrot.lane.b32.xlu0 %v1981, 125
    %v2038 = vpop.permute.xlu0 %2037
    %s2039 = vtos %v2038
    %v2040 = vstv %s2039
    %v2042 = vsel %vm1996, %v2040, %v2035
    %v2043 = vsel %vm1997, %v2040, %v2036
    %2044 = vrot.lane.b32.xlu0 %v1981, 124
    %v2045 = vpop.permute.xlu0 %2044
    %s2046 = vtos %v2045
    %v2047 = vstv %s2046
    %v2049 = vsel %vm1998, %v2047, %v2042
    %v2050 = vsel %vm1999, %v2047, %v2043
    %2051 = vrot.lane.b32.xlu0 %v1981, 123
    %v2052 = vpop.permute.xlu0 %2051
    %s2053 = vtos %v2052
    %v2054 = vstv %s2053
    %v2056 = vsel %vm2000, %v2054, %v2049
    %v2057 = vsel %vm2001, %v2054, %v2050
    %2058 = vrot.lane.b32.xlu0 %v1981, 122
    %v2059 = vpop.permute.xlu0 %2058
    %s2060 = vtos %v2059
    %v2061 = vstv %s2060
    %v2063 = vsel %vm2004, %v2061, %v2056
    %v2064 = vsel %vm2005, %v2061, %v2057
    %2065 = vrot.lane.b32.xlu0 %v1981, 121
    %v2066 = vpop.permute.xlu0 %2065
    %s2067 = vtos %v2066
    %v2068 = vstv %s2067
    %v2070 = vsel %vm2006, %v2068, %v2063
    %v2071 = vsel %vm2007, %v2068, %v2064
    %2072 = vrot.lane.b32.xlu0 %v1981, 120
    %v2073 = vpop.permute.xlu0 %2072
    %s2074 = vtos %v2073
    %v2075 = vstv %s2074
    %v2077 = vsel %vm2008, %v2075, %v2070
    %v2078 = vsel %vm2009, %v2075, %v2071
    %vm2079 = vcmask 121856
    %2080 = vst.msk [vmem:[%s4] sm:$0xff] %vm2079, %v2077
    %vm2081 = vcmask 120832
    %2082 = vst.msk [vmem:[%s4 + $0x8] sm:$0x7f] %vm2081, %v2078
    %v2083 = vld [vmem:[%s2 + $0x1] sm:$0x1]
    %2085 = vrot.lane.b32.xlu0 %v2083, 120
    %v2086 = vpop.permute.xlu0 %2085
    %s2087 = vtos %v2086
    %v2088 = vstv %s2087
    %v2090 = vrot.slane %v1981, 1
    %s2091 = vtos %v2090
    %v2092 = vstv %s2091
    %v2094 = vsel %vm1987, %v2092, %v2088
    %v2095 = vsel %vm1988, %v2092, %v2088
    %2096 = vrot.lane.b32.xlu0 %v2090, 127
    %v2097 = vpop.permute.xlu0 %2096
    %s2098 = vtos %v2097
    %v2099 = vstv %s2098
    %v2101 = vsel %vm1989, %v2099, %v2094
    %v2102 = vsel %vm1990, %v2099, %v2095
    %2103 = vrot.lane.b32.xlu0 %v2090, 126
    %v2104 = vpop.permute.xlu0 %2103
    %s2105 = vtos %v2104
    %v2106 = vstv %s2105
    %v2108 = vsel %vm1992, %v2106, %v2101
    %v2109 = vsel %vm1993, %v2106, %v2102
    %2110 = vrot.lane.b32.xlu0 %v2090, 125
    %v2111 = vpop.permute.xlu0 %2110
    %s2112 = vtos %v2111
    %v2113 = vstv %s2112
    %v2115 = vsel %vm1996, %v2113, %v2108
    %v2116 = vsel %vm1997, %v2113, %v2109
    %2117 = vrot.lane.b32.xlu0 %v2090, 124
    %v2118 = vpop.permute.xlu0 %2117
    %s2119 = vtos %v2118
    %v2120 = vstv %s2119
    %v2122 = vsel %vm1998, %v2120, %v2115
    %v2123 = vsel %vm1999, %v2120, %v2116
    %2124 = vrot.lane.b32.xlu0 %v2090, 123
    %v2125 = vpop.permute.xlu0 %2124
    %s2126 = vtos %v2125
    %v2127 = vstv %s2126
    %v2129 = vsel %vm2000, %v2127, %v2122
    %v2130 = vsel %vm2001, %v2127, %v2123
    %2131 = vrot.lane.b32.xlu0 %v2090, 122
    %v2132 = vpop.permute.xlu0 %2131
    %s2133 = vtos %v2132
    %v2134 = vstv %s2133
    %v2136 = vsel %vm2004, %v2134, %v2129
    %v2137 = vsel %vm2005, %v2134, %v2130
    %2138 = vrot.lane.b32.xlu0 %v2090, 121
    %v2139 = vpop.permute.xlu0 %2138
    %s2140 = vtos %v2139
    %v2141 = vstv %s2140
    %v2143 = vsel %vm2006, %v2141, %v2136
    %v2144 = vsel %vm2007, %v2141, %v2137
    %2145 = vrot.lane.b32.xlu0 %v2090, 120
    %v2146 = vpop.permute.xlu0 %2145
    %s2147 = vtos %v2146
    %v2148 = vstv %s2147
    %v2150 = vsel %vm2008, %v2148, %v2143
    %v2151 = vsel %vm2009, %v2148, %v2144
    %s2152 = scalar_lea.vmem %s4, 16
    %2153 = vst.msk [vmem:[%s2152] sm:$0xff] %vm2079, %v2150
    %2154 = vst.msk [vmem:[%s2152 + $0x8] sm:$0x7f] %vm2081, %v2151
    %v2155 = vld [vmem:[%s2 + $0x2] sm:$0x1]
    %2157 = vrot.lane.b32.xlu0 %v2155, 120
    %v2158 = vpop.permute.xlu0 %2157
    %s2159 = vtos %v2158
    %v2160 = vstv %s2159
    %v2162 = vrot.slane %v1981, 2
    %s2163 = vtos %v2162
    %v2164 = vstv %s2163
    %v2166 = vsel %vm1987, %v2164, %v2160
    %v2167 = vsel %vm1988, %v2164, %v2160
    %2168 = vrot.lane.b32.xlu0 %v2162, 127
    %v2169 = vpop.permute.xlu0 %2168
    %s2170 = vtos %v2169
    %v2171 = vstv %s2170
    %v2173 = vsel %vm1989, %v2171, %v2166
    %v2174 = vsel %vm1990, %v2171, %v2167
    %2175 = vrot.lane.b32.xlu0 %v2162, 126
    %v2176 = vpop.permute.xlu0 %2175
    %s2177 = vtos %v2176
    %v2178 = vstv %s2177
    %v2180 = vsel %vm1992, %v2178, %v2173
    %v2181 = vsel %vm1993, %v2178, %v2174
    %2182 = vrot.lane.b32.xlu0 %v2162, 125
    %v2183 = vpop.permute.xlu0 %2182
    %s2184 = vtos %v2183
    %v2185 = vstv %s2184
    %v2187 = vsel %vm1996, %v2185, %v2180
    %v2188 = vsel %vm1997, %v2185, %v2181
    %2189 = vrot.lane.b32.xlu0 %v2162, 124
    %v2190 = vpop.permute.xlu0 %2189
    %s2191 = vtos %v2190
    %v2192 = vstv %s2191
    %v2194 = vsel %vm1998, %v2192, %v2187
    %v2195 = vsel %vm1999, %v2192, %v2188
    %2196 = vrot.lane.b32.xlu0 %v2162, 123
    %v2197 = vpop.permute.xlu0 %2196
    %s2198 = vtos %v2197
    %v2199 = vstv %s2198
    %v2201 = vsel %vm2000, %v2199, %v2194
    %v2202 = vsel %vm2001, %v2199, %v2195
    %2203 = vrot.lane.b32.xlu0 %v2162, 122
    %v2204 = vpop.permute.xlu0 %2203
    %s2205 = vtos %v2204
    %v2206 = vstv %s2205
    %v2208 = vsel %vm2004, %v2206, %v2201
    %v2209 = vsel %vm2005, %v2206, %v2202
    %2210 = vrot.lane.b32.xlu0 %v2162, 121
    %v2211 = vpop.permute.xlu0 %2210
    %s2212 = vtos %v2211
    %v2213 = vstv %s2212
    %v2215 = vsel %vm2006, %v2213, %v2208
    %v2216 = vsel %vm2007, %v2213, %v2209
    %2217 = vrot.lane.b32.xlu0 %v2162, 120
    %v2218 = vpop.permute.xlu0 %2217
    %s2219 = vtos %v2218
    %v2220 = vstv %s2219
    %v2222 = vsel %vm2008, %v2220, %v2215
    %v2223 = vsel %vm2009, %v2220, %v2216
    %s2224 = scalar_lea.vmem %s4, 32
    %2225 = vst.msk [vmem:[%s2224] sm:$0xff] %vm2079, %v2222
    %2226 = vst.msk [vmem:[%s2224 + $0x8] sm:$0x7f] %vm2081, %v2223
    %v2227 = vld [vmem:[%s2 + $0x3] sm:$0x1]
    %2229 = vrot.lane.b32.xlu0 %v2227, 120
    %v2230 = vpop.permute.xlu0 %2229
    %s2231 = vtos %v2230
    %v2232 = vstv %s2231
    %v2234 = vrot.slane %v1981, 3
    %s2235 = vtos %v2234
    %v2236 = vstv %s2235
    %v2238 = vsel %vm1987, %v2236, %v2232
    %v2239 = vsel %vm1988, %v2236, %v2232
    %2240 = vrot.lane.b32.xlu0 %v2234, 127
    %v2241 = vpop.permute.xlu0 %2240
    %s2242 = vtos %v2241
    %v2243 = vstv %s2242
    %v2245 = vsel %vm1989, %v2243, %v2238
    %v2246 = vsel %vm1990, %v2243, %v2239
    %2247 = vrot.lane.b32.xlu0 %v2234, 126
    %v2248 = vpop.permute.xlu0 %2247
    %s2249 = vtos %v2248
    %v2250 = vstv %s2249
    %v2252 = vsel %vm1992, %v2250, %v2245
    %v2253 = vsel %vm1993, %v2250, %v2246
    %2254 = vrot.lane.b32.xlu0 %v2234, 125
    %v2255 = vpop.permute.xlu0 %2254
    %s2256 = vtos %v2255
    %v2257 = vstv %s2256
    %v2259 = vsel %vm1996, %v2257, %v2252
    %v2260 = vsel %vm1997, %v2257, %v2253
    %2261 = vrot.lane.b32.xlu0 %v2234, 124
    %v2262 = vpop.permute.xlu0 %2261
    %s2263 = vtos %v2262
    %v2264 = vstv %s2263
    %v2266 = vsel %vm1998, %v2264, %v2259
    %v2267 = vsel %vm1999, %v2264, %v2260
    %2268 = vrot.lane.b32.xlu0 %v2234, 123
    %v2269 = vpop.permute.xlu0 %2268
    %s2270 = vtos %v2269
    %v2271 = vstv %s2270
    %v2273 = vsel %vm2000, %v2271, %v2266
    %v2274 = vsel %vm2001, %v2271, %v2267
    %2275 = vrot.lane.b32.xlu0 %v2234, 122
    %v2276 = vpop.permute.xlu0 %2275
    %s2277 = vtos %v2276
    %v2278 = vstv %s2277
    %v2280 = vsel %vm2004, %v2278, %v2273
    %v2281 = vsel %vm2005, %v2278, %v2274
    %2282 = vrot.lane.b32.xlu0 %v2234, 121
    %v2283 = vpop.permute.xlu0 %2282
    %s2284 = vtos %v2283
    %v2285 = vstv %s2284
    %v2287 = vsel %vm2006, %v2285, %v2280
    %v2288 = vsel %vm2007, %v2285, %v2281
    %2289 = vrot.lane.b32.xlu0 %v2234, 120
    %v2290 = vpop.permute.xlu0 %2289
    %s2291 = vtos %v2290
    %v2292 = vstv %s2291
    %v2294 = vsel %vm2008, %v2292, %v2287
    %v2295 = vsel %vm2009, %v2292, %v2288
    %s2296 = scalar_lea.vmem %s4, 48
    %2297 = vst.msk [vmem:[%s2296] sm:$0xff] %vm2079, %v2294
    %2298 = vst.msk [vmem:[%s2296 + $0x8] sm:$0x7f] %vm2081, %v2295
    %v2299 = vld [vmem:[%s2 + $0x4] sm:$0x1]
    %2301 = vrot.lane.b32.xlu0 %v2299, 120
    %v2302 = vpop.permute.xlu0 %2301
    %s2303 = vtos %v2302
    %v2304 = vstv %s2303
    %v2306 = vrot.slane %v1981, 4
    %s2307 = vtos %v2306
    %v2308 = vstv %s2307
    %v2310 = vsel %vm1987, %v2308, %v2304
    %v2311 = vsel %vm1988, %v2308, %v2304
    %2312 = vrot.lane.b32.xlu0 %v2306, 127
    %v2313 = vpop.permute.xlu0 %2312
    %s2314 = vtos %v2313
    %v2315 = vstv %s2314
    %v2317 = vsel %vm1989, %v2315, %v2310
    %v2318 = vsel %vm1990, %v2315, %v2311
    %2319 = vrot.lane.b32.xlu0 %v2306, 126
    %v2320 = vpop.permute.xlu0 %2319
    %s2321 = vtos %v2320
    %v2322 = vstv %s2321
    %v2324 = vsel %vm1992, %v2322, %v2317
    %v2325 = vsel %vm1993, %v2322, %v2318
    %2326 = vrot.lane.b32.xlu0 %v2306, 125
    %v2327 = vpop.permute.xlu0 %2326
    %s2328 = vtos %v2327
    %v2329 = vstv %s2328
    %v2331 = vsel %vm1996, %v2329, %v2324
    %v2332 = vsel %vm1997, %v2329, %v2325
    %2333 = vrot.lane.b32.xlu0 %v2306, 124
    %v2334 = vpop.permute.xlu0 %2333
    %s2335 = vtos %v2334
    %v2336 = vstv %s2335
    %v2338 = vsel %vm1998, %v2336, %v2331
    %v2339 = vsel %vm1999, %v2336, %v2332
    %2340 = vrot.lane.b32.xlu0 %v2306, 123
    %v2341 = vpop.permute.xlu0 %2340
    %s2342 = vtos %v2341
    %v2343 = vstv %s2342
    %v2345 = vsel %vm2000, %v2343, %v2338
    %v2346 = vsel %vm2001, %v2343, %v2339
    %2347 = vrot.lane.b32.xlu0 %v2306, 122
    %v2348 = vpop.permute.xlu0 %2347
    %s2349 = vtos %v2348
    %v2350 = vstv %s2349
    %v2352 = vsel %vm2004, %v2350, %v2345
    %v2353 = vsel %vm2005, %v2350, %v2346
    %2354 = vrot.lane.b32.xlu0 %v2306, 121
    %v2355 = vpop.permute.xlu0 %2354
    %s2356 = vtos %v2355
    %v2357 = vstv %s2356
    %v2359 = vsel %vm2006, %v2357, %v2352
    %v2360 = vsel %vm2007, %v2357, %v2353
    %2361 = vrot.lane.b32.xlu0 %v2306, 120
    %v2362 = vpop.permute.xlu0 %2361
    %s2363 = vtos %v2362
    %v2364 = vstv %s2363
    %v2366 = vsel %vm2008, %v2364, %v2359
    %v2367 = vsel %vm2009, %v2364, %v2360
    %s2368 = scalar_lea.vmem %s4, 64
    %2369 = vst.msk [vmem:[%s2368] sm:$0xff] %vm2079, %v2366
    %2370 = vst.msk [vmem:[%s2368 + $0x8] sm:$0x7f] %vm2081, %v2367
    // Predicated region
    $region22: #{model_forward.1} parent=1 // pred_check
      _
    $region23: #{model_forward.1} parent=1 // pred_check_branch
      %2372 = sbr.rel (0) target = $region25
    $region24: #{model_forward.1} parent=1 // pred_region
      _
    $region25: #{model_forward.1} parent=1 // pred_fallthru
      _
    // Predicated region
    $region26: #{model_forward.1} parent=1 // pred_check
      _
    $region27: #{model_forward.1} parent=1 // pred_check_branch
      %2374 = sbr.rel (0) target = $region29
    $region28: #{model_forward.1} parent=1 // pred_region
      _
    $region29: #{model_forward.1} parent=1 // pred_fallthru
      _
    %2375 = vsyncpa [#allocation4], 1

</llo_original>
